<compile_context>
chip_gen: v5e
topology: v5e:2x2
jax: 0.10.0
libtpu: 0.0.40
codegen_flags: <defaults>
</compile_context>

<pallas_src>
import functools

import jax
import jax.numpy as jnp
from jax.experimental import pallas as pl
from jax.experimental.pallas import tpu as pltpu

LANE = 128


def _round_up(x, m):
    return ((x + m - 1) // m) * m


def _decoder_kernel(z_ref,
                    w1_ref, s1_ref, b1_ref,
                    w2_ref, s2_ref, b2_ref,
                    w3_ref, s3_ref, b3_ref,
                    w4_ref, s4_ref, b4_ref,
                    out_ref):
    """One batch tile through all four layers; weights stay VMEM-resident."""

    def qdot(x_bf16, w_ref):
        # int8 -> f32 -> bf16 is exact for |q| <= 127 and uses conversions
        # Mosaic always supports; the dot runs on the MXU with f32 accum.
        w = w_ref[...].astype(jnp.float32).astype(jnp.bfloat16)
        return jnp.dot(x_bf16, w, preferred_element_type=jnp.float32)

    h = z_ref[...]                                            # bf16 (tb, 16)

    h = qdot(h, w1_ref) * s1_ref[...] + b1_ref[...]           # (tb, 2048) f32
    h = jnp.maximum(h, 0.0).astype(jnp.bfloat16)              # bf16 intermediate

    h = qdot(h, w2_ref) * s2_ref[...] + b2_ref[...]           # (tb, 512)
    h = jnp.maximum(h, 0.0).astype(jnp.bfloat16)

    h = qdot(h, w3_ref) * s3_ref[...] + b3_ref[...]           # (tb, 512)
    h = jnp.maximum(h, 0.0).astype(jnp.bfloat16)

    h = qdot(h, w4_ref) * s4_ref[...] + b4_ref[...]           # (tb, 128)
    out_ref[...] = jax.nn.sigmoid(h).astype(out_ref.dtype)


@functools.partial(jax.jit, static_argnames=("out_dim",))
def decoder_forward(z, packed, out_dim):
    """Run the 4-layer MLP decoder in one Pallas kernel with a batch grid.

    z: (B, hid_dim) float32
    packed: dict from pack_params(): per layer i
        w{i}: (in_p, out_p) int8, s{i}: (1, out_p) f32, b{i}: (1, out_p) f32
    returns: (B, out_dim) float32
    """
    w1, s1, b1 = packed["w1"], packed["s1"], packed["b1"]
    w2, s2, b2 = packed["w2"], packed["s2"], packed["b2"]
    w3, s3, b3 = packed["w3"], packed["s3"], packed["b3"]
    w4, s4, b4 = packed["w4"], packed["s4"], packed["b4"]

    B, hid = z.shape
    hid_p = w1.shape[0]                               # 16 (not 128)
    d1p, d2p, d3p, d4p = w1.shape[1], w2.shape[1], w3.shape[1], w4.shape[1]

    # Batch tile: <=128 rows per step for small/medium batches, 256 for large
    # batches (fills both rows of the 2x256x256 MXU on v6e/v7x).
    if B >= 512:
        tb = 256
    else:
        tb = min(128, _round_up(B, 16))
    b_pad = _round_up(B, tb)
    grid_steps = b_pad // tb

    # bf16 z halves its read bytes; padding is zeros so semantics unchanged.
    zp = jnp.zeros((b_pad, hid_p), jnp.bfloat16).at[:B, :hid].set(
        z.astype(jnp.bfloat16))

    def full(shape):
        # Whole array every grid step; constant block index => loaded once,
        # stays VMEM-resident across the batch grid.
        return pl.BlockSpec(shape, lambda i: (0, 0))

    in_specs = [
        pl.BlockSpec((tb, hid_p), lambda i: (i, 0)),            # z tile
        full((hid_p, d1p)), full((1, d1p)), full((1, d1p)),     # layer 1
        full((d1p, d2p)), full((1, d2p)), full((1, d2p)),       # layer 2
        full((d2p, d3p)), full((1, d3p)), full((1, d3p)),       # layer 3
        full((d3p, d4p)), full((1, d4p)), full((1, d4p)),       # layer 4
    ]
    out_spec = pl.BlockSpec((tb, d4p), lambda i: (i, 0))

    # Only split the batch across v7x's two TensorCores when activation
    # traffic dominates the weight fetch; otherwise each TC would re-fetch
    # the whole weight set and double the dominant HBM bytes.
    weight_bytes = w1.size + w2.size + w3.size + w4.size        # int8 => 1 B/elem
    act_bytes = b_pad * (hid_p * 2 + d4p * 4)                   # z read + out write
    semantics = ("parallel",) if (grid_steps >= 2 and act_bytes >= weight_bytes) \
        else ("arbitrary",)

    out_padded = pl.pallas_call(
        _decoder_kernel,
        out_shape=jax.ShapeDtypeStruct((b_pad, d4p), jnp.float32),
        grid=(grid_steps,),
        in_specs=in_specs,
        out_specs=out_spec,
        compiler_params=pltpu.CompilerParams(
            dimension_semantics=semantics,
            vmem_limit_bytes=32 << 20,
        ),
    )(zp, w1, s1, b1, w2, s2, b2, w3, s3, b3, w4, s4, b4)

    return out_padded[:B, :out_dim]


def init_params(key, input_dim=48, inter_dims=(500, 500, 2000), hid_dim=10):
    """Deterministic synthetic f32 parameters (shapes match the PyTorch module).

    Weights are stored as (in, out) so the kernel computes x @ W + b (the
    transpose of nn.Linear's weight layout, applied at setup time).
    """
    dims = [hid_dim, inter_dims[-1], inter_dims[-2], inter_dims[-3], input_dim]
    params = {}
    keys = jax.random.split(key, 2 * (len(dims) - 1))
    for i in range(len(dims) - 1):
        fan_in, fan_out = dims[i], dims[i + 1]
        wk, bk = keys[2 * i], keys[2 * i + 1]
        scale = 1.0 / jnp.sqrt(jnp.float32(fan_in))
        params[f"w{i+1}"] = (jax.random.uniform(wk, (fan_in, fan_out),
                                                jnp.float32, -1.0, 1.0) * scale)
        params[f"b{i+1}"] = (jax.random.uniform(bk, (1, fan_out),
                                                jnp.float32, -1.0, 1.0) * scale)
    return params


def _quantize_per_col(w):
    """Symmetric per-output-channel int8 quantization."""
    amax = jnp.max(jnp.abs(w), axis=0)                    # (out,)
    scale = jnp.maximum(amax / 127.0, 1e-8)
    q = jnp.clip(jnp.round(w / scale), -127.0, 127.0).astype(jnp.int8)
    return q, scale.astype(jnp.float32)


def pack_params(params):
    """int8-quantize weights, pad out-dims to 128 lanes, chain in-dims.

    Layer-1's in-dim (hid_dim) is padded only to 16 (bf16 sublane pack); all
    out-dims are padded to multiples of 128 for lane-dense activations.
    """
    packed = {}
    in_p = _round_up(params["w1"].shape[0], 16)            # 10 -> 16, not 128
    for i in range(1, 5):
        w = params[f"w{i}"]
        b = params[f"b{i}"]
        out_p = _round_up(w.shape[1], LANE)
        q, s = _quantize_per_col(w)
        wq = jnp.zeros((in_p, out_p), jnp.int8).at[:w.shape[0], :w.shape[1]].set(q)
        sp = jnp.ones((1, out_p), jnp.float32).at[0, :w.shape[1]].set(s)
        bp = jnp.zeros((1, out_p), jnp.float32).at[:, :b.shape[1]].set(b)
        packed[f"w{i}"], packed[f"s{i}"], packed[f"b{i}"] = wq, sp, bp
        in_p = out_p                                       # next layer's in pad
    return packed


def decoder_reference_f32(z, params):
    """Pure-JAX f32 reference (original module semantics)."""
    h = jnp.maximum(z @ params["w1"] + params["b1"], 0.0)
    h = jnp.maximum(h @ params["w2"] + params["b2"], 0.0)
    h = jnp.maximum(h @ params["w3"] + params["b3"], 0.0)
    return jax.nn.sigmoid(h @ params["w4"] + params["b4"])


def decoder_reference_quant(z, packed, out_dim):
    """Reference mirroring the kernel math (bf16 activations, int8*scale weights)."""
    B, hid = z.shape
    hid_p = packed["w1"].shape[0]
    h = jnp.zeros((B, hid_p), jnp.float32).at[:, :hid].set(z)
    h = h.astype(jnp.bfloat16).astype(jnp.float32)
    for i in range(1, 5):
        q = packed[f"w{i}"].astype(jnp.float32)
        s = packed[f"s{i}"]
        b = packed[f"b{i}"]
        h = jnp.dot(h, q) * s + b
        if i == 4:
            h = jax.nn.sigmoid(h)
        else:
            h = jnp.maximum(h, 0.0).astype(jnp.bfloat16).astype(jnp.float32)
    return h[:, :out_dim]


if __name__ == "__main__":
    key = jax.random.PRNGKey(0)
    pkey, zkey = jax.random.split(key)

    INPUT_DIM = 48
    INTER_DIMS = (500, 500, 2000)
    HID_DIM = 10
    BATCH = 16

    params_f32 = init_params(pkey, INPUT_DIM, INTER_DIMS, HID_DIM)
    packed = pack_params(params_f32)
    z = jax.random.normal(zkey, (BATCH, HID_DIM), jnp.float32)

    out = decoder_forward(z, packed, INPUT_DIM)
    jax.block_until_ready(out)
    assert out.shape == (BATCH, INPUT_DIM), out.shape

    ref_quant = decoder_reference_quant(z, packed, INPUT_DIM)
    ref_f32 = decoder_reference_f32(z, params_f32)

    # Tight check against a reference using identical bf16/int8 math.
    assert jnp.allclose(out, ref_quant, atol=5e-3, rtol=0.0), \
        "mismatch vs quantization-consistent reference"
    # Loose sanity check against the full-f32 module semantics.
    assert jnp.allclose(out, ref_f32, atol=5e-2, rtol=0.0), \
        "quantized weights drifted too far from f32 reference"

    print("KERNEL_OK")
</pallas_src>

<mosaic_0001>
module attributes {stable_mosaic.version = 11 : i64} {
  func.func @_decoder_kernel(%arg0: i32, %arg1: memref<16x16xbf16, #tpu.memory_space<vmem>>, %arg2: memref<16x2048xi8, #tpu.memory_space<vmem>>, %arg3: memref<1x2048xf32, #tpu.memory_space<vmem>>, %arg4: memref<1x2048xf32, #tpu.memory_space<vmem>>, %arg5: memref<2048x512xi8, #tpu.memory_space<vmem>>, %arg6: memref<1x512xf32, #tpu.memory_space<vmem>>, %arg7: memref<1x512xf32, #tpu.memory_space<vmem>>, %arg8: memref<512x512xi8, #tpu.memory_space<vmem>>, %arg9: memref<1x512xf32, #tpu.memory_space<vmem>>, %arg10: memref<1x512xf32, #tpu.memory_space<vmem>>, %arg11: memref<512x128xi8, #tpu.memory_space<vmem>>, %arg12: memref<1x128xf32, #tpu.memory_space<vmem>>, %arg13: memref<1x128xf32, #tpu.memory_space<vmem>>, %arg14: memref<16x128xf32, #tpu.memory_space<vmem>>) attributes {dimension_semantics = [#tpu.dimension_semantics<arbitrary>], iteration_bounds = array<i64: 1>, scalar_prefetch = 0 : i64, scratch_operands = 0 : i64, tpu.core_type = #tpu.core_type<tc>, window_params = [{transform_indices = @transform_0, window_bounds = array<i64: 16, 16>}, {pipeline_mode = #tpu.pipeline_mode<synchronous>, transform_indices = @transform_1, window_bounds = array<i64: 16, 2048>}, {pipeline_mode = #tpu.pipeline_mode<synchronous>, transform_indices = @transform_2, window_bounds = array<i64: 1, 2048>}, {pipeline_mode = #tpu.pipeline_mode<synchronous>, transform_indices = @transform_3, window_bounds = array<i64: 1, 2048>}, {pipeline_mode = #tpu.pipeline_mode<synchronous>, transform_indices = @transform_4, window_bounds = array<i64: 2048, 512>}, {pipeline_mode = #tpu.pipeline_mode<synchronous>, transform_indices = @transform_5, window_bounds = array<i64: 1, 512>}, {pipeline_mode = #tpu.pipeline_mode<synchronous>, transform_indices = @transform_6, window_bounds = array<i64: 1, 512>}, {pipeline_mode = #tpu.pipeline_mode<synchronous>, transform_indices = @transform_7, window_bounds = array<i64: 512, 512>}, {pipeline_mode = #tpu.pipeline_mode<synchronous>, transform_indices = @transform_8, window_bounds = array<i64: 1, 512>}, {pipeline_mode = #tpu.pipeline_mode<synchronous>, transform_indices = @transform_9, window_bounds = array<i64: 1, 512>}, {pipeline_mode = #tpu.pipeline_mode<synchronous>, transform_indices = @transform_10, window_bounds = array<i64: 512, 128>}, {pipeline_mode = #tpu.pipeline_mode<synchronous>, transform_indices = @transform_11, window_bounds = array<i64: 1, 128>}, {pipeline_mode = #tpu.pipeline_mode<synchronous>, transform_indices = @transform_12, window_bounds = array<i64: 1, 128>}, {transform_indices = @transform_13, window_bounds = array<i64: 16, 128>}]} {
    %c0 = arith.constant 0 : index
    %c0_0 = arith.constant 0 : index
    %0 = vector.load %arg1[%c0, %c0_0] : memref<16x16xbf16, #tpu.memory_space<vmem>>, vector<16x16xbf16>
    %c0_1 = arith.constant 0 : index
    %c0_2 = arith.constant 0 : index
    %1 = vector.load %arg2[%c0_1, %c0_2] : memref<16x2048xi8, #tpu.memory_space<vmem>>, vector<16x2048xi8>
    %2 = arith.sitofp %1 : vector<16x2048xi8> to vector<16x2048xf32>
    %3 = arith.truncf %2 : vector<16x2048xf32> to vector<16x2048xbf16>
    %cst = arith.constant dense<0.000000e+00> : vector<16x2048xf32>
    %4 = tpu.matmul %0, %3, %cst {dimension_numbers = #tpu.dot_dimension_numbers<[1], [0], [0], [1], [0, 0, 1, 1], [], []>} : vector<16x16xbf16>, vector<16x2048xbf16>, vector<16x2048xf32> -> vector<16x2048xf32>
    %c0_3 = arith.constant 0 : index
    %c0_4 = arith.constant 0 : index
    %5 = vector.load %arg3[%c0_3, %c0_4] : memref<1x2048xf32, #tpu.memory_space<vmem>>, vector<1x2048xf32>
    %6 = vector.broadcast %5 : vector<1x2048xf32> to vector<16x2048xf32>
    %7 = arith.mulf %4, %6 : vector<16x2048xf32>
    %c0_5 = arith.constant 0 : index
    %c0_6 = arith.constant 0 : index
    %8 = vector.load %arg4[%c0_5, %c0_6] : memref<1x2048xf32, #tpu.memory_space<vmem>>, vector<1x2048xf32>
    %9 = vector.broadcast %8 : vector<1x2048xf32> to vector<16x2048xf32>
    %10 = arith.addf %7, %9 : vector<16x2048xf32>
    %cst_7 = arith.constant 0.000000e+00 : f32
    %11 = vector.broadcast %cst_7 : f32 to vector<16x2048xf32>
    %12 = arith.maximumf %10, %11 : vector<16x2048xf32>
    %13 = arith.truncf %12 : vector<16x2048xf32> to vector<16x2048xbf16>
    %c0_8 = arith.constant 0 : index
    %c0_9 = arith.constant 0 : index
    %14 = vector.load %arg5[%c0_8, %c0_9] : memref<2048x512xi8, #tpu.memory_space<vmem>>, vector<2048x512xi8>
    %15 = arith.sitofp %14 : vector<2048x512xi8> to vector<2048x512xf32>
    %16 = arith.truncf %15 : vector<2048x512xf32> to vector<2048x512xbf16>
    %cst_10 = arith.constant dense<0.000000e+00> : vector<16x512xf32>
    %17 = tpu.matmul %13, %16, %cst_10 {dimension_numbers = #tpu.dot_dimension_numbers<[1], [0], [0], [1], [0, 0, 1, 1], [], []>} : vector<16x2048xbf16>, vector<2048x512xbf16>, vector<16x512xf32> -> vector<16x512xf32>
    %c0_11 = arith.constant 0 : index
    %c0_12 = arith.constant 0 : index
    %18 = vector.load %arg6[%c0_11, %c0_12] : memref<1x512xf32, #tpu.memory_space<vmem>>, vector<1x512xf32>
    %19 = vector.broadcast %18 : vector<1x512xf32> to vector<16x512xf32>
    %20 = arith.mulf %17, %19 : vector<16x512xf32>
    %c0_13 = arith.constant 0 : index
    %c0_14 = arith.constant 0 : index
    %21 = vector.load %arg7[%c0_13, %c0_14] : memref<1x512xf32, #tpu.memory_space<vmem>>, vector<1x512xf32>
    %22 = vector.broadcast %21 : vector<1x512xf32> to vector<16x512xf32>
    %23 = arith.addf %20, %22 : vector<16x512xf32>
    %cst_15 = arith.constant 0.000000e+00 : f32
    %24 = vector.broadcast %cst_15 : f32 to vector<16x512xf32>
    %25 = arith.maximumf %23, %24 : vector<16x512xf32>
    %26 = arith.truncf %25 : vector<16x512xf32> to vector<16x512xbf16>
    %c0_16 = arith.constant 0 : index
    %c0_17 = arith.constant 0 : index
    %27 = vector.load %arg8[%c0_16, %c0_17] : memref<512x512xi8, #tpu.memory_space<vmem>>, vector<512x512xi8>
    %28 = arith.sitofp %27 : vector<512x512xi8> to vector<512x512xf32>
    %29 = arith.truncf %28 : vector<512x512xf32> to vector<512x512xbf16>
    %cst_18 = arith.constant dense<0.000000e+00> : vector<16x512xf32>
    %30 = tpu.matmul %26, %29, %cst_18 {dimension_numbers = #tpu.dot_dimension_numbers<[1], [0], [0], [1], [0, 0, 1, 1], [], []>} : vector<16x512xbf16>, vector<512x512xbf16>, vector<16x512xf32> -> vector<16x512xf32>
    %c0_19 = arith.constant 0 : index
    %c0_20 = arith.constant 0 : index
    %31 = vector.load %arg9[%c0_19, %c0_20] : memref<1x512xf32, #tpu.memory_space<vmem>>, vector<1x512xf32>
    %32 = vector.broadcast %31 : vector<1x512xf32> to vector<16x512xf32>
    %33 = arith.mulf %30, %32 : vector<16x512xf32>
    %c0_21 = arith.constant 0 : index
    %c0_22 = arith.constant 0 : index
    %34 = vector.load %arg10[%c0_21, %c0_22] : memref<1x512xf32, #tpu.memory_space<vmem>>, vector<1x512xf32>
    %35 = vector.broadcast %34 : vector<1x512xf32> to vector<16x512xf32>
    %36 = arith.addf %33, %35 : vector<16x512xf32>
    %cst_23 = arith.constant 0.000000e+00 : f32
    %37 = vector.broadcast %cst_23 : f32 to vector<16x512xf32>
    %38 = arith.maximumf %36, %37 : vector<16x512xf32>
    %39 = arith.truncf %38 : vector<16x512xf32> to vector<16x512xbf16>
    %c0_24 = arith.constant 0 : index
    %c0_25 = arith.constant 0 : index
    %40 = vector.load %arg11[%c0_24, %c0_25] : memref<512x128xi8, #tpu.memory_space<vmem>>, vector<512x128xi8>
    %41 = arith.sitofp %40 : vector<512x128xi8> to vector<512x128xf32>
    %42 = arith.truncf %41 : vector<512x128xf32> to vector<512x128xbf16>
    %cst_26 = arith.constant dense<0.000000e+00> : vector<16x128xf32>
    %43 = tpu.matmul %39, %42, %cst_26 {dimension_numbers = #tpu.dot_dimension_numbers<[1], [0], [0], [1], [0, 0, 1, 1], [], []>} : vector<16x512xbf16>, vector<512x128xbf16>, vector<16x128xf32> -> vector<16x128xf32>
    %c0_27 = arith.constant 0 : index
    %c0_28 = arith.constant 0 : index
    %44 = vector.load %arg12[%c0_27, %c0_28] : memref<1x128xf32, #tpu.memory_space<vmem>>, vector<1x128xf32>
    %45 = vector.broadcast %44 : vector<1x128xf32> to vector<16x128xf32>
    %46 = arith.mulf %43, %45 : vector<16x128xf32>
    %c0_29 = arith.constant 0 : index
    %c0_30 = arith.constant 0 : index
    %47 = vector.load %arg13[%c0_29, %c0_30] : memref<1x128xf32, #tpu.memory_space<vmem>>, vector<1x128xf32>
    %48 = vector.broadcast %47 : vector<1x128xf32> to vector<16x128xf32>
    %49 = arith.addf %46, %48 : vector<16x128xf32>
    %50 = arith.negf %49 : vector<16x128xf32>
    %51 = math.exp %50 : vector<16x128xf32>
    %cst_31 = arith.constant 1.000000e+00 : f32
    %52 = vector.broadcast %cst_31 : f32 to vector<16x128xf32>
    %53 = arith.addf %52, %51 : vector<16x128xf32>
    %54 = arith.divf %52, %53 : vector<16x128xf32>
    %c0_32 = arith.constant 0 : index
    %c0_33 = arith.constant 0 : index
    %55 = vector.load %arg14[%c0_32, %c0_33] : memref<16x128xf32, #tpu.memory_space<vmem>>, vector<16x128xf32>
    tpu.vector_store %arg14[%c0_32, %c0_33], %54 {strides = array<i32>} : memref<16x128xf32, #tpu.memory_space<vmem>>, vector<16x128xf32>,
    return
  }
  func.func @transform_0(%arg0: i32) -> (i32, i32) {
    %c0_i32 = arith.constant 0 : i32
    %c0_i32_0 = arith.constant 0 : i32
    return %arg0, %c0_i32 : i32, i32
  }
  func.func @transform_1(%arg0: i32) -> (i32, i32) {
    %c0_i32 = arith.constant 0 : i32
    %c0_i32_0 = arith.constant 0 : i32
    %c0_i32_1 = arith.constant 0 : i32
    return %c0_i32, %c0_i32_0 : i32, i32
  }
  func.func @transform_2(%arg0: i32) -> (i32, i32) {
    %c0_i32 = arith.constant 0 : i32
    %c0_i32_0 = arith.constant 0 : i32
    %c0_i32_1 = arith.constant 0 : i32
    return %c0_i32, %c0_i32_0 : i32, i32
  }
  func.func @transform_3(%arg0: i32) -> (i32, i32) {
    %c0_i32 = arith.constant 0 : i32
    %c0_i32_0 = arith.constant 0 : i32
    %c0_i32_1 = arith.constant 0 : i32
    return %c0_i32, %c0_i32_0 : i32, i32
  }
  func.func @transform_4(%arg0: i32) -> (i32, i32) {
    %c0_i32 = arith.constant 0 : i32
    %c0_i32_0 = arith.constant 0 : i32
    %c0_i32_1 = arith.constant 0 : i32
    return %c0_i32, %c0_i32_0 : i32, i32
  }
  func.func @transform_5(%arg0: i32) -> (i32, i32) {
    %c0_i32 = arith.constant 0 : i32
    %c0_i32_0 = arith.constant 0 : i32
    %c0_i32_1 = arith.constant 0 : i32
    return %c0_i32, %c0_i32_0 : i32, i32
  }
  func.func @transform_6(%arg0: i32) -> (i32, i32) {
    %c0_i32 = arith.constant 0 : i32
    %c0_i32_0 = arith.constant 0 : i32
    %c0_i32_1 = arith.constant 0 : i32
    return %c0_i32, %c0_i32_0 : i32, i32
  }
  func.func @transform_7(%arg0: i32) -> (i32, i32) {
    %c0_i32 = arith.constant 0 : i32
    %c0_i32_0 = arith.constant 0 : i32
    %c0_i32_1 = arith.constant 0 : i32
    return %c0_i32, %c0_i32_0 : i32, i32
  }
  func.func @transform_8(%arg0: i32) -> (i32, i32) {
    %c0_i32 = arith.constant 0 : i32
    %c0_i32_0 = arith.constant 0 : i32
    %c0_i32_1 = arith.constant 0 : i32
    return %c0_i32, %c0_i32_0 : i32, i32
  }
  func.func @transform_9(%arg0: i32) -> (i32, i32) {
    %c0_i32 = arith.constant 0 : i32
    %c0_i32_0 = arith.constant 0 : i32
    %c0_i32_1 = arith.constant 0 : i32
    return %c0_i32, %c0_i32_0 : i32, i32
  }
  func.func @transform_10(%arg0: i32) -> (i32, i32) {
    %c0_i32 = arith.constant 0 : i32
    %c0_i32_0 = arith.constant 0 : i32
    %c0_i32_1 = arith.constant 0 : i32
    return %c0_i32, %c0_i32_0 : i32, i32
  }
  func.func @transform_11(%arg0: i32) -> (i32, i32) {
    %c0_i32 = arith.constant 0 : i32
    %c0_i32_0 = arith.constant 0 : i32
    %c0_i32_1 = arith.constant 0 : i32
    return %c0_i32, %c0_i32_0 : i32, i32
  }
  func.func @transform_12(%arg0: i32) -> (i32, i32) {
    %c0_i32 = arith.constant 0 : i32
    %c0_i32_0 = arith.constant 0 : i32
    %c0_i32_1 = arith.constant 0 : i32
    return %c0_i32, %c0_i32_0 : i32, i32
  }
  func.func @transform_13(%arg0: i32) -> (i32, i32) {
    %c0_i32 = arith.constant 0 : i32
    %c0_i32_0 = arith.constant 0 : i32
    return %arg0, %c0_i32 : i32, i32
  }
}

</mosaic_0001>

<llo_original>
// kernel: decoder_forward.1
$region0: #{decoder_forward.1}
  #allocation0 [shape = 'u32[]', space=smem, size = 0x4, offset = 0x4, fixed_abs, tag = 'smem constant byte address 0x4 - core index']
  #allocation1 [shape = 'u32[72,128]{1,0:T(1,128)}', space=vmem, size = 0x9000, scoped, tag = 'internal scratch']
  %s0 = inlined_call_operand.vmem [shape: bf16[16,16], index: 0, kind: input, shape index: {}]
  %s1 = inlined_call_operand.hbm [shape: s8[16,2048], index: 1, kind: input, shape index: {}]
  %s2 = inlined_call_operand.vmem [shape: f32[1,2048], index: 2, kind: input, shape index: {}]
  %s3 = inlined_call_operand.vmem [shape: f32[1,2048], index: 3, kind: input, shape index: {}]
  %s4 = inlined_call_operand.hbm [shape: s8[2048,512], index: 4, kind: input, shape index: {}]
  %s5 = inlined_call_operand.vmem [shape: f32[1,512], index: 5, kind: input, shape index: {}]
  %s6 = inlined_call_operand.vmem [shape: f32[1,512], index: 6, kind: input, shape index: {}]
  %s7 = inlined_call_operand.hbm [shape: s8[512,512], index: 7, kind: input, shape index: {}]
  %s8 = inlined_call_operand.vmem [shape: f32[1,512], index: 8, kind: input, shape index: {}]
  %s9 = inlined_call_operand.hbm [shape: f32[1,512], index: 9, kind: input, shape index: {}]
  %s10 = inlined_call_operand.hbm [shape: s8[512,128], index: 10, kind: input, shape index: {}]
  %s11 = inlined_call_operand.vmem [shape: f32[1,128], index: 11, kind: input, shape index: {}]
  %s12 = inlined_call_operand.vmem [shape: f32[1,128], index: 12, kind: input, shape index: {}]
  %s13 = inlined_call_operand.hbm [shape: f32[16,128], index: 13, kind: output, shape index: {}]
  %s14 = sld [smem:[#allocation0]]
  $region82: #{decoder_forward.1} parent=0
    _
  %s16 = ssub.s32 1, %s14
  %s17 = scalar_select 0, %s16, %s14
  $region1: #{decoder_forward.1} parent=0
    #allocation2 [shape = 'u8[32768]{0}', space=vmem, size = 0x8000, scoped, tag = 'input window, operand 1, single buffered']
    #allocation3 [shape = 's32[1]{0}', space=sflag, size = 0x4, scoped, tag = 'scoped memory for decoder_forward.1']
    #allocation4 [shape = 's32[1]{0}', space=sflag, size = 0x4, scoped, tag = 'scoped memory for decoder_forward.1']
    #allocation5 [shape = 'u8[1048576]{0}', space=vmem, size = 0x100000, scoped, tag = 'input window, operand 4, single buffered']
    #allocation6 [shape = 's32[1]{0}', space=sflag, size = 0x4, scoped, tag = 'scoped memory for decoder_forward.1']
    #allocation7 [shape = 'u8[262144]{0}', space=vmem, size = 0x40000, scoped, tag = 'input window, operand 7, single buffered']
    #allocation8 [shape = 'u8[2048]{0}', space=vmem, size = 0x800, scoped, tag = 'input window, operand 9, single buffered']
    #allocation9 [shape = 's32[1]{0}', space=sflag, size = 0x4, scoped, tag = 'scoped memory for decoder_forward.1']
    #allocation10 [shape = 'u8[65536]{0}', space=vmem, size = 0x10000, scoped, tag = 'input window, operand 10, single buffered']
    #allocation11 [shape = 'u8[8192]{0}', space=vmem, size = 0x2000, scoped, tag = 'output window, operand 0, single buffered']
    %18 = vsyncpa [#allocation3], 0
    %19 = vsyncpa [#allocation6], 0
    %20 = vsyncpa [#allocation9], 0
    %21 = vsyncpa [#allocation4], 0
    // Predicated region
    $region2: #{decoder_forward.1} parent=1 // pred_check
      _
    $region3: #{decoder_forward.1} parent=1 // pred_check_branch
      %23 = sbr.rel (0) target = $region5
    $region4: #{decoder_forward.1} parent=1 // pred_region
      _
    $region5: #{decoder_forward.1} parent=1 // pred_fallthru
      _
    // Predicated region
    $region6: #{decoder_forward.1} parent=1 // pred_check
      _
    $region7: #{decoder_forward.1} parent=1 // pred_check_branch
      %25 = sbr.rel (0) target = $region9
    $region8: #{decoder_forward.1} parent=1 // pred_region
      %27 = vsyncadd [#allocation3], 0
      %s28 = sshll.u32 %s1, 4
      %s29 = int_to_ptr.hbm [resolvable:$true] %s28
      %s30 = sshll.u32 [#allocation2], 4
      %s31 = int_to_ptr.vmem [resolvable:$true] %s30
      %36 = dma.hbm_to_vmem [thread:$0]  %s29, 1024, %s31, [#allocation3], 512, 512, 32
    $region9: #{decoder_forward.1} parent=1 // pred_fallthru
      _
    // Predicated region
    $region10: #{decoder_forward.1} parent=1 // pred_check
      _
    $region11: #{decoder_forward.1} parent=1 // pred_check_branch
      %38 = sbr.rel (0) target = $region13
    $region12: #{decoder_forward.1} parent=1 // pred_region
      _
    $region13: #{decoder_forward.1} parent=1 // pred_fallthru
      _
    // Predicated region
    $region14: #{decoder_forward.1} parent=1 // pred_check
      _
    $region15: #{decoder_forward.1} parent=1 // pred_check_branch
      %40 = sbr.rel (0) target = $region17
    $region16: #{decoder_forward.1} parent=1 // pred_region
      _
    $region17: #{decoder_forward.1} parent=1 // pred_fallthru
      _
    // Predicated region
    $region18: #{decoder_forward.1} parent=1 // pred_check
      _
    $region19: #{decoder_forward.1} parent=1 // pred_check_branch
      %42 = sbr.rel (0) target = $region21
    $region20: #{decoder_forward.1} parent=1 // pred_region
      %44 = vsyncadd [#allocation6], 0
      %s45 = sshll.u32 %s4, 4
      %s46 = int_to_ptr.hbm [resolvable:$true] %s45
      %s47 = sshll.u32 [#allocation5], 4
      %s48 = int_to_ptr.vmem [resolvable:$true] %s47
      %53 = dma.hbm_to_vmem [thread:$0]  %s46, 32768, %s48, [#allocation6], 512, 512, 32
    $region21: #{decoder_forward.1} parent=1 // pred_fallthru
      _
    // Predicated region
    $region22: #{decoder_forward.1} parent=1 // pred_check
      _
    $region23: #{decoder_forward.1} parent=1 // pred_check_branch
      %55 = sbr.rel (0) target = $region25
    $region24: #{decoder_forward.1} parent=1 // pred_region
      _
    $region25: #{decoder_forward.1} parent=1 // pred_fallthru
      _
    // Predicated region
    $region26: #{decoder_forward.1} parent=1 // pred_check
      _
    $region27: #{decoder_forward.1} parent=1 // pred_check_branch
      %57 = sbr.rel (0) target = $region29
    $region28: #{decoder_forward.1} parent=1 // pred_region
      _
    $region29: #{decoder_forward.1} parent=1 // pred_fallthru
      _
    // Predicated region
    $region30: #{decoder_forward.1} parent=1 // pred_check
      _
    $region31: #{decoder_forward.1} parent=1 // pred_check_branch
      %59 = sbr.rel (0) target = $region33
    $region32: #{decoder_forward.1} parent=1 // pred_region
      %61 = vsyncadd [#allocation6], 0
      %s62 = sshll.u32 %s7, 4
      %s63 = int_to_ptr.hbm [resolvable:$true] %s62
      %s64 = sshll.u32 [#allocation7], 4
      %s65 = int_to_ptr.vmem [resolvable:$true] %s64
      %70 = dma.hbm_to_vmem [thread:$0]  %s63, 8192, %s65, [#allocation6], 512, 512, 32
    $region33: #{decoder_forward.1} parent=1 // pred_fallthru
      _
    // Predicated region
    $region34: #{decoder_forward.1} parent=1 // pred_check
      _
    $region35: #{decoder_forward.1} parent=1 // pred_check_branch
      %72 = sbr.rel (0) target = $region37
    $region36: #{decoder_forward.1} parent=1 // pred_region
      _
    $region37: #{decoder_forward.1} parent=1 // pred_fallthru
      _
    // Predicated region
    $region38: #{decoder_forward.1} parent=1 // pred_check
      _
    $region39: #{decoder_forward.1} parent=1 // pred_check_branch
      %74 = sbr.rel (0) target = $region41
    $region40: #{decoder_forward.1} parent=1 // pred_region
      %76 = vsyncadd [#allocation9], 0
      %s78 = sshll.u32 %s9, 4
      %s79 = int_to_ptr.hbm [resolvable:$true] %s78
      %s80 = sshll.u32 [#allocation8], 4
      %s81 = int_to_ptr.vmem [resolvable:$true] %s80
      %83 = dma.hbm_to_vmem [thread:$0]  %s79, 64, %s81, [#allocation9]
    $region41: #{decoder_forward.1} parent=1 // pred_fallthru
      _
    // Predicated region
    $region42: #{decoder_forward.1} parent=1 // pred_check
      _
    $region43: #{decoder_forward.1} parent=1 // pred_check_branch
      %85 = sbr.rel (0) target = $region45
    $region44: #{decoder_forward.1} parent=1 // pred_region
      %87 = vsyncadd [#allocation9], 0
      %s88 = sshll.u32 %s10, 4
      %s89 = int_to_ptr.hbm [resolvable:$true] %s88
      %s90 = sshll.u32 [#allocation10], 4
      %s91 = int_to_ptr.vmem [resolvable:$true] %s90
      %96 = dma.hbm_to_vmem [thread:$0]  %s89, 2048, %s91, [#allocation9], 128, 128, 8
    $region45: #{decoder_forward.1} parent=1 // pred_fallthru
      _
    // Predicated region
    $region46: #{decoder_forward.1} parent=1 // pred_check
      _
    $region47: #{decoder_forward.1} parent=1 // pred_check_branch
      %98 = sbr.rel (0) target = $region49
    $region48: #{decoder_forward.1} parent=1 // pred_region
      _
    $region49: #{decoder_forward.1} parent=1 // pred_fallthru
      _
    // Predicated region
    $region50: #{decoder_forward.1} parent=1 // pred_check
      _
    $region51: #{decoder_forward.1} parent=1 // pred_check_branch
      %100 = sbr.rel (0) target = $region53
    $region52: #{decoder_forward.1} parent=1 // pred_region
      _
    $region53: #{decoder_forward.1} parent=1 // pred_fallthru
      _
    // Predicated region
    $region54: #{decoder_forward.1} parent=1 // pred_check
      _
    $region55: #{decoder_forward.1} parent=1 // pred_check_branch
      %102 = sbr.rel (0) target = $region57
    $region56: #{decoder_forward.1} parent=1 // pred_region
      %104 = dma.done [#allocation3], 1024
    $region57: #{decoder_forward.1} parent=1 // pred_fallthru
      _
    // Predicated region
    $region58: #{decoder_forward.1} parent=1 // pred_check
      _
    $region59: #{decoder_forward.1} parent=1 // pred_check_branch
      %106 = sbr.rel (0) target = $region61
    $region60: #{decoder_forward.1} parent=1 // pred_region
      %108 = dma.done [#allocation6], 32768
    $region61: #{decoder_forward.1} parent=1 // pred_fallthru
      _
    // Predicated region
    $region62: #{decoder_forward.1} parent=1 // pred_check
      _
    $region63: #{decoder_forward.1} parent=1 // pred_check_branch
      %110 = sbr.rel (0) target = $region65
    $region64: #{decoder_forward.1} parent=1 // pred_region
      %112 = dma.done [#allocation6], 8192
    $region65: #{decoder_forward.1} parent=1 // pred_fallthru
      _
    // Predicated region
    $region66: #{decoder_forward.1} parent=1 // pred_check
      _
    $region67: #{decoder_forward.1} parent=1 // pred_check_branch
      %114 = sbr.rel (0) target = $region69
    $region68: #{decoder_forward.1} parent=1 // pred_region
      %116 = dma.done [#allocation9], 64
    $region69: #{decoder_forward.1} parent=1 // pred_fallthru
      _
    // Predicated region
    $region70: #{decoder_forward.1} parent=1 // pred_check
      _
    $region71: #{decoder_forward.1} parent=1 // pred_check_branch
      %118 = sbr.rel (0) target = $region73
    $region72: #{decoder_forward.1} parent=1 // pred_region
      %120 = dma.done [#allocation9], 2048
    $region73: #{decoder_forward.1} parent=1 // pred_fallthru
      _
    %v122 = vld [vmem:[%s0] sm:$0xf]
    %v123 = vld [vmem:[%s0 + $0x4] sm:$0xf]
    %v124 = vld [vmem:[#allocation2] sm:$0xff]
    %v125 = vld [vmem:[#allocation2 + $0x8] sm:$0xff]
    %v126 = vld [vmem:[#allocation2 + $0x10] sm:$0xff]
    %v127 = vld [vmem:[#allocation2 + $0x18] sm:$0xff]
    %v128 = vld [vmem:[#allocation2 + $0x20] sm:$0xff]
    %v129 = vld [vmem:[#allocation2 + $0x28] sm:$0xff]
    %v130 = vld [vmem:[#allocation2 + $0x30] sm:$0xff]
    %v131 = vld [vmem:[#allocation2 + $0x38] sm:$0xff]
    %v132 = vunpack.c.0.s8 %v124
    %v133 = vunpack.c.1.s8 %v124
    %v134 = vunpack.c.2.s8 %v124
    %v135 = vunpack.c.3.s8 %v124
    %v136 = vunpack.c.0.s8 %v125
    %v137 = vunpack.c.1.s8 %v125
    %v138 = vunpack.c.2.s8 %v125
    %v139 = vunpack.c.3.s8 %v125
    %v140 = vunpack.c.0.s8 %v126
    %v141 = vunpack.c.1.s8 %v126
    %v142 = vunpack.c.2.s8 %v126
    %v143 = vunpack.c.3.s8 %v126
    %v144 = vunpack.c.0.s8 %v127
    %v145 = vunpack.c.1.s8 %v127
    %v146 = vunpack.c.2.s8 %v127
    %v147 = vunpack.c.3.s8 %v127
    %v148 = vunpack.c.0.s8 %v128
    %v149 = vunpack.c.1.s8 %v128
    %v150 = vunpack.c.2.s8 %v128
    %v151 = vunpack.c.3.s8 %v128
    %v152 = vunpack.c.0.s8 %v129
    %v153 = vunpack.c.1.s8 %v129
    %v154 = vunpack.c.2.s8 %v129
    %v155 = vunpack.c.3.s8 %v129
    %v156 = vunpack.c.0.s8 %v130
    %v157 = vunpack.c.1.s8 %v130
    %v158 = vunpack.c.2.s8 %v130
    %v159 = vunpack.c.3.s8 %v130
    %v160 = vunpack.c.0.s8 %v131
    %v161 = vunpack.c.1.s8 %v131
    %v162 = vunpack.c.2.s8 %v131
    %v163 = vunpack.c.3.s8 %v131
    %v164 = vcvt.s32.f32 %v132
    %v165 = vcvt.s32.f32 %v133
    %v166 = vcvt.s32.f32 %v134
    %v167 = vcvt.s32.f32 %v135
    %v168 = vcvt.s32.f32 %v136
    %v169 = vcvt.s32.f32 %v137
    %v170 = vcvt.s32.f32 %v138
    %v171 = vcvt.s32.f32 %v139
    %v172 = vcvt.s32.f32 %v140
    %v173 = vcvt.s32.f32 %v141
    %v174 = vcvt.s32.f32 %v142
    %v175 = vcvt.s32.f32 %v143
    %v176 = vcvt.s32.f32 %v144
    %v177 = vcvt.s32.f32 %v145
    %v178 = vcvt.s32.f32 %v146
    %v179 = vcvt.s32.f32 %v147
    %v180 = vcvt.s32.f32 %v148
    %v181 = vcvt.s32.f32 %v149
    %v182 = vcvt.s32.f32 %v150
    %v183 = vcvt.s32.f32 %v151
    %v184 = vcvt.s32.f32 %v152
    %v185 = vcvt.s32.f32 %v153
    %v186 = vcvt.s32.f32 %v154
    %v187 = vcvt.s32.f32 %v155
    %v188 = vcvt.s32.f32 %v156
    %v189 = vcvt.s32.f32 %v157
    %v190 = vcvt.s32.f32 %v158
    %v191 = vcvt.s32.f32 %v159
    %v192 = vcvt.s32.f32 %v160
    %v193 = vcvt.s32.f32 %v161
    %v194 = vcvt.s32.f32 %v162
    %v195 = vcvt.s32.f32 %v163
    %v196 = vpack.c.bf16 %v180, %v164
    %v197 = vpack.c.bf16 %v181, %v165
    %v198 = vpack.c.bf16 %v182, %v166
    %v199 = vpack.c.bf16 %v183, %v167
    %v200 = vpack.c.bf16 %v184, %v168
    %v201 = vpack.c.bf16 %v185, %v169
    %v202 = vpack.c.bf16 %v186, %v170
    %v203 = vpack.c.bf16 %v187, %v171
    %v204 = vpack.c.bf16 %v188, %v172
    %v205 = vpack.c.bf16 %v189, %v173
    %v206 = vpack.c.bf16 %v190, %v174
    %v207 = vpack.c.bf16 %v191, %v175
    %v208 = vpack.c.bf16 %v192, %v176
    %v209 = vpack.c.bf16 %v193, %v177
    %v210 = vpack.c.bf16 %v194, %v178
    %v211 = vpack.c.bf16 %v195, %v179
    %v214 = vunpack.c.l.b16 %v122
    %v215 = vunpack.c.l.b16 %v123
    %v216 = vpack.c.b16 %v215, %v214
    %vm217 = vcmask 130048
    %v219 = vsel %vm217, %v216, 0
    %221 = vmatpush.bf16.msra.mxu0 0
    %222 = vmatpush.bf16.msra.mxu0 0
    %223 = vmatpush.bf16.msra.mxu0 0
    %224 = vmatpush.bf16.msra.mxu0 0
    %225 = vmatpush.bf16.msra.mxu0 0
    %226 = vmatpush.bf16.msra.mxu0 0
    %227 = vmatpush.bf16.msra.mxu0 0
    %228 = vmatpush.bf16.msra.mxu0 %v196
    %229 = vmatmul.bf16.gmra.mxu0 %v219
    %v230 = vpop.f32.mrf.mxu0
    %v231 = vadd.f32 0.0, %v230
    %v232 = vpop.f32.mrf.mxu0
    %v233 = vadd.f32 0.0, %v232
    %234 = vdwg.mxu0
    %235 = vmatpush.bf16.msra.mxu0 0
    %236 = vmatpush.bf16.msra.mxu0 0
    %237 = vmatpush.bf16.msra.mxu0 0
    %238 = vmatpush.bf16.msra.mxu0 0
    %239 = vmatpush.bf16.msra.mxu0 0
    %240 = vmatpush.bf16.msra.mxu0 0
    %241 = vmatpush.bf16.msra.mxu0 0
    %242 = vmatpush.bf16.msra.mxu0 %v197
    %243 = vmatmul.bf16.gmra.mxu0 %v219
    %v244 = vpop.f32.mrf.mxu0
    %v245 = vadd.f32 0.0, %v244
    %v246 = vpop.f32.mrf.mxu0
    %v247 = vadd.f32 0.0, %v246
    %248 = vdwg.mxu0
    %249 = vmatpush.bf16.msra.mxu0 0
    %250 = vmatpush.bf16.msra.mxu0 0
    %251 = vmatpush.bf16.msra.mxu0 0
    %252 = vmatpush.bf16.msra.mxu0 0
    %253 = vmatpush.bf16.msra.mxu0 0
    %254 = vmatpush.bf16.msra.mxu0 0
    %255 = vmatpush.bf16.msra.mxu0 0
    %256 = vmatpush.bf16.msra.mxu0 %v198
    %257 = vmatmul.bf16.gmra.mxu0 %v219
    %v258 = vpop.f32.mrf.mxu0
    %v259 = vadd.f32 0.0, %v258
    %v260 = vpop.f32.mrf.mxu0
    %v261 = vadd.f32 0.0, %v260
    %262 = vdwg.mxu0
    %263 = vmatpush.bf16.msra.mxu0 0
    %264 = vmatpush.bf16.msra.mxu0 0
    %265 = vmatpush.bf16.msra.mxu0 0
    %266 = vmatpush.bf16.msra.mxu0 0
    %267 = vmatpush.bf16.msra.mxu0 0
    %268 = vmatpush.bf16.msra.mxu0 0
    %269 = vmatpush.bf16.msra.mxu0 0
    %270 = vmatpush.bf16.msra.mxu0 %v199
    %271 = vmatmul.bf16.gmra.mxu0 %v219
    %v272 = vpop.f32.mrf.mxu0
    %v273 = vadd.f32 0.0, %v272
    %v274 = vpop.f32.mrf.mxu0
    %v275 = vadd.f32 0.0, %v274
    %276 = vdwg.mxu0
    %277 = vmatpush.bf16.msra.mxu0 0
    %278 = vmatpush.bf16.msra.mxu0 0
    %279 = vmatpush.bf16.msra.mxu0 0
    %280 = vmatpush.bf16.msra.mxu0 0
    %281 = vmatpush.bf16.msra.mxu0 0
    %282 = vmatpush.bf16.msra.mxu0 0
    %283 = vmatpush.bf16.msra.mxu0 0
    %284 = vmatpush.bf16.msra.mxu0 %v200
    %285 = vmatmul.bf16.gmra.mxu0 %v219
    %v286 = vpop.f32.mrf.mxu0
    %v287 = vadd.f32 0.0, %v286
    %v288 = vpop.f32.mrf.mxu0
    %v289 = vadd.f32 0.0, %v288
    %290 = vdwg.mxu0
    %291 = vmatpush.bf16.msra.mxu0 0
    %292 = vmatpush.bf16.msra.mxu0 0
    %293 = vmatpush.bf16.msra.mxu0 0
    %294 = vmatpush.bf16.msra.mxu0 0
    %295 = vmatpush.bf16.msra.mxu0 0
    %296 = vmatpush.bf16.msra.mxu0 0
    %297 = vmatpush.bf16.msra.mxu0 0
    %298 = vmatpush.bf16.msra.mxu0 %v201
    %299 = vmatmul.bf16.gmra.mxu0 %v219
    %v300 = vpop.f32.mrf.mxu0
    %v301 = vadd.f32 0.0, %v300
    %v302 = vpop.f32.mrf.mxu0
    %v303 = vadd.f32 0.0, %v302
    %304 = vdwg.mxu0
    %305 = vmatpush.bf16.msra.mxu0 0
    %306 = vmatpush.bf16.msra.mxu0 0
    %307 = vmatpush.bf16.msra.mxu0 0
    %308 = vmatpush.bf16.msra.mxu0 0
    %309 = vmatpush.bf16.msra.mxu0 0
    %310 = vmatpush.bf16.msra.mxu0 0
    %311 = vmatpush.bf16.msra.mxu0 0
    %312 = vmatpush.bf16.msra.mxu0 %v202
    %313 = vmatmul.bf16.gmra.mxu0 %v219
    %v314 = vpop.f32.mrf.mxu0
    %v315 = vadd.f32 0.0, %v314
    %v316 = vpop.f32.mrf.mxu0
    %v317 = vadd.f32 0.0, %v316
    %318 = vdwg.mxu0
    %319 = vmatpush.bf16.msra.mxu0 0
    %320 = vmatpush.bf16.msra.mxu0 0
    %321 = vmatpush.bf16.msra.mxu0 0
    %322 = vmatpush.bf16.msra.mxu0 0
    %323 = vmatpush.bf16.msra.mxu0 0
    %324 = vmatpush.bf16.msra.mxu0 0
    %325 = vmatpush.bf16.msra.mxu0 0
    %326 = vmatpush.bf16.msra.mxu0 %v203
    %327 = vmatmul.bf16.gmra.mxu0 %v219
    %v328 = vpop.f32.mrf.mxu0
    %v329 = vadd.f32 0.0, %v328
    %v330 = vpop.f32.mrf.mxu0
    %v331 = vadd.f32 0.0, %v330
    %332 = vdwg.mxu0
    %333 = vmatpush.bf16.msra.mxu0 0
    %334 = vmatpush.bf16.msra.mxu0 0
    %335 = vmatpush.bf16.msra.mxu0 0
    %336 = vmatpush.bf16.msra.mxu0 0
    %337 = vmatpush.bf16.msra.mxu0 0
    %338 = vmatpush.bf16.msra.mxu0 0
    %339 = vmatpush.bf16.msra.mxu0 0
    %340 = vmatpush.bf16.msra.mxu0 %v204
    %341 = vmatmul.bf16.gmra.mxu0 %v219
    %v342 = vpop.f32.mrf.mxu0
    %v343 = vadd.f32 0.0, %v342
    %v344 = vpop.f32.mrf.mxu0
    %v345 = vadd.f32 0.0, %v344
    %346 = vdwg.mxu0
    %347 = vmatpush.bf16.msra.mxu0 0
    %348 = vmatpush.bf16.msra.mxu0 0
    %349 = vmatpush.bf16.msra.mxu0 0
    %350 = vmatpush.bf16.msra.mxu0 0
    %351 = vmatpush.bf16.msra.mxu0 0
    %352 = vmatpush.bf16.msra.mxu0 0
    %353 = vmatpush.bf16.msra.mxu0 0
    %354 = vmatpush.bf16.msra.mxu0 %v205
    %355 = vmatmul.bf16.gmra.mxu0 %v219
    %v356 = vpop.f32.mrf.mxu0
    %v357 = vadd.f32 0.0, %v356
    %v358 = vpop.f32.mrf.mxu0
    %v359 = vadd.f32 0.0, %v358
    %360 = vdwg.mxu0
    %361 = vmatpush.bf16.msra.mxu0 0
    %362 = vmatpush.bf16.msra.mxu0 0
    %363 = vmatpush.bf16.msra.mxu0 0
    %364 = vmatpush.bf16.msra.mxu0 0
    %365 = vmatpush.bf16.msra.mxu0 0
    %366 = vmatpush.bf16.msra.mxu0 0
    %367 = vmatpush.bf16.msra.mxu0 0
    %368 = vmatpush.bf16.msra.mxu0 %v206
    %369 = vmatmul.bf16.gmra.mxu0 %v219
    %v370 = vpop.f32.mrf.mxu0
    %v371 = vadd.f32 0.0, %v370
    %v372 = vpop.f32.mrf.mxu0
    %v373 = vadd.f32 0.0, %v372
    %374 = vdwg.mxu0
    %375 = vmatpush.bf16.msra.mxu0 0
    %376 = vmatpush.bf16.msra.mxu0 0
    %377 = vmatpush.bf16.msra.mxu0 0
    %378 = vmatpush.bf16.msra.mxu0 0
    %379 = vmatpush.bf16.msra.mxu0 0
    %380 = vmatpush.bf16.msra.mxu0 0
    %381 = vmatpush.bf16.msra.mxu0 0
    %382 = vmatpush.bf16.msra.mxu0 %v207
    %383 = vmatmul.bf16.gmra.mxu0 %v219
    %v384 = vpop.f32.mrf.mxu0
    %v385 = vadd.f32 0.0, %v384
    %v386 = vpop.f32.mrf.mxu0
    %v387 = vadd.f32 0.0, %v386
    %388 = vdwg.mxu0
    %389 = vmatpush.bf16.msra.mxu0 0
    %390 = vmatpush.bf16.msra.mxu0 0
    %391 = vmatpush.bf16.msra.mxu0 0
    %392 = vmatpush.bf16.msra.mxu0 0
    %393 = vmatpush.bf16.msra.mxu0 0
    %394 = vmatpush.bf16.msra.mxu0 0
    %395 = vmatpush.bf16.msra.mxu0 0
    %396 = vmatpush.bf16.msra.mxu0 %v208
    %397 = vmatmul.bf16.gmra.mxu0 %v219
    %v398 = vpop.f32.mrf.mxu0
    %v399 = vadd.f32 0.0, %v398
    %v400 = vpop.f32.mrf.mxu0
    %v401 = vadd.f32 0.0, %v400
    %402 = vdwg.mxu0
    %403 = vmatpush.bf16.msra.mxu0 0
    %404 = vmatpush.bf16.msra.mxu0 0
    %405 = vmatpush.bf16.msra.mxu0 0
    %406 = vmatpush.bf16.msra.mxu0 0
    %407 = vmatpush.bf16.msra.mxu0 0
    %408 = vmatpush.bf16.msra.mxu0 0
    %409 = vmatpush.bf16.msra.mxu0 0
    %410 = vmatpush.bf16.msra.mxu0 %v209
    %411 = vmatmul.bf16.gmra.mxu0 %v219
    %v412 = vpop.f32.mrf.mxu0
    %v413 = vadd.f32 0.0, %v412
    %v414 = vpop.f32.mrf.mxu0
    %v415 = vadd.f32 0.0, %v414
    %416 = vdwg.mxu0
    %417 = vmatpush.bf16.msra.mxu0 0
    %418 = vmatpush.bf16.msra.mxu0 0
    %419 = vmatpush.bf16.msra.mxu0 0
    %420 = vmatpush.bf16.msra.mxu0 0
    %421 = vmatpush.bf16.msra.mxu0 0
    %422 = vmatpush.bf16.msra.mxu0 0
    %423 = vmatpush.bf16.msra.mxu0 0
    %424 = vmatpush.bf16.msra.mxu0 %v210
    %425 = vmatmul.bf16.gmra.mxu0 %v219
    %v426 = vpop.f32.mrf.mxu0
    %v427 = vadd.f32 0.0, %v426
    %v428 = vpop.f32.mrf.mxu0
    %v429 = vadd.f32 0.0, %v428
    %430 = vdwg.mxu0
    %431 = vmatpush.bf16.msra.mxu0 0
    %432 = vmatpush.bf16.msra.mxu0 0
    %433 = vmatpush.bf16.msra.mxu0 0
    %434 = vmatpush.bf16.msra.mxu0 0
    %435 = vmatpush.bf16.msra.mxu0 0
    %436 = vmatpush.bf16.msra.mxu0 0
    %437 = vmatpush.bf16.msra.mxu0 0
    %438 = vmatpush.bf16.msra.mxu0 %v211
    %439 = vmatmul.bf16.gmra.mxu0 %v219
    %v440 = vpop.f32.mrf.mxu0
    %v441 = vadd.f32 0.0, %v440
    %v442 = vpop.f32.mrf.mxu0
    %v443 = vadd.f32 0.0, %v442
    %444 = vdwg.mxu0
    %v445 = vld [vmem:[%s2] sm:$0xff]
    %v446 = vld [vmem:[%s2 + $0x8] sm:$0xff]
    %v449 = vperm.slane %v445, 0
    %v450 = vperm.slane %v445, 1
    %v451 = vperm.slane %v445, 2
    %v452 = vperm.slane %v445, 3
    %v453 = vperm.slane %v445, 4
    %v454 = vperm.slane %v445, 5
    %v455 = vperm.slane %v445, 6
    %v456 = vperm.slane %v445, 7
    %v457 = vperm.slane %v446, 0
    %v458 = vperm.slane %v446, 1
    %v459 = vperm.slane %v446, 2
    %v460 = vperm.slane %v446, 3
    %v461 = vperm.slane %v446, 4
    %v462 = vperm.slane %v446, 5
    %v463 = vperm.slane %v446, 6
    %v464 = vperm.slane %v446, 7
    %v481 = vmul.f32 %v231, %v449
    %v482 = vmul.f32 %v245, %v450
    %v483 = vmul.f32 %v259, %v451
    %v484 = vmul.f32 %v273, %v452
    %v485 = vmul.f32 %v287, %v453
    %v486 = vmul.f32 %v301, %v454
    %v487 = vmul.f32 %v315, %v455
    %v488 = vmul.f32 %v329, %v456
    %v489 = vmul.f32 %v343, %v457
    %v490 = vmul.f32 %v357, %v458
    %v491 = vmul.f32 %v371, %v459
    %v492 = vmul.f32 %v385, %v460
    %v493 = vmul.f32 %v399, %v461
    %v494 = vmul.f32 %v413, %v462
    %v495 = vmul.f32 %v427, %v463
    %v496 = vmul.f32 %v441, %v464
    %v497 = vmul.f32 %v233, %v449
    %v498 = vmul.f32 %v247, %v450
    %v499 = vmul.f32 %v261, %v451
    %v500 = vmul.f32 %v275, %v452
    %v501 = vmul.f32 %v289, %v453
    %v502 = vmul.f32 %v303, %v454
    %v503 = vmul.f32 %v317, %v455
    %v504 = vmul.f32 %v331, %v456
    %v505 = vmul.f32 %v345, %v457
    %v506 = vmul.f32 %v359, %v458
    %v507 = vmul.f32 %v373, %v459
    %v508 = vmul.f32 %v387, %v460
    %v509 = vmul.f32 %v401, %v461
    %v510 = vmul.f32 %v415, %v462
    %v511 = vmul.f32 %v429, %v463
    %v512 = vmul.f32 %v443, %v464
    %v513 = vld [vmem:[%s3] sm:$0xff]
    %v514 = vld [vmem:[%s3 + $0x8] sm:$0xff]
    %v517 = vperm.slane %v513, 0
    %v518 = vperm.slane %v513, 1
    %v519 = vperm.slane %v513, 2
    %v520 = vperm.slane %v513, 3
    %v521 = vperm.slane %v513, 4
    %v522 = vperm.slane %v513, 5
    %v523 = vperm.slane %v513, 6
    %v524 = vperm.slane %v513, 7
    %v525 = vperm.slane %v514, 0
    %v526 = vperm.slane %v514, 1
    %v527 = vperm.slane %v514, 2
    %v528 = vperm.slane %v514, 3
    %v529 = vperm.slane %v514, 4
    %v530 = vperm.slane %v514, 5
    %v531 = vperm.slane %v514, 6
    %v532 = vperm.slane %v514, 7
    %v549 = vadd.f32 %v481, %v517
    %v550 = vadd.f32 %v482, %v518
    %v551 = vadd.f32 %v483, %v519
    %v552 = vadd.f32 %v484, %v520
    %v553 = vadd.f32 %v485, %v521
    %v554 = vadd.f32 %v486, %v522
    %v555 = vadd.f32 %v487, %v523
    %v556 = vadd.f32 %v488, %v524
    %v557 = vadd.f32 %v489, %v525
    %v558 = vadd.f32 %v490, %v526
    %v559 = vadd.f32 %v491, %v527
    %v560 = vadd.f32 %v492, %v528
    %v561 = vadd.f32 %v493, %v529
    %v562 = vadd.f32 %v494, %v530
    %v563 = vadd.f32 %v495, %v531
    %v564 = vadd.f32 %v496, %v532
    %v565 = vadd.f32 %v497, %v517
    %v566 = vadd.f32 %v498, %v518
    %v567 = vadd.f32 %v499, %v519
    %v568 = vadd.f32 %v500, %v520
    %v569 = vadd.f32 %v501, %v521
    %v570 = vadd.f32 %v502, %v522
    %v571 = vadd.f32 %v503, %v523
    %v572 = vadd.f32 %v504, %v524
    %v573 = vadd.f32 %v505, %v525
    %v574 = vadd.f32 %v506, %v526
    %v575 = vadd.f32 %v507, %v527
    %v576 = vadd.f32 %v508, %v528
    %v577 = vadd.f32 %v509, %v529
    %v578 = vadd.f32 %v510, %v530
    %v579 = vadd.f32 %v511, %v531
    %v580 = vadd.f32 %v512, %v532
    %v581 = vmax.f32 %v549, 0.0
    %v582 = vmax.f32 %v550, 0.0
    %v583 = vmax.f32 %v551, 0.0
    %v584 = vmax.f32 %v552, 0.0
    %v585 = vmax.f32 %v553, 0.0
    %v586 = vmax.f32 %v554, 0.0
    %v587 = vmax.f32 %v555, 0.0
    %v588 = vmax.f32 %v556, 0.0
    %v589 = vmax.f32 %v557, 0.0
    %v590 = vmax.f32 %v558, 0.0
    %v591 = vmax.f32 %v559, 0.0
    %v592 = vmax.f32 %v560, 0.0
    %v593 = vmax.f32 %v561, 0.0
    %v594 = vmax.f32 %v562, 0.0
    %v595 = vmax.f32 %v563, 0.0
    %v596 = vmax.f32 %v564, 0.0
    %v597 = vmax.f32 %v565, 0.0
    %v598 = vmax.f32 %v566, 0.0
    %v599 = vmax.f32 %v567, 0.0
    %v600 = vmax.f32 %v568, 0.0
    %v601 = vmax.f32 %v569, 0.0
    %v602 = vmax.f32 %v570, 0.0
    %v603 = vmax.f32 %v571, 0.0
    %v604 = vmax.f32 %v572, 0.0
    %v605 = vmax.f32 %v573, 0.0
    %v606 = vmax.f32 %v574, 0.0
    %v607 = vmax.f32 %v575, 0.0
    %v608 = vmax.f32 %v576, 0.0
    %v609 = vmax.f32 %v577, 0.0
    %v610 = vmax.f32 %v578, 0.0
    %v611 = vmax.f32 %v579, 0.0
    %v612 = vmax.f32 %v580, 0.0
    %v613 = vpack.c.bf16 %v597, %v581
    %v614 = vpack.c.bf16 %v598, %v582
    %v615 = vpack.c.bf16 %v599, %v583
    %v616 = vpack.c.bf16 %v600, %v584
    %v617 = vpack.c.bf16 %v601, %v585
    %v618 = vpack.c.bf16 %v602, %v586
    %v619 = vpack.c.bf16 %v603, %v587
    %v620 = vpack.c.bf16 %v604, %v588
    %v621 = vpack.c.bf16 %v605, %v589
    %v622 = vpack.c.bf16 %v606, %v590
    %v623 = vpack.c.bf16 %v607, %v591
    %v624 = vpack.c.bf16 %v608, %v592
    %v625 = vpack.c.bf16 %v609, %v593
    %v626 = vpack.c.bf16 %v610, %v594
    %v627 = vpack.c.bf16 %v611, %v595
    %v628 = vpack.c.bf16 %v612, %v596
    %v629 = vld [vmem:[#allocation5] sm:$0xff]
    %v630 = vld [vmem:[#allocation5 + $0x8] sm:$0xff]
    %v631 = vld [vmem:[#allocation5 + $0x10] sm:$0xff]
    %v632 = vld [vmem:[#allocation5 + $0x18] sm:$0xff]
    %v633 = vld [vmem:[#allocation5 + $0x20] sm:$0xff]
    %v634 = vld [vmem:[#allocation5 + $0x28] sm:$0xff]
    %v635 = vld [vmem:[#allocation5 + $0x30] sm:$0xff]
    %v636 = vld [vmem:[#allocation5 + $0x38] sm:$0xff]
    %v637 = vld [vmem:[#allocation5 + $0x40] sm:$0xff]
    %v638 = vld [vmem:[#allocation5 + $0x48] sm:$0xff]
    %v639 = vld [vmem:[#allocation5 + $0x50] sm:$0xff]
    %v640 = vld [vmem:[#allocation5 + $0x58] sm:$0xff]
    %v641 = vld [vmem:[#allocation5 + $0x60] sm:$0xff]
    %v642 = vld [vmem:[#allocation5 + $0x68] sm:$0xff]
    %v643 = vld [vmem:[#allocation5 + $0x70] sm:$0xff]
    %v644 = vld [vmem:[#allocation5 + $0x78] sm:$0xff]
    %v645 = vld [vmem:[#allocation5 + $0x80] sm:$0xff]
    %v646 = vld [vmem:[#allocation5 + $0x88] sm:$0xff]
    %v647 = vld [vmem:[#allocation5 + $0x90] sm:$0xff]
    %v648 = vld [vmem:[#allocation5 + $0x98] sm:$0xff]
    %v649 = vld [vmem:[#allocation5 + $0xa0] sm:$0xff]
    %v650 = vld [vmem:[#allocation5 + $0xa8] sm:$0xff]
    %v651 = vld [vmem:[#allocation5 + $0xb0] sm:$0xff]
    %v652 = vld [vmem:[#allocation5 + $0xb8] sm:$0xff]
    %v653 = vld [vmem:[#allocation5 + $0xc0] sm:$0xff]
    %v654 = vld [vmem:[#allocation5 + $0xc8] sm:$0xff]
    %v655 = vld [vmem:[#allocation5 + $0xd0] sm:$0xff]
    %v656 = vld [vmem:[#allocation5 + $0xd8] sm:$0xff]
    %v657 = vld [vmem:[#allocation5 + $0xe0] sm:$0xff]
    %v658 = vld [vmem:[#allocation5 + $0xe8] sm:$0xff]
    %v659 = vld [vmem:[#allocation5 + $0xf0] sm:$0xff]
    %v660 = vld [vmem:[#allocation5 + $0xf8] sm:$0xff]
    %v661 = vld [vmem:[#allocation5 + $0x100] sm:$0xff]
    %v662 = vld [vmem:[#allocation5 + $0x108] sm:$0xff]
    %v663 = vld [vmem:[#allocation5 + $0x110] sm:$0xff]
    %v664 = vld [vmem:[#allocation5 + $0x118] sm:$0xff]
    %v665 = vld [vmem:[#allocation5 + $0x120] sm:$0xff]
    %v666 = vld [vmem:[#allocation5 + $0x128] sm:$0xff]
    %v667 = vld [vmem:[#allocation5 + $0x130] sm:$0xff]
    %v668 = vld [vmem:[#allocation5 + $0x138] sm:$0xff]
    %v669 = vld [vmem:[#allocation5 + $0x140] sm:$0xff]
    %v670 = vld [vmem:[#allocation5 + $0x148] sm:$0xff]
    %v671 = vld [vmem:[#allocation5 + $0x150] sm:$0xff]
    %v672 = vld [vmem:[#allocation5 + $0x158] sm:$0xff]
    %v673 = vld [vmem:[#allocation5 + $0x160] sm:$0xff]
    %v674 = vld [vmem:[#allocation5 + $0x168] sm:$0xff]
    %v675 = vld [vmem:[#allocation5 + $0x170] sm:$0xff]
    %v676 = vld [vmem:[#allocation5 + $0x178] sm:$0xff]
    %v677 = vld [vmem:[#allocation5 + $0x180] sm:$0xff]
    %v678 = vld [vmem:[#allocation5 + $0x188] sm:$0xff]
    %v679 = vld [vmem:[#allocation5 + $0x190] sm:$0xff]
    %v680 = vld [vmem:[#allocation5 + $0x198] sm:$0xff]
    %v681 = vld [vmem:[#allocation5 + $0x1a0] sm:$0xff]
    %v682 = vld [vmem:[#allocation5 + $0x1a8] sm:$0xff]
    %v683 = vld [vmem:[#allocation5 + $0x1b0] sm:$0xff]
    %v684 = vld [vmem:[#allocation5 + $0x1b8] sm:$0xff]
    %v685 = vld [vmem:[#allocation5 + $0x1c0] sm:$0xff]
    %v686 = vld [vmem:[#allocation5 + $0x1c8] sm:$0xff]
    %v687 = vld [vmem:[#allocation5 + $0x1d0] sm:$0xff]
    %v688 = vld [vmem:[#allocation5 + $0x1d8] sm:$0xff]
    %v689 = vld [vmem:[#allocation5 + $0x1e0] sm:$0xff]
    %v690 = vld [vmem:[#allocation5 + $0x1e8] sm:$0xff]
    %v691 = vld [vmem:[#allocation5 + $0x1f0] sm:$0xff]
    %v692 = vld [vmem:[#allocation5 + $0x1f8] sm:$0xff]
    %v693 = vld [vmem:[#allocation5 + $0x200] sm:$0xff]
    %v694 = vld [vmem:[#allocation5 + $0x208] sm:$0xff]
    %v695 = vld [vmem:[#allocation5 + $0x210] sm:$0xff]
    %v696 = vld [vmem:[#allocation5 + $0x218] sm:$0xff]
    %v697 = vld [vmem:[#allocation5 + $0x220] sm:$0xff]
    %v698 = vld [vmem:[#allocation5 + $0x228] sm:$0xff]
    %v699 = vld [vmem:[#allocation5 + $0x230] sm:$0xff]
    %v700 = vld [vmem:[#allocation5 + $0x238] sm:$0xff]
    %v701 = vld [vmem:[#allocation5 + $0x240] sm:$0xff]
    %v702 = vld [vmem:[#allocation5 + $0x248] sm:$0xff]
    %v703 = vld [vmem:[#allocation5 + $0x250] sm:$0xff]
    %v704 = vld [vmem:[#allocation5 + $0x258] sm:$0xff]
    %v705 = vld [vmem:[#allocation5 + $0x260] sm:$0xff]
    %v706 = vld [vmem:[#allocation5 + $0x268] sm:$0xff]
    %v707 = vld [vmem:[#allocation5 + $0x270] sm:$0xff]
    %v708 = vld [vmem:[#allocation5 + $0x278] sm:$0xff]
    %v709 = vld [vmem:[#allocation5 + $0x280] sm:$0xff]
    %v710 = vld [vmem:[#allocation5 + $0x288] sm:$0xff]
    %v711 = vld [vmem:[#allocation5 + $0x290] sm:$0xff]
    %v712 = vld [vmem:[#allocation5 + $0x298] sm:$0xff]
    %v713 = vld [vmem:[#allocation5 + $0x2a0] sm:$0xff]
    %v714 = vld [vmem:[#allocation5 + $0x2a8] sm:$0xff]
    %v715 = vld [vmem:[#allocation5 + $0x2b0] sm:$0xff]
    %v716 = vld [vmem:[#allocation5 + $0x2b8] sm:$0xff]
    %v717 = vld [vmem:[#allocation5 + $0x2c0] sm:$0xff]
    %v718 = vld [vmem:[#allocation5 + $0x2c8] sm:$0xff]
    %v719 = vld [vmem:[#allocation5 + $0x2d0] sm:$0xff]
    %v720 = vld [vmem:[#allocation5 + $0x2d8] sm:$0xff]
    %v721 = vld [vmem:[#allocation5 + $0x2e0] sm:$0xff]
    %v722 = vld [vmem:[#allocation5 + $0x2e8] sm:$0xff]
    %v723 = vld [vmem:[#allocation5 + $0x2f0] sm:$0xff]
    %v724 = vld [vmem:[#allocation5 + $0x2f8] sm:$0xff]
    %v725 = vld [vmem:[#allocation5 + $0x300] sm:$0xff]
    %v726 = vld [vmem:[#allocation5 + $0x308] sm:$0xff]
    %v727 = vld [vmem:[#allocation5 + $0x310] sm:$0xff]
    %v728 = vld [vmem:[#allocation5 + $0x318] sm:$0xff]
    %v729 = vld [vmem:[#allocation5 + $0x320] sm:$0xff]
    %v730 = vld [vmem:[#allocation5 + $0x328] sm:$0xff]
    %v731 = vld [vmem:[#allocation5 + $0x330] sm:$0xff]
    %v732 = vld [vmem:[#allocation5 + $0x338] sm:$0xff]
    %v733 = vld [vmem:[#allocation5 + $0x340] sm:$0xff]
    %v734 = vld [vmem:[#allocation5 + $0x348] sm:$0xff]
    %v735 = vld [vmem:[#allocation5 + $0x350] sm:$0xff]
    %v736 = vld [vmem:[#allocation5 + $0x358] sm:$0xff]
    %v737 = vld [vmem:[#allocation5 + $0x360] sm:$0xff]
    %v738 = vld [vmem:[#allocation5 + $0x368] sm:$0xff]
    %v739 = vld [vmem:[#allocation5 + $0x370] sm:$0xff]
    %v740 = vld [vmem:[#allocation5 + $0x378] sm:$0xff]
    %v741 = vld [vmem:[#allocation5 + $0x380] sm:$0xff]
    %v742 = vld [vmem:[#allocation5 + $0x388] sm:$0xff]
    %v743 = vld [vmem:[#allocation5 + $0x390] sm:$0xff]
    %v744 = vld [vmem:[#allocation5 + $0x398] sm:$0xff]
    %v745 = vld [vmem:[#allocation5 + $0x3a0] sm:$0xff]
    %v746 = vld [vmem:[#allocation5 + $0x3a8] sm:$0xff]
    %v747 = vld [vmem:[#allocation5 + $0x3b0] sm:$0xff]
    %v748 = vld [vmem:[#allocation5 + $0x3b8] sm:$0xff]
    %v749 = vld [vmem:[#allocation5 + $0x3c0] sm:$0xff]
    %v750 = vld [vmem:[#allocation5 + $0x3c8] sm:$0xff]
    %v751 = vld [vmem:[#allocation5 + $0x3d0] sm:$0xff]
    %v752 = vld [vmem:[#allocation5 + $0x3d8] sm:$0xff]
    %v753 = vld [vmem:[#allocation5 + $0x3e0] sm:$0xff]
    %v754 = vld [vmem:[#allocation5 + $0x3e8] sm:$0xff]
    %v755 = vld [vmem:[#allocation5 + $0x3f0] sm:$0xff]
    %v756 = vld [vmem:[#allocation5 + $0x3f8] sm:$0xff]
    %v757 = vld [vmem:[#allocation5 + $0x400] sm:$0xff]
    %v758 = vld [vmem:[#allocation5 + $0x408] sm:$0xff]
    %v759 = vld [vmem:[#allocation5 + $0x410] sm:$0xff]
    %v760 = vld [vmem:[#allocation5 + $0x418] sm:$0xff]
    %v761 = vld [vmem:[#allocation5 + $0x420] sm:$0xff]
    %v762 = vld [vmem:[#allocation5 + $0x428] sm:$0xff]
    %v763 = vld [vmem:[#allocation5 + $0x430] sm:$0xff]
    %v764 = vld [vmem:[#allocation5 + $0x438] sm:$0xff]
    %v765 = vld [vmem:[#allocation5 + $0x440] sm:$0xff]
    %v766 = vld [vmem:[#allocation5 + $0x448] sm:$0xff]
    %v767 = vld [vmem:[#allocation5 + $0x450] sm:$0xff]
    %v768 = vld [vmem:[#allocation5 + $0x458] sm:$0xff]
    %v769 = vld [vmem:[#allocation5 + $0x460] sm:$0xff]
    %v770 = vld [vmem:[#allocation5 + $0x468] sm:$0xff]
    %v771 = vld [vmem:[#allocation5 + $0x470] sm:$0xff]
    %v772 = vld [vmem:[#allocation5 + $0x478] sm:$0xff]
    %v773 = vld [vmem:[#allocation5 + $0x480] sm:$0xff]
    %v774 = vld [vmem:[#allocation5 + $0x488] sm:$0xff]
    %v775 = vld [vmem:[#allocation5 + $0x490] sm:$0xff]
    %v776 = vld [vmem:[#allocation5 + $0x498] sm:$0xff]
    %v777 = vld [vmem:[#allocation5 + $0x4a0] sm:$0xff]
    %v778 = vld [vmem:[#allocation5 + $0x4a8] sm:$0xff]
    %v779 = vld [vmem:[#allocation5 + $0x4b0] sm:$0xff]
    %v780 = vld [vmem:[#allocation5 + $0x4b8] sm:$0xff]
    %v781 = vld [vmem:[#allocation5 + $0x4c0] sm:$0xff]
    %v782 = vld [vmem:[#allocation5 + $0x4c8] sm:$0xff]
    %v783 = vld [vmem:[#allocation5 + $0x4d0] sm:$0xff]
    %v784 = vld [vmem:[#allocation5 + $0x4d8] sm:$0xff]
    %v785 = vld [vmem:[#allocation5 + $0x4e0] sm:$0xff]
    %v786 = vld [vmem:[#allocation5 + $0x4e8] sm:$0xff]
    %v787 = vld [vmem:[#allocation5 + $0x4f0] sm:$0xff]
    %v788 = vld [vmem:[#allocation5 + $0x4f8] sm:$0xff]
    %v789 = vld [vmem:[#allocation5 + $0x500] sm:$0xff]
    %v790 = vld [vmem:[#allocation5 + $0x508] sm:$0xff]
    %v791 = vld [vmem:[#allocation5 + $0x510] sm:$0xff]
    %v792 = vld [vmem:[#allocation5 + $0x518] sm:$0xff]
    %v793 = vld [vmem:[#allocation5 + $0x520] sm:$0xff]
    %v794 = vld [vmem:[#allocation5 + $0x528] sm:$0xff]
    %v795 = vld [vmem:[#allocation5 + $0x530] sm:$0xff]
    %v796 = vld [vmem:[#allocation5 + $0x538] sm:$0xff]
    %v797 = vld [vmem:[#allocation5 + $0x540] sm:$0xff]
    %v798 = vld [vmem:[#allocation5 + $0x548] sm:$0xff]
    %v799 = vld [vmem:[#allocation5 + $0x550] sm:$0xff]
    %v800 = vld [vmem:[#allocation5 + $0x558] sm:$0xff]
    %v801 = vld [vmem:[#allocation5 + $0x560] sm:$0xff]
    %v802 = vld [vmem:[#allocation5 + $0x568] sm:$0xff]
    %v803 = vld [vmem:[#allocation5 + $0x570] sm:$0xff]
    %v804 = vld [vmem:[#allocation5 + $0x578] sm:$0xff]
    %v805 = vld [vmem:[#allocation5 + $0x580] sm:$0xff]
    %v806 = vld [vmem:[#allocation5 + $0x588] sm:$0xff]
    %v807 = vld [vmem:[#allocation5 + $0x590] sm:$0xff]
    %v808 = vld [vmem:[#allocation5 + $0x598] sm:$0xff]
    %v809 = vld [vmem:[#allocation5 + $0x5a0] sm:$0xff]
    %v810 = vld [vmem:[#allocation5 + $0x5a8] sm:$0xff]
    %v811 = vld [vmem:[#allocation5 + $0x5b0] sm:$0xff]
    %v812 = vld [vmem:[#allocation5 + $0x5b8] sm:$0xff]
    %v813 = vld [vmem:[#allocation5 + $0x5c0] sm:$0xff]
    %v814 = vld [vmem:[#allocation5 + $0x5c8] sm:$0xff]
    %v815 = vld [vmem:[#allocation5 + $0x5d0] sm:$0xff]
    %v816 = vld [vmem:[#allocation5 + $0x5d8] sm:$0xff]
    %v817 = vld [vmem:[#allocation5 + $0x5e0] sm:$0xff]
    %v818 = vld [vmem:[#allocation5 + $0x5e8] sm:$0xff]
    %v819 = vld [vmem:[#allocation5 + $0x5f0] sm:$0xff]
    %v820 = vld [vmem:[#allocation5 + $0x5f8] sm:$0xff]
    %v821 = vld [vmem:[#allocation5 + $0x600] sm:$0xff]
    %v822 = vld [vmem:[#allocation5 + $0x608] sm:$0xff]
    %v823 = vld [vmem:[#allocation5 + $0x610] sm:$0xff]
    %v824 = vld [vmem:[#allocation5 + $0x618] sm:$0xff]
    %v825 = vld [vmem:[#allocation5 + $0x620] sm:$0xff]
    %v826 = vld [vmem:[#allocation5 + $0x628] sm:$0xff]
    %v827 = vld [vmem:[#allocation5 + $0x630] sm:$0xff]
    %v828 = vld [vmem:[#allocation5 + $0x638] sm:$0xff]
    %v829 = vld [vmem:[#allocation5 + $0x640] sm:$0xff]
    %v830 = vld [vmem:[#allocation5 + $0x648] sm:$0xff]
    %v831 = vld [vmem:[#allocation5 + $0x650] sm:$0xff]
    %v832 = vld [vmem:[#allocation5 + $0x658] sm:$0xff]
    %v833 = vld [vmem:[#allocation5 + $0x660] sm:$0xff]
    %v834 = vld [vmem:[#allocation5 + $0x668] sm:$0xff]
    %v835 = vld [vmem:[#allocation5 + $0x670] sm:$0xff]
    %v836 = vld [vmem:[#allocation5 + $0x678] sm:$0xff]
    %v837 = vld [vmem:[#allocation5 + $0x680] sm:$0xff]
    %v838 = vld [vmem:[#allocation5 + $0x688] sm:$0xff]
    %v839 = vld [vmem:[#allocation5 + $0x690] sm:$0xff]
    %v840 = vld [vmem:[#allocation5 + $0x698] sm:$0xff]
    %v841 = vld [vmem:[#allocation5 + $0x6a0] sm:$0xff]
    %v842 = vld [vmem:[#allocation5 + $0x6a8] sm:$0xff]
    %v843 = vld [vmem:[#allocation5 + $0x6b0] sm:$0xff]
    %v844 = vld [vmem:[#allocation5 + $0x6b8] sm:$0xff]
    %v845 = vld [vmem:[#allocation5 + $0x6c0] sm:$0xff]
    %v846 = vld [vmem:[#allocation5 + $0x6c8] sm:$0xff]
    %v847 = vld [vmem:[#allocation5 + $0x6d0] sm:$0xff]
    %v848 = vld [vmem:[#allocation5 + $0x6d8] sm:$0xff]
    %v849 = vld [vmem:[#allocation5 + $0x6e0] sm:$0xff]
    %v850 = vld [vmem:[#allocation5 + $0x6e8] sm:$0xff]
    %v851 = vld [vmem:[#allocation5 + $0x6f0] sm:$0xff]
    %v852 = vld [vmem:[#allocation5 + $0x6f8] sm:$0xff]
    %v853 = vld [vmem:[#allocation5 + $0x700] sm:$0xff]
    %v854 = vld [vmem:[#allocation5 + $0x708] sm:$0xff]
    %v855 = vld [vmem:[#allocation5 + $0x710] sm:$0xff]
    %v856 = vld [vmem:[#allocation5 + $0x718] sm:$0xff]
    %v857 = vld [vmem:[#allocation5 + $0x720] sm:$0xff]
    %v858 = vld [vmem:[#allocation5 + $0x728] sm:$0xff]
    %v859 = vld [vmem:[#allocation5 + $0x730] sm:$0xff]
    %v860 = vld [vmem:[#allocation5 + $0x738] sm:$0xff]
    %v861 = vld [vmem:[#allocation5 + $0x740] sm:$0xff]
    %v862 = vld [vmem:[#allocation5 + $0x748] sm:$0xff]
    %v863 = vld [vmem:[#allocation5 + $0x750] sm:$0xff]
    %v864 = vld [vmem:[#allocation5 + $0x758] sm:$0xff]
    %v865 = vld [vmem:[#allocation5 + $0x760] sm:$0xff]
    %v866 = vld [vmem:[#allocation5 + $0x768] sm:$0xff]
    %v867 = vld [vmem:[#allocation5 + $0x770] sm:$0xff]
    %v868 = vld [vmem:[#allocation5 + $0x778] sm:$0xff]
    %v869 = vld [vmem:[#allocation5 + $0x780] sm:$0xff]
    %v870 = vld [vmem:[#allocation5 + $0x788] sm:$0xff]
    %v871 = vld [vmem:[#allocation5 + $0x790] sm:$0xff]
    %v872 = vld [vmem:[#allocation5 + $0x798] sm:$0xff]
    %v873 = vld [vmem:[#allocation5 + $0x7a0] sm:$0xff]
    %v874 = vld [vmem:[#allocation5 + $0x7a8] sm:$0xff]
    %v875 = vld [vmem:[#allocation5 + $0x7b0] sm:$0xff]
    %v876 = vld [vmem:[#allocation5 + $0x7b8] sm:$0xff]
    %v877 = vld [vmem:[#allocation5 + $0x7c0] sm:$0xff]
    %v878 = vld [vmem:[#allocation5 + $0x7c8] sm:$0xff]
    %v879 = vld [vmem:[#allocation5 + $0x7d0] sm:$0xff]
    %v880 = vld [vmem:[#allocation5 + $0x7d8] sm:$0xff]
    %v881 = vld [vmem:[#allocation5 + $0x7e0] sm:$0xff]
    %v882 = vld [vmem:[#allocation5 + $0x7e8] sm:$0xff]
    %v883 = vld [vmem:[#allocation5 + $0x7f0] sm:$0xff]
    %v884 = vld [vmem:[#allocation5 + $0x7f8] sm:$0xff]
    %v885 = vunpack.c.0.s8 %v629
    %v886 = vunpack.c.0.s8 %v630
    %v887 = vunpack.c.0.s8 %v631
    %v888 = vunpack.c.0.s8 %v632
    %v889 = vunpack.c.1.s8 %v629
    %v890 = vunpack.c.1.s8 %v630
    %v891 = vunpack.c.1.s8 %v631
    %v892 = vunpack.c.1.s8 %v632
    %v893 = vunpack.c.2.s8 %v629
    %v894 = vunpack.c.2.s8 %v630
    %v895 = vunpack.c.2.s8 %v631
    %v896 = vunpack.c.2.s8 %v632
    %v897 = vunpack.c.3.s8 %v629
    %v898 = vunpack.c.3.s8 %v630
    %v899 = vunpack.c.3.s8 %v631
    %v900 = vunpack.c.3.s8 %v632
    %v901 = vunpack.c.0.s8 %v633
    %v902 = vunpack.c.0.s8 %v634
    %v903 = vunpack.c.0.s8 %v635
    %v904 = vunpack.c.0.s8 %v636
    %v905 = vunpack.c.1.s8 %v633
    %v906 = vunpack.c.1.s8 %v634
    %v907 = vunpack.c.1.s8 %v635
    %v908 = vunpack.c.1.s8 %v636
    %v909 = vunpack.c.2.s8 %v633
    %v910 = vunpack.c.2.s8 %v634
    %v911 = vunpack.c.2.s8 %v635
    %v912 = vunpack.c.2.s8 %v636
    %v913 = vunpack.c.3.s8 %v633
    %v914 = vunpack.c.3.s8 %v634
    %v915 = vunpack.c.3.s8 %v635
    %v916 = vunpack.c.3.s8 %v636
    %v917 = vunpack.c.0.s8 %v637
    %v918 = vunpack.c.0.s8 %v638
    %v919 = vunpack.c.0.s8 %v639
    %v920 = vunpack.c.0.s8 %v640
    %v921 = vunpack.c.1.s8 %v637
    %v922 = vunpack.c.1.s8 %v638
    %v923 = vunpack.c.1.s8 %v639
    %v924 = vunpack.c.1.s8 %v640
    %v925 = vunpack.c.2.s8 %v637
    %v926 = vunpack.c.2.s8 %v638
    %v927 = vunpack.c.2.s8 %v639
    %v928 = vunpack.c.2.s8 %v640
    %v929 = vunpack.c.3.s8 %v637
    %v930 = vunpack.c.3.s8 %v638
    %v931 = vunpack.c.3.s8 %v639
    %v932 = vunpack.c.3.s8 %v640
    %v933 = vunpack.c.0.s8 %v641
    %v934 = vunpack.c.0.s8 %v642
    %v935 = vunpack.c.0.s8 %v643
    %v936 = vunpack.c.0.s8 %v644
    %v937 = vunpack.c.1.s8 %v641
    %v938 = vunpack.c.1.s8 %v642
    %v939 = vunpack.c.1.s8 %v643
    %v940 = vunpack.c.1.s8 %v644
    %v941 = vunpack.c.2.s8 %v641
    %v942 = vunpack.c.2.s8 %v642
    %v943 = vunpack.c.2.s8 %v643
    %v944 = vunpack.c.2.s8 %v644
    %v945 = vunpack.c.3.s8 %v641
    %v946 = vunpack.c.3.s8 %v642
    %v947 = vunpack.c.3.s8 %v643
    %v948 = vunpack.c.3.s8 %v644
    %v949 = vunpack.c.0.s8 %v645
    %v950 = vunpack.c.0.s8 %v646
    %v951 = vunpack.c.0.s8 %v647
    %v952 = vunpack.c.0.s8 %v648
    %v953 = vunpack.c.1.s8 %v645
    %v954 = vunpack.c.1.s8 %v646
    %v955 = vunpack.c.1.s8 %v647
    %v956 = vunpack.c.1.s8 %v648
    %v957 = vunpack.c.2.s8 %v645
    %v958 = vunpack.c.2.s8 %v646
    %v959 = vunpack.c.2.s8 %v647
    %v960 = vunpack.c.2.s8 %v648
    %v961 = vunpack.c.3.s8 %v645
    %v962 = vunpack.c.3.s8 %v646
    %v963 = vunpack.c.3.s8 %v647
    %v964 = vunpack.c.3.s8 %v648
    %v965 = vunpack.c.0.s8 %v649
    %v966 = vunpack.c.0.s8 %v650
    %v967 = vunpack.c.0.s8 %v651
    %v968 = vunpack.c.0.s8 %v652
    %v969 = vunpack.c.1.s8 %v649
    %v970 = vunpack.c.1.s8 %v650
    %v971 = vunpack.c.1.s8 %v651
    %v972 = vunpack.c.1.s8 %v652
    %v973 = vunpack.c.2.s8 %v649
    %v974 = vunpack.c.2.s8 %v650
    %v975 = vunpack.c.2.s8 %v651
    %v976 = vunpack.c.2.s8 %v652
    %v977 = vunpack.c.3.s8 %v649
    %v978 = vunpack.c.3.s8 %v650
    %v979 = vunpack.c.3.s8 %v651
    %v980 = vunpack.c.3.s8 %v652
    %v981 = vunpack.c.0.s8 %v653
    %v982 = vunpack.c.0.s8 %v654
    %v983 = vunpack.c.0.s8 %v655
    %v984 = vunpack.c.0.s8 %v656
    %v985 = vunpack.c.1.s8 %v653
    %v986 = vunpack.c.1.s8 %v654
    %v987 = vunpack.c.1.s8 %v655
    %v988 = vunpack.c.1.s8 %v656
    %v989 = vunpack.c.2.s8 %v653
    %v990 = vunpack.c.2.s8 %v654
    %v991 = vunpack.c.2.s8 %v655
    %v992 = vunpack.c.2.s8 %v656
    %v993 = vunpack.c.3.s8 %v653
    %v994 = vunpack.c.3.s8 %v654
    %v995 = vunpack.c.3.s8 %v655
    %v996 = vunpack.c.3.s8 %v656
    %v997 = vunpack.c.0.s8 %v657
    %v998 = vunpack.c.0.s8 %v658
    %v999 = vunpack.c.0.s8 %v659
    %v1000 = vunpack.c.0.s8 %v660
    %v1001 = vunpack.c.1.s8 %v657
    %v1002 = vunpack.c.1.s8 %v658
    %v1003 = vunpack.c.1.s8 %v659
    %v1004 = vunpack.c.1.s8 %v660
    %v1005 = vunpack.c.2.s8 %v657
    %v1006 = vunpack.c.2.s8 %v658
    %v1007 = vunpack.c.2.s8 %v659
    %v1008 = vunpack.c.2.s8 %v660
    %v1009 = vunpack.c.3.s8 %v657
    %v1010 = vunpack.c.3.s8 %v658
    %v1011 = vunpack.c.3.s8 %v659
    %v1012 = vunpack.c.3.s8 %v660
    %v1013 = vunpack.c.0.s8 %v661
    %v1014 = vunpack.c.0.s8 %v662
    %v1015 = vunpack.c.0.s8 %v663
    %v1016 = vunpack.c.0.s8 %v664
    %v1017 = vunpack.c.1.s8 %v661
    %v1018 = vunpack.c.1.s8 %v662
    %v1019 = vunpack.c.1.s8 %v663
    %v1020 = vunpack.c.1.s8 %v664
    %v1021 = vunpack.c.2.s8 %v661
    %v1022 = vunpack.c.2.s8 %v662
    %v1023 = vunpack.c.2.s8 %v663
    %v1024 = vunpack.c.2.s8 %v664
    %v1025 = vunpack.c.3.s8 %v661
    %v1026 = vunpack.c.3.s8 %v662
    %v1027 = vunpack.c.3.s8 %v663
    %v1028 = vunpack.c.3.s8 %v664
    %v1029 = vunpack.c.0.s8 %v665
    %v1030 = vunpack.c.0.s8 %v666
    %v1031 = vunpack.c.0.s8 %v667
    %v1032 = vunpack.c.0.s8 %v668
    %v1033 = vunpack.c.1.s8 %v665
    %v1034 = vunpack.c.1.s8 %v666
    %v1035 = vunpack.c.1.s8 %v667
    %v1036 = vunpack.c.1.s8 %v668
    %v1037 = vunpack.c.2.s8 %v665
    %v1038 = vunpack.c.2.s8 %v666
    %v1039 = vunpack.c.2.s8 %v667
    %v1040 = vunpack.c.2.s8 %v668
    %v1041 = vunpack.c.3.s8 %v665
    %v1042 = vunpack.c.3.s8 %v666
    %v1043 = vunpack.c.3.s8 %v667
    %v1044 = vunpack.c.3.s8 %v668
    %v1045 = vunpack.c.0.s8 %v669
    %v1046 = vunpack.c.0.s8 %v670
    %v1047 = vunpack.c.0.s8 %v671
    %v1048 = vunpack.c.0.s8 %v672
    %v1049 = vunpack.c.1.s8 %v669
    %v1050 = vunpack.c.1.s8 %v670
    %v1051 = vunpack.c.1.s8 %v671
    %v1052 = vunpack.c.1.s8 %v672
    %v1053 = vunpack.c.2.s8 %v669
    %v1054 = vunpack.c.2.s8 %v670
    %v1055 = vunpack.c.2.s8 %v671
    %v1056 = vunpack.c.2.s8 %v672
    %v1057 = vunpack.c.3.s8 %v669
    %v1058 = vunpack.c.3.s8 %v670
    %v1059 = vunpack.c.3.s8 %v671
    %v1060 = vunpack.c.3.s8 %v672
    %v1061 = vunpack.c.0.s8 %v673
    %v1062 = vunpack.c.0.s8 %v674
    %v1063 = vunpack.c.0.s8 %v675
    %v1064 = vunpack.c.0.s8 %v676
    %v1065 = vunpack.c.1.s8 %v673
    %v1066 = vunpack.c.1.s8 %v674
    %v1067 = vunpack.c.1.s8 %v675
    %v1068 = vunpack.c.1.s8 %v676
    %v1069 = vunpack.c.2.s8 %v673
    %v1070 = vunpack.c.2.s8 %v674
    %v1071 = vunpack.c.2.s8 %v675
    %v1072 = vunpack.c.2.s8 %v676
    %v1073 = vunpack.c.3.s8 %v673
    %v1074 = vunpack.c.3.s8 %v674
    %v1075 = vunpack.c.3.s8 %v675
    %v1076 = vunpack.c.3.s8 %v676
    %v1077 = vunpack.c.0.s8 %v677
    %v1078 = vunpack.c.0.s8 %v678
    %v1079 = vunpack.c.0.s8 %v679
    %v1080 = vunpack.c.0.s8 %v680
    %v1081 = vunpack.c.1.s8 %v677
    %v1082 = vunpack.c.1.s8 %v678
    %v1083 = vunpack.c.1.s8 %v679
    %v1084 = vunpack.c.1.s8 %v680
    %v1085 = vunpack.c.2.s8 %v677
    %v1086 = vunpack.c.2.s8 %v678
    %v1087 = vunpack.c.2.s8 %v679
    %v1088 = vunpack.c.2.s8 %v680
    %v1089 = vunpack.c.3.s8 %v677
    %v1090 = vunpack.c.3.s8 %v678
    %v1091 = vunpack.c.3.s8 %v679
    %v1092 = vunpack.c.3.s8 %v680
    %v1093 = vunpack.c.0.s8 %v681
    %v1094 = vunpack.c.0.s8 %v682
    %v1095 = vunpack.c.0.s8 %v683
    %v1096 = vunpack.c.0.s8 %v684
    %v1097 = vunpack.c.1.s8 %v681
    %v1098 = vunpack.c.1.s8 %v682
    %v1099 = vunpack.c.1.s8 %v683
    %v1100 = vunpack.c.1.s8 %v684
    %v1101 = vunpack.c.2.s8 %v681
    %v1102 = vunpack.c.2.s8 %v682
    %v1103 = vunpack.c.2.s8 %v683
    %v1104 = vunpack.c.2.s8 %v684
    %v1105 = vunpack.c.3.s8 %v681
    %v1106 = vunpack.c.3.s8 %v682
    %v1107 = vunpack.c.3.s8 %v683
    %v1108 = vunpack.c.3.s8 %v684
    %v1109 = vunpack.c.0.s8 %v685
    %v1110 = vunpack.c.0.s8 %v686
    %v1111 = vunpack.c.0.s8 %v687
    %v1112 = vunpack.c.0.s8 %v688
    %v1113 = vunpack.c.1.s8 %v685
    %v1114 = vunpack.c.1.s8 %v686
    %v1115 = vunpack.c.1.s8 %v687
    %v1116 = vunpack.c.1.s8 %v688
    %v1117 = vunpack.c.2.s8 %v685
    %v1118 = vunpack.c.2.s8 %v686
    %v1119 = vunpack.c.2.s8 %v687
    %v1120 = vunpack.c.2.s8 %v688
    %v1121 = vunpack.c.3.s8 %v685
    %v1122 = vunpack.c.3.s8 %v686
    %v1123 = vunpack.c.3.s8 %v687
    %v1124 = vunpack.c.3.s8 %v688
    %v1125 = vunpack.c.0.s8 %v689
    %v1126 = vunpack.c.0.s8 %v690
    %v1127 = vunpack.c.0.s8 %v691
    %v1128 = vunpack.c.0.s8 %v692
    %v1129 = vunpack.c.1.s8 %v689
    %v1130 = vunpack.c.1.s8 %v690
    %v1131 = vunpack.c.1.s8 %v691
    %v1132 = vunpack.c.1.s8 %v692
    %v1133 = vunpack.c.2.s8 %v689
    %v1134 = vunpack.c.2.s8 %v690
    %v1135 = vunpack.c.2.s8 %v691
    %v1136 = vunpack.c.2.s8 %v692
    %v1137 = vunpack.c.3.s8 %v689
    %v1138 = vunpack.c.3.s8 %v690
    %v1139 = vunpack.c.3.s8 %v691
    %v1140 = vunpack.c.3.s8 %v692
    %v1141 = vunpack.c.0.s8 %v693
    %v1142 = vunpack.c.0.s8 %v694
    %v1143 = vunpack.c.0.s8 %v695
    %v1144 = vunpack.c.0.s8 %v696
    %v1145 = vunpack.c.1.s8 %v693
    %v1146 = vunpack.c.1.s8 %v694
    %v1147 = vunpack.c.1.s8 %v695
    %v1148 = vunpack.c.1.s8 %v696
    %v1149 = vunpack.c.2.s8 %v693
    %v1150 = vunpack.c.2.s8 %v694
    %v1151 = vunpack.c.2.s8 %v695
    %v1152 = vunpack.c.2.s8 %v696
    %v1153 = vunpack.c.3.s8 %v693
    %v1154 = vunpack.c.3.s8 %v694
    %v1155 = vunpack.c.3.s8 %v695
    %v1156 = vunpack.c.3.s8 %v696
    %v1157 = vunpack.c.0.s8 %v697
    %v1158 = vunpack.c.0.s8 %v698
    %v1159 = vunpack.c.0.s8 %v699
    %v1160 = vunpack.c.0.s8 %v700
    %v1161 = vunpack.c.1.s8 %v697
    %v1162 = vunpack.c.1.s8 %v698
    %v1163 = vunpack.c.1.s8 %v699
    %v1164 = vunpack.c.1.s8 %v700
    %v1165 = vunpack.c.2.s8 %v697
    %v1166 = vunpack.c.2.s8 %v698
    %v1167 = vunpack.c.2.s8 %v699
    %v1168 = vunpack.c.2.s8 %v700
    %v1169 = vunpack.c.3.s8 %v697
    %v1170 = vunpack.c.3.s8 %v698
    %v1171 = vunpack.c.3.s8 %v699
    %v1172 = vunpack.c.3.s8 %v700
    %v1173 = vunpack.c.0.s8 %v701
    %v1174 = vunpack.c.0.s8 %v702
    %v1175 = vunpack.c.0.s8 %v703
    %v1176 = vunpack.c.0.s8 %v704
    %v1177 = vunpack.c.1.s8 %v701
    %v1178 = vunpack.c.1.s8 %v702
    %v1179 = vunpack.c.1.s8 %v703
    %v1180 = vunpack.c.1.s8 %v704
    %v1181 = vunpack.c.2.s8 %v701
    %v1182 = vunpack.c.2.s8 %v702
    %v1183 = vunpack.c.2.s8 %v703
    %v1184 = vunpack.c.2.s8 %v704
    %v1185 = vunpack.c.3.s8 %v701
    %v1186 = vunpack.c.3.s8 %v702
    %v1187 = vunpack.c.3.s8 %v703
    %v1188 = vunpack.c.3.s8 %v704
    %v1189 = vunpack.c.0.s8 %v705
    %v1190 = vunpack.c.0.s8 %v706
    %v1191 = vunpack.c.0.s8 %v707
    %v1192 = vunpack.c.0.s8 %v708
    %v1193 = vunpack.c.1.s8 %v705
    %v1194 = vunpack.c.1.s8 %v706
    %v1195 = vunpack.c.1.s8 %v707
    %v1196 = vunpack.c.1.s8 %v708
    %v1197 = vunpack.c.2.s8 %v705
    %v1198 = vunpack.c.2.s8 %v706
    %v1199 = vunpack.c.2.s8 %v707
    %v1200 = vunpack.c.2.s8 %v708
    %v1201 = vunpack.c.3.s8 %v705
    %v1202 = vunpack.c.3.s8 %v706
    %v1203 = vunpack.c.3.s8 %v707
    %v1204 = vunpack.c.3.s8 %v708
    %v1205 = vunpack.c.0.s8 %v709
    %v1206 = vunpack.c.0.s8 %v710
    %v1207 = vunpack.c.0.s8 %v711
    %v1208 = vunpack.c.0.s8 %v712
    %v1209 = vunpack.c.1.s8 %v709
    %v1210 = vunpack.c.1.s8 %v710
    %v1211 = vunpack.c.1.s8 %v711
    %v1212 = vunpack.c.1.s8 %v712
    %v1213 = vunpack.c.2.s8 %v709
    %v1214 = vunpack.c.2.s8 %v710
    %v1215 = vunpack.c.2.s8 %v711
    %v1216 = vunpack.c.2.s8 %v712
    %v1217 = vunpack.c.3.s8 %v709
    %v1218 = vunpack.c.3.s8 %v710
    %v1219 = vunpack.c.3.s8 %v711
    %v1220 = vunpack.c.3.s8 %v712
    %v1221 = vunpack.c.0.s8 %v713
    %v1222 = vunpack.c.0.s8 %v714
    %v1223 = vunpack.c.0.s8 %v715
    %v1224 = vunpack.c.0.s8 %v716
    %v1225 = vunpack.c.1.s8 %v713
    %v1226 = vunpack.c.1.s8 %v714
    %v1227 = vunpack.c.1.s8 %v715
    %v1228 = vunpack.c.1.s8 %v716
    %v1229 = vunpack.c.2.s8 %v713
    %v1230 = vunpack.c.2.s8 %v714
    %v1231 = vunpack.c.2.s8 %v715
    %v1232 = vunpack.c.2.s8 %v716
    %v1233 = vunpack.c.3.s8 %v713
    %v1234 = vunpack.c.3.s8 %v714
    %v1235 = vunpack.c.3.s8 %v715
    %v1236 = vunpack.c.3.s8 %v716
    %v1237 = vunpack.c.0.s8 %v717
    %v1238 = vunpack.c.0.s8 %v718
    %v1239 = vunpack.c.0.s8 %v719
    %v1240 = vunpack.c.0.s8 %v720
    %v1241 = vunpack.c.1.s8 %v717
    %v1242 = vunpack.c.1.s8 %v718
    %v1243 = vunpack.c.1.s8 %v719
    %v1244 = vunpack.c.1.s8 %v720
    %v1245 = vunpack.c.2.s8 %v717
    %v1246 = vunpack.c.2.s8 %v718
    %v1247 = vunpack.c.2.s8 %v719
    %v1248 = vunpack.c.2.s8 %v720
    %v1249 = vunpack.c.3.s8 %v717
    %v1250 = vunpack.c.3.s8 %v718
    %v1251 = vunpack.c.3.s8 %v719
    %v1252 = vunpack.c.3.s8 %v720
    %v1253 = vunpack.c.0.s8 %v721
    %v1254 = vunpack.c.0.s8 %v722
    %v1255 = vunpack.c.0.s8 %v723
    %v1256 = vunpack.c.0.s8 %v724
    %v1257 = vunpack.c.1.s8 %v721
    %v1258 = vunpack.c.1.s8 %v722
    %v1259 = vunpack.c.1.s8 %v723
    %v1260 = vunpack.c.1.s8 %v724
    %v1261 = vunpack.c.2.s8 %v721
    %v1262 = vunpack.c.2.s8 %v722
    %v1263 = vunpack.c.2.s8 %v723
    %v1264 = vunpack.c.2.s8 %v724
    %v1265 = vunpack.c.3.s8 %v721
    %v1266 = vunpack.c.3.s8 %v722
    %v1267 = vunpack.c.3.s8 %v723
    %v1268 = vunpack.c.3.s8 %v724
    %v1269 = vunpack.c.0.s8 %v725
    %v1270 = vunpack.c.0.s8 %v726
    %v1271 = vunpack.c.0.s8 %v727
    %v1272 = vunpack.c.0.s8 %v728
    %v1273 = vunpack.c.1.s8 %v725
    %v1274 = vunpack.c.1.s8 %v726
    %v1275 = vunpack.c.1.s8 %v727
    %v1276 = vunpack.c.1.s8 %v728
    %v1277 = vunpack.c.2.s8 %v725
    %v1278 = vunpack.c.2.s8 %v726
    %v1279 = vunpack.c.2.s8 %v727
    %v1280 = vunpack.c.2.s8 %v728
    %v1281 = vunpack.c.3.s8 %v725
    %v1282 = vunpack.c.3.s8 %v726
    %v1283 = vunpack.c.3.s8 %v727
    %v1284 = vunpack.c.3.s8 %v728
    %v1285 = vunpack.c.0.s8 %v729
    %v1286 = vunpack.c.0.s8 %v730
    %v1287 = vunpack.c.0.s8 %v731
    %v1288 = vunpack.c.0.s8 %v732
    %v1289 = vunpack.c.1.s8 %v729
    %v1290 = vunpack.c.1.s8 %v730
    %v1291 = vunpack.c.1.s8 %v731
    %v1292 = vunpack.c.1.s8 %v732
    %v1293 = vunpack.c.2.s8 %v729
    %v1294 = vunpack.c.2.s8 %v730
    %v1295 = vunpack.c.2.s8 %v731
    %v1296 = vunpack.c.2.s8 %v732
    %v1297 = vunpack.c.3.s8 %v729
    %v1298 = vunpack.c.3.s8 %v730
    %v1299 = vunpack.c.3.s8 %v731
    %v1300 = vunpack.c.3.s8 %v732
    %v1301 = vunpack.c.0.s8 %v733
    %v1302 = vunpack.c.0.s8 %v734
    %v1303 = vunpack.c.0.s8 %v735
    %v1304 = vunpack.c.0.s8 %v736
    %v1305 = vunpack.c.1.s8 %v733
    %v1306 = vunpack.c.1.s8 %v734
    %v1307 = vunpack.c.1.s8 %v735
    %v1308 = vunpack.c.1.s8 %v736
    %v1309 = vunpack.c.2.s8 %v733
    %v1310 = vunpack.c.2.s8 %v734
    %v1311 = vunpack.c.2.s8 %v735
    %v1312 = vunpack.c.2.s8 %v736
    %v1313 = vunpack.c.3.s8 %v733
    %v1314 = vunpack.c.3.s8 %v734
    %v1315 = vunpack.c.3.s8 %v735
    %v1316 = vunpack.c.3.s8 %v736
    %v1317 = vunpack.c.0.s8 %v737
    %v1318 = vunpack.c.0.s8 %v738
    %v1319 = vunpack.c.0.s8 %v739
    %v1320 = vunpack.c.0.s8 %v740
    %v1321 = vunpack.c.1.s8 %v737
    %v1322 = vunpack.c.1.s8 %v738
    %v1323 = vunpack.c.1.s8 %v739
    %v1324 = vunpack.c.1.s8 %v740
    %v1325 = vunpack.c.2.s8 %v737
    %v1326 = vunpack.c.2.s8 %v738
    %v1327 = vunpack.c.2.s8 %v739
    %v1328 = vunpack.c.2.s8 %v740
    %v1329 = vunpack.c.3.s8 %v737
    %v1330 = vunpack.c.3.s8 %v738
    %v1331 = vunpack.c.3.s8 %v739
    %v1332 = vunpack.c.3.s8 %v740
    %v1333 = vunpack.c.0.s8 %v741
    %v1334 = vunpack.c.0.s8 %v742
    %v1335 = vunpack.c.0.s8 %v743
    %v1336 = vunpack.c.0.s8 %v744
    %v1337 = vunpack.c.1.s8 %v741
    %v1338 = vunpack.c.1.s8 %v742
    %v1339 = vunpack.c.1.s8 %v743
    %v1340 = vunpack.c.1.s8 %v744
    %v1341 = vunpack.c.2.s8 %v741
    %v1342 = vunpack.c.2.s8 %v742
    %v1343 = vunpack.c.2.s8 %v743
    %v1344 = vunpack.c.2.s8 %v744
    %v1345 = vunpack.c.3.s8 %v741
    %v1346 = vunpack.c.3.s8 %v742
    %v1347 = vunpack.c.3.s8 %v743
    %v1348 = vunpack.c.3.s8 %v744
    %v1349 = vunpack.c.0.s8 %v745
    %v1350 = vunpack.c.0.s8 %v746
    %v1351 = vunpack.c.0.s8 %v747
    %v1352 = vunpack.c.0.s8 %v748
    %v1353 = vunpack.c.1.s8 %v745
    %v1354 = vunpack.c.1.s8 %v746
    %v1355 = vunpack.c.1.s8 %v747
    %v1356 = vunpack.c.1.s8 %v748
    %v1357 = vunpack.c.2.s8 %v745
    %v1358 = vunpack.c.2.s8 %v746
    %v1359 = vunpack.c.2.s8 %v747
    %v1360 = vunpack.c.2.s8 %v748
    %v1361 = vunpack.c.3.s8 %v745
    %v1362 = vunpack.c.3.s8 %v746
    %v1363 = vunpack.c.3.s8 %v747
    %v1364 = vunpack.c.3.s8 %v748
    %v1365 = vunpack.c.0.s8 %v749
    %v1366 = vunpack.c.0.s8 %v750
    %v1367 = vunpack.c.0.s8 %v751
    %v1368 = vunpack.c.0.s8 %v752
    %v1369 = vunpack.c.1.s8 %v749
    %v1370 = vunpack.c.1.s8 %v750
    %v1371 = vunpack.c.1.s8 %v751
    %v1372 = vunpack.c.1.s8 %v752
    %v1373 = vunpack.c.2.s8 %v749
    %v1374 = vunpack.c.2.s8 %v750
    %v1375 = vunpack.c.2.s8 %v751
    %v1376 = vunpack.c.2.s8 %v752
    %v1377 = vunpack.c.3.s8 %v749
    %v1378 = vunpack.c.3.s8 %v750
    %v1379 = vunpack.c.3.s8 %v751
    %v1380 = vunpack.c.3.s8 %v752
    %v1381 = vunpack.c.0.s8 %v753
    %v1382 = vunpack.c.0.s8 %v754
    %v1383 = vunpack.c.0.s8 %v755
    %v1384 = vunpack.c.0.s8 %v756
    %v1385 = vunpack.c.1.s8 %v753
    %v1386 = vunpack.c.1.s8 %v754
    %v1387 = vunpack.c.1.s8 %v755
    %v1388 = vunpack.c.1.s8 %v756
    %v1389 = vunpack.c.2.s8 %v753
    %v1390 = vunpack.c.2.s8 %v754
    %v1391 = vunpack.c.2.s8 %v755
    %v1392 = vunpack.c.2.s8 %v756
    %v1393 = vunpack.c.3.s8 %v753
    %v1394 = vunpack.c.3.s8 %v754
    %v1395 = vunpack.c.3.s8 %v755
    %v1396 = vunpack.c.3.s8 %v756
    %v1397 = vunpack.c.0.s8 %v757
    %v1398 = vunpack.c.0.s8 %v758
    %v1399 = vunpack.c.0.s8 %v759
    %v1400 = vunpack.c.0.s8 %v760
    %v1401 = vunpack.c.1.s8 %v757
    %v1402 = vunpack.c.1.s8 %v758
    %v1403 = vunpack.c.1.s8 %v759
    %v1404 = vunpack.c.1.s8 %v760
    %v1405 = vunpack.c.2.s8 %v757
    %v1406 = vunpack.c.2.s8 %v758
    %v1407 = vunpack.c.2.s8 %v759
    %v1408 = vunpack.c.2.s8 %v760
    %v1409 = vunpack.c.3.s8 %v757
    %v1410 = vunpack.c.3.s8 %v758
    %v1411 = vunpack.c.3.s8 %v759
    %v1412 = vunpack.c.3.s8 %v760
    %v1413 = vunpack.c.0.s8 %v761
    %v1414 = vunpack.c.0.s8 %v762
    %v1415 = vunpack.c.0.s8 %v763
    %v1416 = vunpack.c.0.s8 %v764
    %v1417 = vunpack.c.1.s8 %v761
    %v1418 = vunpack.c.1.s8 %v762
    %v1419 = vunpack.c.1.s8 %v763
    %v1420 = vunpack.c.1.s8 %v764
    %v1421 = vunpack.c.2.s8 %v761
    %v1422 = vunpack.c.2.s8 %v762
    %v1423 = vunpack.c.2.s8 %v763
    %v1424 = vunpack.c.2.s8 %v764
    %v1425 = vunpack.c.3.s8 %v761
    %v1426 = vunpack.c.3.s8 %v762
    %v1427 = vunpack.c.3.s8 %v763
    %v1428 = vunpack.c.3.s8 %v764
    %v1429 = vunpack.c.0.s8 %v765
    %v1430 = vunpack.c.0.s8 %v766
    %v1431 = vunpack.c.0.s8 %v767
    %v1432 = vunpack.c.0.s8 %v768
    %v1433 = vunpack.c.1.s8 %v765
    %v1434 = vunpack.c.1.s8 %v766
    %v1435 = vunpack.c.1.s8 %v767
    %v1436 = vunpack.c.1.s8 %v768
    %v1437 = vunpack.c.2.s8 %v765
    %v1438 = vunpack.c.2.s8 %v766
    %v1439 = vunpack.c.2.s8 %v767
    %v1440 = vunpack.c.2.s8 %v768
    %v1441 = vunpack.c.3.s8 %v765
    %v1442 = vunpack.c.3.s8 %v766
    %v1443 = vunpack.c.3.s8 %v767
    %v1444 = vunpack.c.3.s8 %v768
    %v1445 = vunpack.c.0.s8 %v769
    %v1446 = vunpack.c.0.s8 %v770
    %v1447 = vunpack.c.0.s8 %v771
    %v1448 = vunpack.c.0.s8 %v772
    %v1449 = vunpack.c.1.s8 %v769
    %v1450 = vunpack.c.1.s8 %v770
    %v1451 = vunpack.c.1.s8 %v771
    %v1452 = vunpack.c.1.s8 %v772
    %v1453 = vunpack.c.2.s8 %v769
    %v1454 = vunpack.c.2.s8 %v770
    %v1455 = vunpack.c.2.s8 %v771
    %v1456 = vunpack.c.2.s8 %v772
    %v1457 = vunpack.c.3.s8 %v769
    %v1458 = vunpack.c.3.s8 %v770
    %v1459 = vunpack.c.3.s8 %v771
    %v1460 = vunpack.c.3.s8 %v772
    %v1461 = vunpack.c.0.s8 %v773
    %v1462 = vunpack.c.0.s8 %v774
    %v1463 = vunpack.c.0.s8 %v775
    %v1464 = vunpack.c.0.s8 %v776
    %v1465 = vunpack.c.1.s8 %v773
    %v1466 = vunpack.c.1.s8 %v774
    %v1467 = vunpack.c.1.s8 %v775
    %v1468 = vunpack.c.1.s8 %v776
    %v1469 = vunpack.c.2.s8 %v773
    %v1470 = vunpack.c.2.s8 %v774
    %v1471 = vunpack.c.2.s8 %v775
    %v1472 = vunpack.c.2.s8 %v776
    %v1473 = vunpack.c.3.s8 %v773
    %v1474 = vunpack.c.3.s8 %v774
    %v1475 = vunpack.c.3.s8 %v775
    %v1476 = vunpack.c.3.s8 %v776
    %v1477 = vunpack.c.0.s8 %v777
    %v1478 = vunpack.c.0.s8 %v778
    %v1479 = vunpack.c.0.s8 %v779
    %v1480 = vunpack.c.0.s8 %v780
    %v1481 = vunpack.c.1.s8 %v777
    %v1482 = vunpack.c.1.s8 %v778
    %v1483 = vunpack.c.1.s8 %v779
    %v1484 = vunpack.c.1.s8 %v780
    %v1485 = vunpack.c.2.s8 %v777
    %v1486 = vunpack.c.2.s8 %v778
    %v1487 = vunpack.c.2.s8 %v779
    %v1488 = vunpack.c.2.s8 %v780
    %v1489 = vunpack.c.3.s8 %v777
    %v1490 = vunpack.c.3.s8 %v778
    %v1491 = vunpack.c.3.s8 %v779
    %v1492 = vunpack.c.3.s8 %v780
    %v1493 = vunpack.c.0.s8 %v781
    %v1494 = vunpack.c.0.s8 %v782
    %v1495 = vunpack.c.0.s8 %v783
    %v1496 = vunpack.c.0.s8 %v784
    %v1497 = vunpack.c.1.s8 %v781
    %v1498 = vunpack.c.1.s8 %v782
    %v1499 = vunpack.c.1.s8 %v783
    %v1500 = vunpack.c.1.s8 %v784
    %v1501 = vunpack.c.2.s8 %v781
    %v1502 = vunpack.c.2.s8 %v782
    %v1503 = vunpack.c.2.s8 %v783
    %v1504 = vunpack.c.2.s8 %v784
    %v1505 = vunpack.c.3.s8 %v781
    %v1506 = vunpack.c.3.s8 %v782
    %v1507 = vunpack.c.3.s8 %v783
    %v1508 = vunpack.c.3.s8 %v784
    %v1509 = vunpack.c.0.s8 %v785
    %v1510 = vunpack.c.0.s8 %v786
    %v1511 = vunpack.c.0.s8 %v787
    %v1512 = vunpack.c.0.s8 %v788
    %v1513 = vunpack.c.1.s8 %v785
    %v1514 = vunpack.c.1.s8 %v786
    %v1515 = vunpack.c.1.s8 %v787
    %v1516 = vunpack.c.1.s8 %v788
    %v1517 = vunpack.c.2.s8 %v785
    %v1518 = vunpack.c.2.s8 %v786
    %v1519 = vunpack.c.2.s8 %v787
    %v1520 = vunpack.c.2.s8 %v788
    %v1521 = vunpack.c.3.s8 %v785
    %v1522 = vunpack.c.3.s8 %v786
    %v1523 = vunpack.c.3.s8 %v787
    %v1524 = vunpack.c.3.s8 %v788
    %v1525 = vunpack.c.0.s8 %v789
    %v1526 = vunpack.c.0.s8 %v790
    %v1527 = vunpack.c.0.s8 %v791
    %v1528 = vunpack.c.0.s8 %v792
    %v1529 = vunpack.c.1.s8 %v789
    %v1530 = vunpack.c.1.s8 %v790
    %v1531 = vunpack.c.1.s8 %v791
    %v1532 = vunpack.c.1.s8 %v792
    %v1533 = vunpack.c.2.s8 %v789
    %v1534 = vunpack.c.2.s8 %v790
    %v1535 = vunpack.c.2.s8 %v791
    %v1536 = vunpack.c.2.s8 %v792
    %v1537 = vunpack.c.3.s8 %v789
    %v1538 = vunpack.c.3.s8 %v790
    %v1539 = vunpack.c.3.s8 %v791
    %v1540 = vunpack.c.3.s8 %v792
    %v1541 = vunpack.c.0.s8 %v793
    %v1542 = vunpack.c.0.s8 %v794
    %v1543 = vunpack.c.0.s8 %v795
    %v1544 = vunpack.c.0.s8 %v796
    %v1545 = vunpack.c.1.s8 %v793
    %v1546 = vunpack.c.1.s8 %v794
    %v1547 = vunpack.c.1.s8 %v795
    %v1548 = vunpack.c.1.s8 %v796
    %v1549 = vunpack.c.2.s8 %v793
    %v1550 = vunpack.c.2.s8 %v794
    %v1551 = vunpack.c.2.s8 %v795
    %v1552 = vunpack.c.2.s8 %v796
    %v1553 = vunpack.c.3.s8 %v793
    %v1554 = vunpack.c.3.s8 %v794
    %v1555 = vunpack.c.3.s8 %v795
    %v1556 = vunpack.c.3.s8 %v796
    %v1557 = vunpack.c.0.s8 %v797
    %v1558 = vunpack.c.0.s8 %v798
    %v1559 = vunpack.c.0.s8 %v799
    %v1560 = vunpack.c.0.s8 %v800
    %v1561 = vunpack.c.1.s8 %v797
    %v1562 = vunpack.c.1.s8 %v798
    %v1563 = vunpack.c.1.s8 %v799
    %v1564 = vunpack.c.1.s8 %v800
    %v1565 = vunpack.c.2.s8 %v797
    %v1566 = vunpack.c.2.s8 %v798
    %v1567 = vunpack.c.2.s8 %v799
    %v1568 = vunpack.c.2.s8 %v800
    %v1569 = vunpack.c.3.s8 %v797
    %v1570 = vunpack.c.3.s8 %v798
    %v1571 = vunpack.c.3.s8 %v799
    %v1572 = vunpack.c.3.s8 %v800
    %v1573 = vunpack.c.0.s8 %v801
    %v1574 = vunpack.c.0.s8 %v802
    %v1575 = vunpack.c.0.s8 %v803
    %v1576 = vunpack.c.0.s8 %v804
    %v1577 = vunpack.c.1.s8 %v801
    %v1578 = vunpack.c.1.s8 %v802
    %v1579 = vunpack.c.1.s8 %v803
    %v1580 = vunpack.c.1.s8 %v804
    %v1581 = vunpack.c.2.s8 %v801
    %v1582 = vunpack.c.2.s8 %v802
    %v1583 = vunpack.c.2.s8 %v803
    %v1584 = vunpack.c.2.s8 %v804
    %v1585 = vunpack.c.3.s8 %v801
    %v1586 = vunpack.c.3.s8 %v802
    %v1587 = vunpack.c.3.s8 %v803
    %v1588 = vunpack.c.3.s8 %v804
    %v1589 = vunpack.c.0.s8 %v805
    %v1590 = vunpack.c.0.s8 %v806
    %v1591 = vunpack.c.0.s8 %v807
    %v1592 = vunpack.c.0.s8 %v808
    %v1593 = vunpack.c.1.s8 %v805
    %v1594 = vunpack.c.1.s8 %v806
    %v1595 = vunpack.c.1.s8 %v807
    %v1596 = vunpack.c.1.s8 %v808
    %v1597 = vunpack.c.2.s8 %v805
    %v1598 = vunpack.c.2.s8 %v806
    %v1599 = vunpack.c.2.s8 %v807
    %v1600 = vunpack.c.2.s8 %v808
    %v1601 = vunpack.c.3.s8 %v805
    %v1602 = vunpack.c.3.s8 %v806
    %v1603 = vunpack.c.3.s8 %v807
    %v1604 = vunpack.c.3.s8 %v808
    %v1605 = vunpack.c.0.s8 %v809
    %v1606 = vunpack.c.0.s8 %v810
    %v1607 = vunpack.c.0.s8 %v811
    %v1608 = vunpack.c.0.s8 %v812
    %v1609 = vunpack.c.1.s8 %v809
    %v1610 = vunpack.c.1.s8 %v810
    %v1611 = vunpack.c.1.s8 %v811
    %v1612 = vunpack.c.1.s8 %v812
    %v1613 = vunpack.c.2.s8 %v809
    %v1614 = vunpack.c.2.s8 %v810
    %v1615 = vunpack.c.2.s8 %v811
    %v1616 = vunpack.c.2.s8 %v812
    %v1617 = vunpack.c.3.s8 %v809
    %v1618 = vunpack.c.3.s8 %v810
    %v1619 = vunpack.c.3.s8 %v811
    %v1620 = vunpack.c.3.s8 %v812
    %v1621 = vunpack.c.0.s8 %v813
    %v1622 = vunpack.c.0.s8 %v814
    %v1623 = vunpack.c.0.s8 %v815
    %v1624 = vunpack.c.0.s8 %v816
    %v1625 = vunpack.c.1.s8 %v813
    %v1626 = vunpack.c.1.s8 %v814
    %v1627 = vunpack.c.1.s8 %v815
    %v1628 = vunpack.c.1.s8 %v816
    %v1629 = vunpack.c.2.s8 %v813
    %v1630 = vunpack.c.2.s8 %v814
    %v1631 = vunpack.c.2.s8 %v815
    %v1632 = vunpack.c.2.s8 %v816
    %v1633 = vunpack.c.3.s8 %v813
    %v1634 = vunpack.c.3.s8 %v814
    %v1635 = vunpack.c.3.s8 %v815
    %v1636 = vunpack.c.3.s8 %v816
    %v1637 = vunpack.c.0.s8 %v817
    %v1638 = vunpack.c.0.s8 %v818
    %v1639 = vunpack.c.0.s8 %v819
    %v1640 = vunpack.c.0.s8 %v820
    %v1641 = vunpack.c.1.s8 %v817
    %v1642 = vunpack.c.1.s8 %v818
    %v1643 = vunpack.c.1.s8 %v819
    %v1644 = vunpack.c.1.s8 %v820
    %v1645 = vunpack.c.2.s8 %v817
    %v1646 = vunpack.c.2.s8 %v818
    %v1647 = vunpack.c.2.s8 %v819
    %v1648 = vunpack.c.2.s8 %v820
    %v1649 = vunpack.c.3.s8 %v817
    %v1650 = vunpack.c.3.s8 %v818
    %v1651 = vunpack.c.3.s8 %v819
    %v1652 = vunpack.c.3.s8 %v820
    %v1653 = vunpack.c.0.s8 %v821
    %v1654 = vunpack.c.0.s8 %v822
    %v1655 = vunpack.c.0.s8 %v823
    %v1656 = vunpack.c.0.s8 %v824
    %v1657 = vunpack.c.1.s8 %v821
    %v1658 = vunpack.c.1.s8 %v822
    %v1659 = vunpack.c.1.s8 %v823
    %v1660 = vunpack.c.1.s8 %v824
    %v1661 = vunpack.c.2.s8 %v821
    %v1662 = vunpack.c.2.s8 %v822
    %v1663 = vunpack.c.2.s8 %v823
    %v1664 = vunpack.c.2.s8 %v824
    %v1665 = vunpack.c.3.s8 %v821
    %v1666 = vunpack.c.3.s8 %v822
    %v1667 = vunpack.c.3.s8 %v823
    %v1668 = vunpack.c.3.s8 %v824
    %v1669 = vunpack.c.0.s8 %v825
    %v1670 = vunpack.c.0.s8 %v826
    %v1671 = vunpack.c.0.s8 %v827
    %v1672 = vunpack.c.0.s8 %v828
    %v1673 = vunpack.c.1.s8 %v825
    %v1674 = vunpack.c.1.s8 %v826
    %v1675 = vunpack.c.1.s8 %v827
    %v1676 = vunpack.c.1.s8 %v828
    %v1677 = vunpack.c.2.s8 %v825
    %v1678 = vunpack.c.2.s8 %v826
    %v1679 = vunpack.c.2.s8 %v827
    %v1680 = vunpack.c.2.s8 %v828
    %v1681 = vunpack.c.3.s8 %v825
    %v1682 = vunpack.c.3.s8 %v826
    %v1683 = vunpack.c.3.s8 %v827
    %v1684 = vunpack.c.3.s8 %v828
    %v1685 = vunpack.c.0.s8 %v829
    %v1686 = vunpack.c.0.s8 %v830
    %v1687 = vunpack.c.0.s8 %v831
    %v1688 = vunpack.c.0.s8 %v832
    %v1689 = vunpack.c.1.s8 %v829
    %v1690 = vunpack.c.1.s8 %v830
    %v1691 = vunpack.c.1.s8 %v831
    %v1692 = vunpack.c.1.s8 %v832
    %v1693 = vunpack.c.2.s8 %v829
    %v1694 = vunpack.c.2.s8 %v830
    %v1695 = vunpack.c.2.s8 %v831
    %v1696 = vunpack.c.2.s8 %v832
    %v1697 = vunpack.c.3.s8 %v829
    %v1698 = vunpack.c.3.s8 %v830
    %v1699 = vunpack.c.3.s8 %v831
    %v1700 = vunpack.c.3.s8 %v832
    %v1701 = vunpack.c.0.s8 %v833
    %v1702 = vunpack.c.0.s8 %v834
    %v1703 = vunpack.c.0.s8 %v835
    %v1704 = vunpack.c.0.s8 %v836
    %v1705 = vunpack.c.1.s8 %v833
    %v1706 = vunpack.c.1.s8 %v834
    %v1707 = vunpack.c.1.s8 %v835
    %v1708 = vunpack.c.1.s8 %v836
    %v1709 = vunpack.c.2.s8 %v833
    %v1710 = vunpack.c.2.s8 %v834
    %v1711 = vunpack.c.2.s8 %v835
    %v1712 = vunpack.c.2.s8 %v836
    %v1713 = vunpack.c.3.s8 %v833
    %v1714 = vunpack.c.3.s8 %v834
    %v1715 = vunpack.c.3.s8 %v835
    %v1716 = vunpack.c.3.s8 %v836
    %v1717 = vunpack.c.0.s8 %v837
    %v1718 = vunpack.c.0.s8 %v838
    %v1719 = vunpack.c.0.s8 %v839
    %v1720 = vunpack.c.0.s8 %v840
    %v1721 = vunpack.c.1.s8 %v837
    %v1722 = vunpack.c.1.s8 %v838
    %v1723 = vunpack.c.1.s8 %v839
    %v1724 = vunpack.c.1.s8 %v840
    %v1725 = vunpack.c.2.s8 %v837
    %v1726 = vunpack.c.2.s8 %v838
    %v1727 = vunpack.c.2.s8 %v839
    %v1728 = vunpack.c.2.s8 %v840
    %v1729 = vunpack.c.3.s8 %v837
    %v1730 = vunpack.c.3.s8 %v838
    %v1731 = vunpack.c.3.s8 %v839
    %v1732 = vunpack.c.3.s8 %v840
    %v1733 = vunpack.c.0.s8 %v841
    %v1734 = vunpack.c.0.s8 %v842
    %v1735 = vunpack.c.0.s8 %v843
    %v1736 = vunpack.c.0.s8 %v844
    %v1737 = vunpack.c.1.s8 %v841
    %v1738 = vunpack.c.1.s8 %v842
    %v1739 = vunpack.c.1.s8 %v843
    %v1740 = vunpack.c.1.s8 %v844
    %v1741 = vunpack.c.2.s8 %v841
    %v1742 = vunpack.c.2.s8 %v842
    %v1743 = vunpack.c.2.s8 %v843
    %v1744 = vunpack.c.2.s8 %v844
    %v1745 = vunpack.c.3.s8 %v841
    %v1746 = vunpack.c.3.s8 %v842
    %v1747 = vunpack.c.3.s8 %v843
    %v1748 = vunpack.c.3.s8 %v844
    %v1749 = vunpack.c.0.s8 %v845
    %v1750 = vunpack.c.0.s8 %v846
    %v1751 = vunpack.c.0.s8 %v847
    %v1752 = vunpack.c.0.s8 %v848
    %v1753 = vunpack.c.1.s8 %v845
    %v1754 = vunpack.c.1.s8 %v846
    %v1755 = vunpack.c.1.s8 %v847
    %v1756 = vunpack.c.1.s8 %v848
    %v1757 = vunpack.c.2.s8 %v845
    %v1758 = vunpack.c.2.s8 %v846
    %v1759 = vunpack.c.2.s8 %v847
    %v1760 = vunpack.c.2.s8 %v848
    %v1761 = vunpack.c.3.s8 %v845
    %v1762 = vunpack.c.3.s8 %v846
    %v1763 = vunpack.c.3.s8 %v847
    %v1764 = vunpack.c.3.s8 %v848
    %v1765 = vunpack.c.0.s8 %v849
    %v1766 = vunpack.c.0.s8 %v850
    %v1767 = vunpack.c.0.s8 %v851
    %v1768 = vunpack.c.0.s8 %v852
    %v1769 = vunpack.c.1.s8 %v849
    %v1770 = vunpack.c.1.s8 %v850
    %v1771 = vunpack.c.1.s8 %v851
    %v1772 = vunpack.c.1.s8 %v852
    %v1773 = vunpack.c.2.s8 %v849
    %v1774 = vunpack.c.2.s8 %v850
    %v1775 = vunpack.c.2.s8 %v851
    %v1776 = vunpack.c.2.s8 %v852
    %v1777 = vunpack.c.3.s8 %v849
    %v1778 = vunpack.c.3.s8 %v850
    %v1779 = vunpack.c.3.s8 %v851
    %v1780 = vunpack.c.3.s8 %v852
    %v1781 = vunpack.c.0.s8 %v853
    %v1782 = vunpack.c.0.s8 %v854
    %v1783 = vunpack.c.0.s8 %v855
    %v1784 = vunpack.c.0.s8 %v856
    %v1785 = vunpack.c.1.s8 %v853
    %v1786 = vunpack.c.1.s8 %v854
    %v1787 = vunpack.c.1.s8 %v855
    %v1788 = vunpack.c.1.s8 %v856
    %v1789 = vunpack.c.2.s8 %v853
    %v1790 = vunpack.c.2.s8 %v854
    %v1791 = vunpack.c.2.s8 %v855
    %v1792 = vunpack.c.2.s8 %v856
    %v1793 = vunpack.c.3.s8 %v853
    %v1794 = vunpack.c.3.s8 %v854
    %v1795 = vunpack.c.3.s8 %v855
    %v1796 = vunpack.c.3.s8 %v856
    %v1797 = vunpack.c.0.s8 %v857
    %v1798 = vunpack.c.0.s8 %v858
    %v1799 = vunpack.c.0.s8 %v859
    %v1800 = vunpack.c.0.s8 %v860
    %v1801 = vunpack.c.1.s8 %v857
    %v1802 = vunpack.c.1.s8 %v858
    %v1803 = vunpack.c.1.s8 %v859
    %v1804 = vunpack.c.1.s8 %v860
    %v1805 = vunpack.c.2.s8 %v857
    %v1806 = vunpack.c.2.s8 %v858
    %v1807 = vunpack.c.2.s8 %v859
    %v1808 = vunpack.c.2.s8 %v860
    %v1809 = vunpack.c.3.s8 %v857
    %v1810 = vunpack.c.3.s8 %v858
    %v1811 = vunpack.c.3.s8 %v859
    %v1812 = vunpack.c.3.s8 %v860
    %v1813 = vunpack.c.0.s8 %v861
    %v1814 = vunpack.c.0.s8 %v862
    %v1815 = vunpack.c.0.s8 %v863
    %v1816 = vunpack.c.0.s8 %v864
    %v1817 = vunpack.c.1.s8 %v861
    %v1818 = vunpack.c.1.s8 %v862
    %v1819 = vunpack.c.1.s8 %v863
    %v1820 = vunpack.c.1.s8 %v864
    %v1821 = vunpack.c.2.s8 %v861
    %v1822 = vunpack.c.2.s8 %v862
    %v1823 = vunpack.c.2.s8 %v863
    %v1824 = vunpack.c.2.s8 %v864
    %v1825 = vunpack.c.3.s8 %v861
    %v1826 = vunpack.c.3.s8 %v862
    %v1827 = vunpack.c.3.s8 %v863
    %v1828 = vunpack.c.3.s8 %v864
    %v1829 = vunpack.c.0.s8 %v865
    %v1830 = vunpack.c.0.s8 %v866
    %v1831 = vunpack.c.0.s8 %v867
    %v1832 = vunpack.c.0.s8 %v868
    %v1833 = vunpack.c.1.s8 %v865
    %v1834 = vunpack.c.1.s8 %v866
    %v1835 = vunpack.c.1.s8 %v867
    %v1836 = vunpack.c.1.s8 %v868
    %v1837 = vunpack.c.2.s8 %v865
    %v1838 = vunpack.c.2.s8 %v866
    %v1839 = vunpack.c.2.s8 %v867
    %v1840 = vunpack.c.2.s8 %v868
    %v1841 = vunpack.c.3.s8 %v865
    %v1842 = vunpack.c.3.s8 %v866
    %v1843 = vunpack.c.3.s8 %v867
    %v1844 = vunpack.c.3.s8 %v868
    %v1845 = vunpack.c.0.s8 %v869
    %v1846 = vunpack.c.0.s8 %v870
    %v1847 = vunpack.c.0.s8 %v871
    %v1848 = vunpack.c.0.s8 %v872
    %v1849 = vunpack.c.1.s8 %v869
    %v1850 = vunpack.c.1.s8 %v870
    %v1851 = vunpack.c.1.s8 %v871
    %v1852 = vunpack.c.1.s8 %v872
    %v1853 = vunpack.c.2.s8 %v869
    %v1854 = vunpack.c.2.s8 %v870
    %v1855 = vunpack.c.2.s8 %v871
    %v1856 = vunpack.c.2.s8 %v872
    %v1857 = vunpack.c.3.s8 %v869
    %v1858 = vunpack.c.3.s8 %v870
    %v1859 = vunpack.c.3.s8 %v871
    %v1860 = vunpack.c.3.s8 %v872
    %v1861 = vunpack.c.0.s8 %v873
    %v1862 = vunpack.c.0.s8 %v874
    %v1863 = vunpack.c.0.s8 %v875
    %v1864 = vunpack.c.0.s8 %v876
    %v1865 = vunpack.c.1.s8 %v873
    %v1866 = vunpack.c.1.s8 %v874
    %v1867 = vunpack.c.1.s8 %v875
    %v1868 = vunpack.c.1.s8 %v876
    %v1869 = vunpack.c.2.s8 %v873
    %v1870 = vunpack.c.2.s8 %v874
    %v1871 = vunpack.c.2.s8 %v875
    %v1872 = vunpack.c.2.s8 %v876
    %v1873 = vunpack.c.3.s8 %v873
    %v1874 = vunpack.c.3.s8 %v874
    %v1875 = vunpack.c.3.s8 %v875
    %v1876 = vunpack.c.3.s8 %v876
    %v1877 = vunpack.c.0.s8 %v877
    %v1878 = vunpack.c.0.s8 %v878
    %v1879 = vunpack.c.0.s8 %v879
    %v1880 = vunpack.c.0.s8 %v880
    %v1881 = vunpack.c.1.s8 %v877
    %v1882 = vunpack.c.1.s8 %v878
    %v1883 = vunpack.c.1.s8 %v879
    %v1884 = vunpack.c.1.s8 %v880
    %v1885 = vunpack.c.2.s8 %v877
    %v1886 = vunpack.c.2.s8 %v878
    %v1887 = vunpack.c.2.s8 %v879
    %v1888 = vunpack.c.2.s8 %v880
    %v1889 = vunpack.c.3.s8 %v877
    %v1890 = vunpack.c.3.s8 %v878
    %v1891 = vunpack.c.3.s8 %v879
    %v1892 = vunpack.c.3.s8 %v880
    %v1893 = vunpack.c.0.s8 %v881
    %v1894 = vunpack.c.0.s8 %v882
    %v1895 = vunpack.c.0.s8 %v883
    %v1896 = vunpack.c.0.s8 %v884
    %v1897 = vunpack.c.1.s8 %v881
    %v1898 = vunpack.c.1.s8 %v882
    %v1899 = vunpack.c.1.s8 %v883
    %v1900 = vunpack.c.1.s8 %v884
    %v1901 = vunpack.c.2.s8 %v881
    %v1902 = vunpack.c.2.s8 %v882
    %v1903 = vunpack.c.2.s8 %v883
    %v1904 = vunpack.c.2.s8 %v884
    %v1905 = vunpack.c.3.s8 %v881
    %v1906 = vunpack.c.3.s8 %v882
    %v1907 = vunpack.c.3.s8 %v883
    %v1908 = vunpack.c.3.s8 %v884
    %v1909 = vcvt.s32.f32 %v885
    %v1910 = vcvt.s32.f32 %v886
    %v1911 = vcvt.s32.f32 %v887
    %v1912 = vcvt.s32.f32 %v888
    %v1913 = vcvt.s32.f32 %v889
    %v1914 = vcvt.s32.f32 %v890
    %v1915 = vcvt.s32.f32 %v891
    %v1916 = vcvt.s32.f32 %v892
    %v1917 = vcvt.s32.f32 %v893
    %v1918 = vcvt.s32.f32 %v894
    %v1919 = vcvt.s32.f32 %v895
    %v1920 = vcvt.s32.f32 %v896
    %v1921 = vcvt.s32.f32 %v897
    %v1922 = vcvt.s32.f32 %v898
    %v1923 = vcvt.s32.f32 %v899
    %v1924 = vcvt.s32.f32 %v900
    %v1925 = vcvt.s32.f32 %v901
    %v1926 = vcvt.s32.f32 %v902
    %v1927 = vcvt.s32.f32 %v903
    %v1928 = vcvt.s32.f32 %v904
    %v1929 = vcvt.s32.f32 %v905
    %v1930 = vcvt.s32.f32 %v906
    %v1931 = vcvt.s32.f32 %v907
    %v1932 = vcvt.s32.f32 %v908
    %v1933 = vcvt.s32.f32 %v909
    %v1934 = vcvt.s32.f32 %v910
    %v1935 = vcvt.s32.f32 %v911
    %v1936 = vcvt.s32.f32 %v912
    %v1937 = vcvt.s32.f32 %v913
    %v1938 = vcvt.s32.f32 %v914
    %v1939 = vcvt.s32.f32 %v915
    %v1940 = vcvt.s32.f32 %v916
    %v1941 = vcvt.s32.f32 %v917
    %v1942 = vcvt.s32.f32 %v918
    %v1943 = vcvt.s32.f32 %v919
    %v1944 = vcvt.s32.f32 %v920
    %v1945 = vcvt.s32.f32 %v921
    %v1946 = vcvt.s32.f32 %v922
    %v1947 = vcvt.s32.f32 %v923
    %v1948 = vcvt.s32.f32 %v924
    %v1949 = vcvt.s32.f32 %v925
    %v1950 = vcvt.s32.f32 %v926
    %v1951 = vcvt.s32.f32 %v927
    %v1952 = vcvt.s32.f32 %v928
    %v1953 = vcvt.s32.f32 %v929
    %v1954 = vcvt.s32.f32 %v930
    %v1955 = vcvt.s32.f32 %v931
    %v1956 = vcvt.s32.f32 %v932
    %v1957 = vcvt.s32.f32 %v933
    %v1958 = vcvt.s32.f32 %v934
    %v1959 = vcvt.s32.f32 %v935
    %v1960 = vcvt.s32.f32 %v936
    %v1961 = vcvt.s32.f32 %v937
    %v1962 = vcvt.s32.f32 %v938
    %v1963 = vcvt.s32.f32 %v939
    %v1964 = vcvt.s32.f32 %v940
    %v1965 = vcvt.s32.f32 %v941
    %v1966 = vcvt.s32.f32 %v942
    %v1967 = vcvt.s32.f32 %v943
    %v1968 = vcvt.s32.f32 %v944
    %v1969 = vcvt.s32.f32 %v945
    %v1970 = vcvt.s32.f32 %v946
    %v1971 = vcvt.s32.f32 %v947
    %v1972 = vcvt.s32.f32 %v948
    %v1973 = vcvt.s32.f32 %v949
    %v1974 = vcvt.s32.f32 %v950
    %v1975 = vcvt.s32.f32 %v951
    %v1976 = vcvt.s32.f32 %v952
    %v1977 = vcvt.s32.f32 %v953
    %v1978 = vcvt.s32.f32 %v954
    %v1979 = vcvt.s32.f32 %v955
    %v1980 = vcvt.s32.f32 %v956
    %v1981 = vcvt.s32.f32 %v957
    %v1982 = vcvt.s32.f32 %v958
    %v1983 = vcvt.s32.f32 %v959
    %v1984 = vcvt.s32.f32 %v960
    %v1985 = vcvt.s32.f32 %v961
    %v1986 = vcvt.s32.f32 %v962
    %v1987 = vcvt.s32.f32 %v963
    %v1988 = vcvt.s32.f32 %v964
    %v1989 = vcvt.s32.f32 %v965
    %v1990 = vcvt.s32.f32 %v966
    %v1991 = vcvt.s32.f32 %v967
    %v1992 = vcvt.s32.f32 %v968
    %v1993 = vcvt.s32.f32 %v969
    %v1994 = vcvt.s32.f32 %v970
    %v1995 = vcvt.s32.f32 %v971
    %v1996 = vcvt.s32.f32 %v972
    %v1997 = vcvt.s32.f32 %v973
    %v1998 = vcvt.s32.f32 %v974
    %v1999 = vcvt.s32.f32 %v975
    %v2000 = vcvt.s32.f32 %v976
    %v2001 = vcvt.s32.f32 %v977
    %v2002 = vcvt.s32.f32 %v978
    %v2003 = vcvt.s32.f32 %v979
    %v2004 = vcvt.s32.f32 %v980
    %v2005 = vcvt.s32.f32 %v981
    %v2006 = vcvt.s32.f32 %v982
    %v2007 = vcvt.s32.f32 %v983
    %v2008 = vcvt.s32.f32 %v984
    %v2009 = vcvt.s32.f32 %v985
    %v2010 = vcvt.s32.f32 %v986
    %v2011 = vcvt.s32.f32 %v987
    %v2012 = vcvt.s32.f32 %v988
    %v2013 = vcvt.s32.f32 %v989
    %v2014 = vcvt.s32.f32 %v990
    %v2015 = vcvt.s32.f32 %v991
    %v2016 = vcvt.s32.f32 %v992
    %v2017 = vcvt.s32.f32 %v993
    %v2018 = vcvt.s32.f32 %v994
    %v2019 = vcvt.s32.f32 %v995
    %v2020 = vcvt.s32.f32 %v996
    %v2021 = vcvt.s32.f32 %v997
    %v2022 = vcvt.s32.f32 %v998
    %v2023 = vcvt.s32.f32 %v999
    %v2024 = vcvt.s32.f32 %v1000
    %v2025 = vcvt.s32.f32 %v1001
    %v2026 = vcvt.s32.f32 %v1002
    %v2027 = vcvt.s32.f32 %v1003
    %v2028 = vcvt.s32.f32 %v1004
    %v2029 = vcvt.s32.f32 %v1005
    %v2030 = vcvt.s32.f32 %v1006
    %v2031 = vcvt.s32.f32 %v1007
    %v2032 = vcvt.s32.f32 %v1008
    %v2033 = vcvt.s32.f32 %v1009
    %v2034 = vcvt.s32.f32 %v1010
    %v2035 = vcvt.s32.f32 %v1011
    %v2036 = vcvt.s32.f32 %v1012
    %v2037 = vcvt.s32.f32 %v1013
    %v2038 = vcvt.s32.f32 %v1014
    %v2039 = vcvt.s32.f32 %v1015
    %v2040 = vcvt.s32.f32 %v1016
    %v2041 = vcvt.s32.f32 %v1017
    %v2042 = vcvt.s32.f32 %v1018
    %v2043 = vcvt.s32.f32 %v1019
    %v2044 = vcvt.s32.f32 %v1020
    %v2045 = vcvt.s32.f32 %v1021
    %v2046 = vcvt.s32.f32 %v1022
    %v2047 = vcvt.s32.f32 %v1023
    %v2048 = vcvt.s32.f32 %v1024
    %v2049 = vcvt.s32.f32 %v1025
    %v2050 = vcvt.s32.f32 %v1026
    %v2051 = vcvt.s32.f32 %v1027
    %v2052 = vcvt.s32.f32 %v1028
    %v2053 = vcvt.s32.f32 %v1029
    %v2054 = vcvt.s32.f32 %v1030
    %v2055 = vcvt.s32.f32 %v1031
    %v2056 = vcvt.s32.f32 %v1032
    %v2057 = vcvt.s32.f32 %v1033
    %v2058 = vcvt.s32.f32 %v1034
    %v2059 = vcvt.s32.f32 %v1035
    %v2060 = vcvt.s32.f32 %v1036
    %v2061 = vcvt.s32.f32 %v1037
    %v2062 = vcvt.s32.f32 %v1038
    %v2063 = vcvt.s32.f32 %v1039
    %v2064 = vcvt.s32.f32 %v1040
    %v2065 = vcvt.s32.f32 %v1041
    %v2066 = vcvt.s32.f32 %v1042
    %v2067 = vcvt.s32.f32 %v1043
    %v2068 = vcvt.s32.f32 %v1044
    %v2069 = vcvt.s32.f32 %v1045
    %v2070 = vcvt.s32.f32 %v1046
    %v2071 = vcvt.s32.f32 %v1047
    %v2072 = vcvt.s32.f32 %v1048
    %v2073 = vcvt.s32.f32 %v1049
    %v2074 = vcvt.s32.f32 %v1050
    %v2075 = vcvt.s32.f32 %v1051
    %v2076 = vcvt.s32.f32 %v1052
    %v2077 = vcvt.s32.f32 %v1053
    %v2078 = vcvt.s32.f32 %v1054
    %v2079 = vcvt.s32.f32 %v1055
    %v2080 = vcvt.s32.f32 %v1056
    %v2081 = vcvt.s32.f32 %v1057
    %v2082 = vcvt.s32.f32 %v1058
    %v2083 = vcvt.s32.f32 %v1059
    %v2084 = vcvt.s32.f32 %v1060
    %v2085 = vcvt.s32.f32 %v1061
    %v2086 = vcvt.s32.f32 %v1062
    %v2087 = vcvt.s32.f32 %v1063
    %v2088 = vcvt.s32.f32 %v1064
    %v2089 = vcvt.s32.f32 %v1065
    %v2090 = vcvt.s32.f32 %v1066
    %v2091 = vcvt.s32.f32 %v1067
    %v2092 = vcvt.s32.f32 %v1068
    %v2093 = vcvt.s32.f32 %v1069
    %v2094 = vcvt.s32.f32 %v1070
    %v2095 = vcvt.s32.f32 %v1071
    %v2096 = vcvt.s32.f32 %v1072
    %v2097 = vcvt.s32.f32 %v1073
    %v2098 = vcvt.s32.f32 %v1074
    %v2099 = vcvt.s32.f32 %v1075
    %v2100 = vcvt.s32.f32 %v1076
    %v2101 = vcvt.s32.f32 %v1077
    %v2102 = vcvt.s32.f32 %v1078
    %v2103 = vcvt.s32.f32 %v1079
    %v2104 = vcvt.s32.f32 %v1080
    %v2105 = vcvt.s32.f32 %v1081
    %v2106 = vcvt.s32.f32 %v1082
    %v2107 = vcvt.s32.f32 %v1083
    %v2108 = vcvt.s32.f32 %v1084
    %v2109 = vcvt.s32.f32 %v1085
    %v2110 = vcvt.s32.f32 %v1086
    %v2111 = vcvt.s32.f32 %v1087
    %v2112 = vcvt.s32.f32 %v1088
    %v2113 = vcvt.s32.f32 %v1089
    %v2114 = vcvt.s32.f32 %v1090
    %v2115 = vcvt.s32.f32 %v1091
    %v2116 = vcvt.s32.f32 %v1092
    %v2117 = vcvt.s32.f32 %v1093
    %v2118 = vcvt.s32.f32 %v1094
    %v2119 = vcvt.s32.f32 %v1095
    %v2120 = vcvt.s32.f32 %v1096
    %v2121 = vcvt.s32.f32 %v1097
    %v2122 = vcvt.s32.f32 %v1098
    %v2123 = vcvt.s32.f32 %v1099
    %v2124 = vcvt.s32.f32 %v1100
    %v2125 = vcvt.s32.f32 %v1101
    %v2126 = vcvt.s32.f32 %v1102
    %v2127 = vcvt.s32.f32 %v1103
    %v2128 = vcvt.s32.f32 %v1104
    %v2129 = vcvt.s32.f32 %v1105
    %v2130 = vcvt.s32.f32 %v1106
    %v2131 = vcvt.s32.f32 %v1107
    %v2132 = vcvt.s32.f32 %v1108
    %v2133 = vcvt.s32.f32 %v1109
    %v2134 = vcvt.s32.f32 %v1110
    %v2135 = vcvt.s32.f32 %v1111
    %v2136 = vcvt.s32.f32 %v1112
    %v2137 = vcvt.s32.f32 %v1113
    %v2138 = vcvt.s32.f32 %v1114
    %v2139 = vcvt.s32.f32 %v1115
    %v2140 = vcvt.s32.f32 %v1116
    %v2141 = vcvt.s32.f32 %v1117
    %v2142 = vcvt.s32.f32 %v1118
    %v2143 = vcvt.s32.f32 %v1119
    %v2144 = vcvt.s32.f32 %v1120
    %v2145 = vcvt.s32.f32 %v1121
    %v2146 = vcvt.s32.f32 %v1122
    %v2147 = vcvt.s32.f32 %v1123
    %v2148 = vcvt.s32.f32 %v1124
    %v2149 = vcvt.s32.f32 %v1125
    %v2150 = vcvt.s32.f32 %v1126
    %v2151 = vcvt.s32.f32 %v1127
    %v2152 = vcvt.s32.f32 %v1128
    %v2153 = vcvt.s32.f32 %v1129
    %v2154 = vcvt.s32.f32 %v1130
    %v2155 = vcvt.s32.f32 %v1131
    %v2156 = vcvt.s32.f32 %v1132
    %v2157 = vcvt.s32.f32 %v1133
    %v2158 = vcvt.s32.f32 %v1134
    %v2159 = vcvt.s32.f32 %v1135
    %v2160 = vcvt.s32.f32 %v1136
    %v2161 = vcvt.s32.f32 %v1137
    %v2162 = vcvt.s32.f32 %v1138
    %v2163 = vcvt.s32.f32 %v1139
    %v2164 = vcvt.s32.f32 %v1140
    %v2165 = vcvt.s32.f32 %v1141
    %v2166 = vcvt.s32.f32 %v1142
    %v2167 = vcvt.s32.f32 %v1143
    %v2168 = vcvt.s32.f32 %v1144
    %v2169 = vcvt.s32.f32 %v1145
    %v2170 = vcvt.s32.f32 %v1146
    %v2171 = vcvt.s32.f32 %v1147
    %v2172 = vcvt.s32.f32 %v1148
    %v2173 = vcvt.s32.f32 %v1149
    %v2174 = vcvt.s32.f32 %v1150
    %v2175 = vcvt.s32.f32 %v1151
    %v2176 = vcvt.s32.f32 %v1152
    %v2177 = vcvt.s32.f32 %v1153
    %v2178 = vcvt.s32.f32 %v1154
    %v2179 = vcvt.s32.f32 %v1155
    %v2180 = vcvt.s32.f32 %v1156
    %v2181 = vcvt.s32.f32 %v1157
    %v2182 = vcvt.s32.f32 %v1158
    %v2183 = vcvt.s32.f32 %v1159
    %v2184 = vcvt.s32.f32 %v1160
    %v2185 = vcvt.s32.f32 %v1161
    %v2186 = vcvt.s32.f32 %v1162
    %v2187 = vcvt.s32.f32 %v1163
    %v2188 = vcvt.s32.f32 %v1164
    %v2189 = vcvt.s32.f32 %v1165
    %v2190 = vcvt.s32.f32 %v1166
    %v2191 = vcvt.s32.f32 %v1167
    %v2192 = vcvt.s32.f32 %v1168
    %v2193 = vcvt.s32.f32 %v1169
    %v2194 = vcvt.s32.f32 %v1170
    %v2195 = vcvt.s32.f32 %v1171
    %v2196 = vcvt.s32.f32 %v1172
    %v2197 = vcvt.s32.f32 %v1173
    %v2198 = vcvt.s32.f32 %v1174
    %v2199 = vcvt.s32.f32 %v1175
    %v2200 = vcvt.s32.f32 %v1176
    %v2201 = vcvt.s32.f32 %v1177
    %v2202 = vcvt.s32.f32 %v1178
    %v2203 = vcvt.s32.f32 %v1179
    %v2204 = vcvt.s32.f32 %v1180
    %v2205 = vcvt.s32.f32 %v1181
    %v2206 = vcvt.s32.f32 %v1182
    %v2207 = vcvt.s32.f32 %v1183
    %v2208 = vcvt.s32.f32 %v1184
    %v2209 = vcvt.s32.f32 %v1185
    %v2210 = vcvt.s32.f32 %v1186
    %v2211 = vcvt.s32.f32 %v1187
    %v2212 = vcvt.s32.f32 %v1188
    %v2213 = vcvt.s32.f32 %v1189
    %v2214 = vcvt.s32.f32 %v1190
    %v2215 = vcvt.s32.f32 %v1191
    %v2216 = vcvt.s32.f32 %v1192
    %v2217 = vcvt.s32.f32 %v1193
    %v2218 = vcvt.s32.f32 %v1194
    %v2219 = vcvt.s32.f32 %v1195
    %v2220 = vcvt.s32.f32 %v1196
    %v2221 = vcvt.s32.f32 %v1197
    %v2222 = vcvt.s32.f32 %v1198
    %v2223 = vcvt.s32.f32 %v1199
    %v2224 = vcvt.s32.f32 %v1200
    %v2225 = vcvt.s32.f32 %v1201
    %v2226 = vcvt.s32.f32 %v1202
    %v2227 = vcvt.s32.f32 %v1203
    %v2228 = vcvt.s32.f32 %v1204
    %v2229 = vcvt.s32.f32 %v1205
    %v2230 = vcvt.s32.f32 %v1206
    %v2231 = vcvt.s32.f32 %v1207
    %v2232 = vcvt.s32.f32 %v1208
    %v2233 = vcvt.s32.f32 %v1209
    %v2234 = vcvt.s32.f32 %v1210
    %v2235 = vcvt.s32.f32 %v1211
    %v2236 = vcvt.s32.f32 %v1212
    %v2237 = vcvt.s32.f32 %v1213
    %v2238 = vcvt.s32.f32 %v1214
    %v2239 = vcvt.s32.f32 %v1215
    %v2240 = vcvt.s32.f32 %v1216
    %v2241 = vcvt.s32.f32 %v1217
    %v2242 = vcvt.s32.f32 %v1218
    %v2243 = vcvt.s32.f32 %v1219
    %v2244 = vcvt.s32.f32 %v1220
    %v2245 = vcvt.s32.f32 %v1221
    %v2246 = vcvt.s32.f32 %v1222
    %v2247 = vcvt.s32.f32 %v1223
    %v2248 = vcvt.s32.f32 %v1224
    %v2249 = vcvt.s32.f32 %v1225
    %v2250 = vcvt.s32.f32 %v1226
    %v2251 = vcvt.s32.f32 %v1227
    %v2252 = vcvt.s32.f32 %v1228
    %v2253 = vcvt.s32.f32 %v1229
    %v2254 = vcvt.s32.f32 %v1230
    %v2255 = vcvt.s32.f32 %v1231
    %v2256 = vcvt.s32.f32 %v1232
    %v2257 = vcvt.s32.f32 %v1233
    %v2258 = vcvt.s32.f32 %v1234
    %v2259 = vcvt.s32.f32 %v1235
    %v2260 = vcvt.s32.f32 %v1236
    %v2261 = vcvt.s32.f32 %v1237
    %v2262 = vcvt.s32.f32 %v1238
    %v2263 = vcvt.s32.f32 %v1239
    %v2264 = vcvt.s32.f32 %v1240
    %v2265 = vcvt.s32.f32 %v1241
    %v2266 = vcvt.s32.f32 %v1242
    %v2267 = vcvt.s32.f32 %v1243
    %v2268 = vcvt.s32.f32 %v1244
    %v2269 = vcvt.s32.f32 %v1245
    %v2270 = vcvt.s32.f32 %v1246
    %v2271 = vcvt.s32.f32 %v1247
    %v2272 = vcvt.s32.f32 %v1248
    %v2273 = vcvt.s32.f32 %v1249
    %v2274 = vcvt.s32.f32 %v1250
    %v2275 = vcvt.s32.f32 %v1251
    %v2276 = vcvt.s32.f32 %v1252
    %v2277 = vcvt.s32.f32 %v1253
    %v2278 = vcvt.s32.f32 %v1254
    %v2279 = vcvt.s32.f32 %v1255
    %v2280 = vcvt.s32.f32 %v1256
    %v2281 = vcvt.s32.f32 %v1257
    %v2282 = vcvt.s32.f32 %v1258
    %v2283 = vcvt.s32.f32 %v1259
    %v2284 = vcvt.s32.f32 %v1260
    %v2285 = vcvt.s32.f32 %v1261
    %v2286 = vcvt.s32.f32 %v1262
    %v2287 = vcvt.s32.f32 %v1263
    %v2288 = vcvt.s32.f32 %v1264
    %v2289 = vcvt.s32.f32 %v1265
    %v2290 = vcvt.s32.f32 %v1266
    %v2291 = vcvt.s32.f32 %v1267
    %v2292 = vcvt.s32.f32 %v1268
    %v2293 = vcvt.s32.f32 %v1269
    %v2294 = vcvt.s32.f32 %v1270
    %v2295 = vcvt.s32.f32 %v1271
    %v2296 = vcvt.s32.f32 %v1272
    %v2297 = vcvt.s32.f32 %v1273
    %v2298 = vcvt.s32.f32 %v1274
    %v2299 = vcvt.s32.f32 %v1275
    %v2300 = vcvt.s32.f32 %v1276
    %v2301 = vcvt.s32.f32 %v1277
    %v2302 = vcvt.s32.f32 %v1278
    %v2303 = vcvt.s32.f32 %v1279
    %v2304 = vcvt.s32.f32 %v1280
    %v2305 = vcvt.s32.f32 %v1281
    %v2306 = vcvt.s32.f32 %v1282
    %v2307 = vcvt.s32.f32 %v1283
    %v2308 = vcvt.s32.f32 %v1284
    %v2309 = vcvt.s32.f32 %v1285
    %v2310 = vcvt.s32.f32 %v1286
    %v2311 = vcvt.s32.f32 %v1287
    %v2312 = vcvt.s32.f32 %v1288
    %v2313 = vcvt.s32.f32 %v1289
    %v2314 = vcvt.s32.f32 %v1290
    %v2315 = vcvt.s32.f32 %v1291
    %v2316 = vcvt.s32.f32 %v1292
    %v2317 = vcvt.s32.f32 %v1293
    %v2318 = vcvt.s32.f32 %v1294
    %v2319 = vcvt.s32.f32 %v1295
    %v2320 = vcvt.s32.f32 %v1296
    %v2321 = vcvt.s32.f32 %v1297
    %v2322 = vcvt.s32.f32 %v1298
    %v2323 = vcvt.s32.f32 %v1299
    %v2324 = vcvt.s32.f32 %v1300
    %v2325 = vcvt.s32.f32 %v1301
    %v2326 = vcvt.s32.f32 %v1302
    %v2327 = vcvt.s32.f32 %v1303
    %v2328 = vcvt.s32.f32 %v1304
    %v2329 = vcvt.s32.f32 %v1305
    %v2330 = vcvt.s32.f32 %v1306
    %v2331 = vcvt.s32.f32 %v1307
    %v2332 = vcvt.s32.f32 %v1308
    %v2333 = vcvt.s32.f32 %v1309
    %v2334 = vcvt.s32.f32 %v1310
    %v2335 = vcvt.s32.f32 %v1311
    %v2336 = vcvt.s32.f32 %v1312
    %v2337 = vcvt.s32.f32 %v1313
    %v2338 = vcvt.s32.f32 %v1314
    %v2339 = vcvt.s32.f32 %v1315
    %v2340 = vcvt.s32.f32 %v1316
    %v2341 = vcvt.s32.f32 %v1317
    %v2342 = vcvt.s32.f32 %v1318
    %v2343 = vcvt.s32.f32 %v1319
    %v2344 = vcvt.s32.f32 %v1320
    %v2345 = vcvt.s32.f32 %v1321
    %v2346 = vcvt.s32.f32 %v1322
    %v2347 = vcvt.s32.f32 %v1323
    %v2348 = vcvt.s32.f32 %v1324
    %v2349 = vcvt.s32.f32 %v1325
    %v2350 = vcvt.s32.f32 %v1326
    %v2351 = vcvt.s32.f32 %v1327
    %v2352 = vcvt.s32.f32 %v1328
    %v2353 = vcvt.s32.f32 %v1329
    %v2354 = vcvt.s32.f32 %v1330
    %v2355 = vcvt.s32.f32 %v1331
    %v2356 = vcvt.s32.f32 %v1332
    %v2357 = vcvt.s32.f32 %v1333
    %v2358 = vcvt.s32.f32 %v1334
    %v2359 = vcvt.s32.f32 %v1335
    %v2360 = vcvt.s32.f32 %v1336
    %v2361 = vcvt.s32.f32 %v1337
    %v2362 = vcvt.s32.f32 %v1338
    %v2363 = vcvt.s32.f32 %v1339
    %v2364 = vcvt.s32.f32 %v1340
    %v2365 = vcvt.s32.f32 %v1341
    %v2366 = vcvt.s32.f32 %v1342
    %v2367 = vcvt.s32.f32 %v1343
    %v2368 = vcvt.s32.f32 %v1344
    %v2369 = vcvt.s32.f32 %v1345
    %v2370 = vcvt.s32.f32 %v1346
    %v2371 = vcvt.s32.f32 %v1347
    %v2372 = vcvt.s32.f32 %v1348
    %v2373 = vcvt.s32.f32 %v1349
    %v2374 = vcvt.s32.f32 %v1350
    %v2375 = vcvt.s32.f32 %v1351
    %v2376 = vcvt.s32.f32 %v1352
    %v2377 = vcvt.s32.f32 %v1353
    %v2378 = vcvt.s32.f32 %v1354
    %v2379 = vcvt.s32.f32 %v1355
    %v2380 = vcvt.s32.f32 %v1356
    %v2381 = vcvt.s32.f32 %v1357
    %v2382 = vcvt.s32.f32 %v1358
    %v2383 = vcvt.s32.f32 %v1359
    %v2384 = vcvt.s32.f32 %v1360
    %v2385 = vcvt.s32.f32 %v1361
    %v2386 = vcvt.s32.f32 %v1362
    %v2387 = vcvt.s32.f32 %v1363
    %v2388 = vcvt.s32.f32 %v1364
    %v2389 = vcvt.s32.f32 %v1365
    %v2390 = vcvt.s32.f32 %v1366
    %v2391 = vcvt.s32.f32 %v1367
    %v2392 = vcvt.s32.f32 %v1368
    %v2393 = vcvt.s32.f32 %v1369
    %v2394 = vcvt.s32.f32 %v1370
    %v2395 = vcvt.s32.f32 %v1371
    %v2396 = vcvt.s32.f32 %v1372
    %v2397 = vcvt.s32.f32 %v1373
    %v2398 = vcvt.s32.f32 %v1374
    %v2399 = vcvt.s32.f32 %v1375
    %v2400 = vcvt.s32.f32 %v1376
    %v2401 = vcvt.s32.f32 %v1377
    %v2402 = vcvt.s32.f32 %v1378
    %v2403 = vcvt.s32.f32 %v1379
    %v2404 = vcvt.s32.f32 %v1380
    %v2405 = vcvt.s32.f32 %v1381
    %v2406 = vcvt.s32.f32 %v1382
    %v2407 = vcvt.s32.f32 %v1383
    %v2408 = vcvt.s32.f32 %v1384
    %v2409 = vcvt.s32.f32 %v1385
    %v2410 = vcvt.s32.f32 %v1386
    %v2411 = vcvt.s32.f32 %v1387
    %v2412 = vcvt.s32.f32 %v1388
    %v2413 = vcvt.s32.f32 %v1389
    %v2414 = vcvt.s32.f32 %v1390
    %v2415 = vcvt.s32.f32 %v1391
    %v2416 = vcvt.s32.f32 %v1392
    %v2417 = vcvt.s32.f32 %v1393
    %v2418 = vcvt.s32.f32 %v1394
    %v2419 = vcvt.s32.f32 %v1395
    %v2420 = vcvt.s32.f32 %v1396
    %v2421 = vcvt.s32.f32 %v1397
    %v2422 = vcvt.s32.f32 %v1398
    %v2423 = vcvt.s32.f32 %v1399
    %v2424 = vcvt.s32.f32 %v1400
    %v2425 = vcvt.s32.f32 %v1401
    %v2426 = vcvt.s32.f32 %v1402
    %v2427 = vcvt.s32.f32 %v1403
    %v2428 = vcvt.s32.f32 %v1404
    %v2429 = vcvt.s32.f32 %v1405
    %v2430 = vcvt.s32.f32 %v1406
    %v2431 = vcvt.s32.f32 %v1407
    %v2432 = vcvt.s32.f32 %v1408
    %v2433 = vcvt.s32.f32 %v1409
    %v2434 = vcvt.s32.f32 %v1410
    %v2435 = vcvt.s32.f32 %v1411
    %v2436 = vcvt.s32.f32 %v1412
    %v2437 = vcvt.s32.f32 %v1413
    %v2438 = vcvt.s32.f32 %v1414
    %v2439 = vcvt.s32.f32 %v1415
    %v2440 = vcvt.s32.f32 %v1416
    %v2441 = vcvt.s32.f32 %v1417
    %v2442 = vcvt.s32.f32 %v1418
    %v2443 = vcvt.s32.f32 %v1419
    %v2444 = vcvt.s32.f32 %v1420
    %v2445 = vcvt.s32.f32 %v1421
    %v2446 = vcvt.s32.f32 %v1422
    %v2447 = vcvt.s32.f32 %v1423
    %v2448 = vcvt.s32.f32 %v1424
    %v2449 = vcvt.s32.f32 %v1425
    %v2450 = vcvt.s32.f32 %v1426
    %v2451 = vcvt.s32.f32 %v1427
    %v2452 = vcvt.s32.f32 %v1428
    %v2453 = vcvt.s32.f32 %v1429
    %v2454 = vcvt.s32.f32 %v1430
    %v2455 = vcvt.s32.f32 %v1431
    %v2456 = vcvt.s32.f32 %v1432
    %v2457 = vcvt.s32.f32 %v1433
    %v2458 = vcvt.s32.f32 %v1434
    %v2459 = vcvt.s32.f32 %v1435
    %v2460 = vcvt.s32.f32 %v1436
    %v2461 = vcvt.s32.f32 %v1437
    %v2462 = vcvt.s32.f32 %v1438
    %v2463 = vcvt.s32.f32 %v1439
    %v2464 = vcvt.s32.f32 %v1440
    %v2465 = vcvt.s32.f32 %v1441
    %v2466 = vcvt.s32.f32 %v1442
    %v2467 = vcvt.s32.f32 %v1443
    %v2468 = vcvt.s32.f32 %v1444
    %v2469 = vcvt.s32.f32 %v1445
    %v2470 = vcvt.s32.f32 %v1446
    %v2471 = vcvt.s32.f32 %v1447
    %v2472 = vcvt.s32.f32 %v1448
    %v2473 = vcvt.s32.f32 %v1449
    %v2474 = vcvt.s32.f32 %v1450
    %v2475 = vcvt.s32.f32 %v1451
    %v2476 = vcvt.s32.f32 %v1452
    %v2477 = vcvt.s32.f32 %v1453
    %v2478 = vcvt.s32.f32 %v1454
    %v2479 = vcvt.s32.f32 %v1455
    %v2480 = vcvt.s32.f32 %v1456
    %v2481 = vcvt.s32.f32 %v1457
    %v2482 = vcvt.s32.f32 %v1458
    %v2483 = vcvt.s32.f32 %v1459
    %v2484 = vcvt.s32.f32 %v1460
    %v2485 = vcvt.s32.f32 %v1461
    %v2486 = vcvt.s32.f32 %v1462
    %v2487 = vcvt.s32.f32 %v1463
    %v2488 = vcvt.s32.f32 %v1464
    %v2489 = vcvt.s32.f32 %v1465
    %v2490 = vcvt.s32.f32 %v1466
    %v2491 = vcvt.s32.f32 %v1467
    %v2492 = vcvt.s32.f32 %v1468
    %v2493 = vcvt.s32.f32 %v1469
    %v2494 = vcvt.s32.f32 %v1470
    %v2495 = vcvt.s32.f32 %v1471
    %v2496 = vcvt.s32.f32 %v1472
    %v2497 = vcvt.s32.f32 %v1473
    %v2498 = vcvt.s32.f32 %v1474
    %v2499 = vcvt.s32.f32 %v1475
    %v2500 = vcvt.s32.f32 %v1476
    %v2501 = vcvt.s32.f32 %v1477
    %v2502 = vcvt.s32.f32 %v1478
    %v2503 = vcvt.s32.f32 %v1479
    %v2504 = vcvt.s32.f32 %v1480
    %v2505 = vcvt.s32.f32 %v1481
    %v2506 = vcvt.s32.f32 %v1482
    %v2507 = vcvt.s32.f32 %v1483
    %v2508 = vcvt.s32.f32 %v1484
    %v2509 = vcvt.s32.f32 %v1485
    %v2510 = vcvt.s32.f32 %v1486
    %v2511 = vcvt.s32.f32 %v1487
    %v2512 = vcvt.s32.f32 %v1488
    %v2513 = vcvt.s32.f32 %v1489
    %v2514 = vcvt.s32.f32 %v1490
    %v2515 = vcvt.s32.f32 %v1491
    %v2516 = vcvt.s32.f32 %v1492
    %v2517 = vcvt.s32.f32 %v1493
    %v2518 = vcvt.s32.f32 %v1494
    %v2519 = vcvt.s32.f32 %v1495
    %v2520 = vcvt.s32.f32 %v1496
    %v2521 = vcvt.s32.f32 %v1497
    %v2522 = vcvt.s32.f32 %v1498
    %v2523 = vcvt.s32.f32 %v1499
    %v2524 = vcvt.s32.f32 %v1500
    %v2525 = vcvt.s32.f32 %v1501
    %v2526 = vcvt.s32.f32 %v1502
    %v2527 = vcvt.s32.f32 %v1503
    %v2528 = vcvt.s32.f32 %v1504
    %v2529 = vcvt.s32.f32 %v1505
    %v2530 = vcvt.s32.f32 %v1506
    %v2531 = vcvt.s32.f32 %v1507
    %v2532 = vcvt.s32.f32 %v1508
    %v2533 = vcvt.s32.f32 %v1509
    %v2534 = vcvt.s32.f32 %v1510
    %v2535 = vcvt.s32.f32 %v1511
    %v2536 = vcvt.s32.f32 %v1512
    %v2537 = vcvt.s32.f32 %v1513
    %v2538 = vcvt.s32.f32 %v1514
    %v2539 = vcvt.s32.f32 %v1515
    %v2540 = vcvt.s32.f32 %v1516
    %v2541 = vcvt.s32.f32 %v1517
    %v2542 = vcvt.s32.f32 %v1518
    %v2543 = vcvt.s32.f32 %v1519
    %v2544 = vcvt.s32.f32 %v1520
    %v2545 = vcvt.s32.f32 %v1521
    %v2546 = vcvt.s32.f32 %v1522
    %v2547 = vcvt.s32.f32 %v1523
    %v2548 = vcvt.s32.f32 %v1524
    %v2549 = vcvt.s32.f32 %v1525
    %v2550 = vcvt.s32.f32 %v1526
    %v2551 = vcvt.s32.f32 %v1527
    %v2552 = vcvt.s32.f32 %v1528
    %v2553 = vcvt.s32.f32 %v1529
    %v2554 = vcvt.s32.f32 %v1530
    %v2555 = vcvt.s32.f32 %v1531
    %v2556 = vcvt.s32.f32 %v1532
    %v2557 = vcvt.s32.f32 %v1533
    %v2558 = vcvt.s32.f32 %v1534
    %v2559 = vcvt.s32.f32 %v1535
    %v2560 = vcvt.s32.f32 %v1536
    %v2561 = vcvt.s32.f32 %v1537
    %v2562 = vcvt.s32.f32 %v1538
    %v2563 = vcvt.s32.f32 %v1539
    %v2564 = vcvt.s32.f32 %v1540
    %v2565 = vcvt.s32.f32 %v1541
    %v2566 = vcvt.s32.f32 %v1542
    %v2567 = vcvt.s32.f32 %v1543
    %v2568 = vcvt.s32.f32 %v1544
    %v2569 = vcvt.s32.f32 %v1545
    %v2570 = vcvt.s32.f32 %v1546
    %v2571 = vcvt.s32.f32 %v1547
    %v2572 = vcvt.s32.f32 %v1548
    %v2573 = vcvt.s32.f32 %v1549
    %v2574 = vcvt.s32.f32 %v1550
    %v2575 = vcvt.s32.f32 %v1551
    %v2576 = vcvt.s32.f32 %v1552
    %v2577 = vcvt.s32.f32 %v1553
    %v2578 = vcvt.s32.f32 %v1554
    %v2579 = vcvt.s32.f32 %v1555
    %v2580 = vcvt.s32.f32 %v1556
    %v2581 = vcvt.s32.f32 %v1557
    %v2582 = vcvt.s32.f32 %v1558
    %v2583 = vcvt.s32.f32 %v1559
    %v2584 = vcvt.s32.f32 %v1560
    %v2585 = vcvt.s32.f32 %v1561
    %v2586 = vcvt.s32.f32 %v1562
    %v2587 = vcvt.s32.f32 %v1563
    %v2588 = vcvt.s32.f32 %v1564
    %v2589 = vcvt.s32.f32 %v1565
    %v2590 = vcvt.s32.f32 %v1566
    %v2591 = vcvt.s32.f32 %v1567
    %v2592 = vcvt.s32.f32 %v1568
    %v2593 = vcvt.s32.f32 %v1569
    %v2594 = vcvt.s32.f32 %v1570
    %v2595 = vcvt.s32.f32 %v1571
    %v2596 = vcvt.s32.f32 %v1572
    %v2597 = vcvt.s32.f32 %v1573
    %v2598 = vcvt.s32.f32 %v1574
    %v2599 = vcvt.s32.f32 %v1575
    %v2600 = vcvt.s32.f32 %v1576
    %v2601 = vcvt.s32.f32 %v1577
    %v2602 = vcvt.s32.f32 %v1578
    %v2603 = vcvt.s32.f32 %v1579
    %v2604 = vcvt.s32.f32 %v1580
    %v2605 = vcvt.s32.f32 %v1581
    %v2606 = vcvt.s32.f32 %v1582
    %v2607 = vcvt.s32.f32 %v1583
    %v2608 = vcvt.s32.f32 %v1584
    %v2609 = vcvt.s32.f32 %v1585
    %v2610 = vcvt.s32.f32 %v1586
    %v2611 = vcvt.s32.f32 %v1587
    %v2612 = vcvt.s32.f32 %v1588
    %v2613 = vcvt.s32.f32 %v1589
    %v2614 = vcvt.s32.f32 %v1590
    %v2615 = vcvt.s32.f32 %v1591
    %v2616 = vcvt.s32.f32 %v1592
    %v2617 = vcvt.s32.f32 %v1593
    %v2618 = vcvt.s32.f32 %v1594
    %v2619 = vcvt.s32.f32 %v1595
    %v2620 = vcvt.s32.f32 %v1596
    %v2621 = vcvt.s32.f32 %v1597
    %v2622 = vcvt.s32.f32 %v1598
    %v2623 = vcvt.s32.f32 %v1599
    %v2624 = vcvt.s32.f32 %v1600
    %v2625 = vcvt.s32.f32 %v1601
    %v2626 = vcvt.s32.f32 %v1602
    %v2627 = vcvt.s32.f32 %v1603
    %v2628 = vcvt.s32.f32 %v1604
    %v2629 = vcvt.s32.f32 %v1605
    %v2630 = vcvt.s32.f32 %v1606
    %v2631 = vcvt.s32.f32 %v1607
    %v2632 = vcvt.s32.f32 %v1608
    %v2633 = vcvt.s32.f32 %v1609
    %v2634 = vcvt.s32.f32 %v1610
    %v2635 = vcvt.s32.f32 %v1611
    %v2636 = vcvt.s32.f32 %v1612
    %v2637 = vcvt.s32.f32 %v1613
    %v2638 = vcvt.s32.f32 %v1614
    %v2639 = vcvt.s32.f32 %v1615
    %v2640 = vcvt.s32.f32 %v1616
    %v2641 = vcvt.s32.f32 %v1617
    %v2642 = vcvt.s32.f32 %v1618
    %v2643 = vcvt.s32.f32 %v1619
    %v2644 = vcvt.s32.f32 %v1620
    %v2645 = vcvt.s32.f32 %v1621
    %v2646 = vcvt.s32.f32 %v1622
    %v2647 = vcvt.s32.f32 %v1623
    %v2648 = vcvt.s32.f32 %v1624
    %v2649 = vcvt.s32.f32 %v1625
    %v2650 = vcvt.s32.f32 %v1626
    %v2651 = vcvt.s32.f32 %v1627
    %v2652 = vcvt.s32.f32 %v1628
    %v2653 = vcvt.s32.f32 %v1629
    %v2654 = vcvt.s32.f32 %v1630
    %v2655 = vcvt.s32.f32 %v1631
    %v2656 = vcvt.s32.f32 %v1632
    %v2657 = vcvt.s32.f32 %v1633
    %v2658 = vcvt.s32.f32 %v1634
    %v2659 = vcvt.s32.f32 %v1635
    %v2660 = vcvt.s32.f32 %v1636
    %v2661 = vcvt.s32.f32 %v1637
    %v2662 = vcvt.s32.f32 %v1638
    %v2663 = vcvt.s32.f32 %v1639
    %v2664 = vcvt.s32.f32 %v1640
    %v2665 = vcvt.s32.f32 %v1641
    %v2666 = vcvt.s32.f32 %v1642
    %v2667 = vcvt.s32.f32 %v1643
    %v2668 = vcvt.s32.f32 %v1644
    %v2669 = vcvt.s32.f32 %v1645
    %v2670 = vcvt.s32.f32 %v1646
    %v2671 = vcvt.s32.f32 %v1647
    %v2672 = vcvt.s32.f32 %v1648
    %v2673 = vcvt.s32.f32 %v1649
    %v2674 = vcvt.s32.f32 %v1650
    %v2675 = vcvt.s32.f32 %v1651
    %v2676 = vcvt.s32.f32 %v1652
    %v2677 = vcvt.s32.f32 %v1653
    %v2678 = vcvt.s32.f32 %v1654
    %v2679 = vcvt.s32.f32 %v1655
    %v2680 = vcvt.s32.f32 %v1656
    %v2681 = vcvt.s32.f32 %v1657
    %v2682 = vcvt.s32.f32 %v1658
    %v2683 = vcvt.s32.f32 %v1659
    %v2684 = vcvt.s32.f32 %v1660
    %v2685 = vcvt.s32.f32 %v1661
    %v2686 = vcvt.s32.f32 %v1662
    %v2687 = vcvt.s32.f32 %v1663
    %v2688 = vcvt.s32.f32 %v1664
    %v2689 = vcvt.s32.f32 %v1665
    %v2690 = vcvt.s32.f32 %v1666
    %v2691 = vcvt.s32.f32 %v1667
    %v2692 = vcvt.s32.f32 %v1668
    %v2693 = vcvt.s32.f32 %v1669
    %v2694 = vcvt.s32.f32 %v1670
    %v2695 = vcvt.s32.f32 %v1671
    %v2696 = vcvt.s32.f32 %v1672
    %v2697 = vcvt.s32.f32 %v1673
    %v2698 = vcvt.s32.f32 %v1674
    %v2699 = vcvt.s32.f32 %v1675
    %v2700 = vcvt.s32.f32 %v1676
    %v2701 = vcvt.s32.f32 %v1677
    %v2702 = vcvt.s32.f32 %v1678
    %v2703 = vcvt.s32.f32 %v1679
    %v2704 = vcvt.s32.f32 %v1680
    %v2705 = vcvt.s32.f32 %v1681
    %v2706 = vcvt.s32.f32 %v1682
    %v2707 = vcvt.s32.f32 %v1683
    %v2708 = vcvt.s32.f32 %v1684
    %v2709 = vcvt.s32.f32 %v1685
    %v2710 = vcvt.s32.f32 %v1686
    %v2711 = vcvt.s32.f32 %v1687
    %v2712 = vcvt.s32.f32 %v1688
    %v2713 = vcvt.s32.f32 %v1689
    %v2714 = vcvt.s32.f32 %v1690
    %v2715 = vcvt.s32.f32 %v1691
    %v2716 = vcvt.s32.f32 %v1692
    %v2717 = vcvt.s32.f32 %v1693
    %v2718 = vcvt.s32.f32 %v1694
    %v2719 = vcvt.s32.f32 %v1695
    %v2720 = vcvt.s32.f32 %v1696
    %v2721 = vcvt.s32.f32 %v1697
    %v2722 = vcvt.s32.f32 %v1698
    %v2723 = vcvt.s32.f32 %v1699
    %v2724 = vcvt.s32.f32 %v1700
    %v2725 = vcvt.s32.f32 %v1701
    %v2726 = vcvt.s32.f32 %v1702
    %v2727 = vcvt.s32.f32 %v1703
    %v2728 = vcvt.s32.f32 %v1704
    %v2729 = vcvt.s32.f32 %v1705
    %v2730 = vcvt.s32.f32 %v1706
    %v2731 = vcvt.s32.f32 %v1707
    %v2732 = vcvt.s32.f32 %v1708
    %v2733 = vcvt.s32.f32 %v1709
    %v2734 = vcvt.s32.f32 %v1710
    %v2735 = vcvt.s32.f32 %v1711
    %v2736 = vcvt.s32.f32 %v1712
    %v2737 = vcvt.s32.f32 %v1713
    %v2738 = vcvt.s32.f32 %v1714
    %v2739 = vcvt.s32.f32 %v1715
    %v2740 = vcvt.s32.f32 %v1716
    %v2741 = vcvt.s32.f32 %v1717
    %v2742 = vcvt.s32.f32 %v1718
    %v2743 = vcvt.s32.f32 %v1719
    %v2744 = vcvt.s32.f32 %v1720
    %v2745 = vcvt.s32.f32 %v1721
    %v2746 = vcvt.s32.f32 %v1722
    %v2747 = vcvt.s32.f32 %v1723
    %v2748 = vcvt.s32.f32 %v1724
    %v2749 = vcvt.s32.f32 %v1725
    %v2750 = vcvt.s32.f32 %v1726
    %v2751 = vcvt.s32.f32 %v1727
    %v2752 = vcvt.s32.f32 %v1728
    %v2753 = vcvt.s32.f32 %v1729
    %v2754 = vcvt.s32.f32 %v1730
    %v2755 = vcvt.s32.f32 %v1731
    %v2756 = vcvt.s32.f32 %v1732
    %v2757 = vcvt.s32.f32 %v1733
    %v2758 = vcvt.s32.f32 %v1734
    %v2759 = vcvt.s32.f32 %v1735
    %v2760 = vcvt.s32.f32 %v1736
    %v2761 = vcvt.s32.f32 %v1737
    %v2762 = vcvt.s32.f32 %v1738
    %v2763 = vcvt.s32.f32 %v1739
    %v2764 = vcvt.s32.f32 %v1740
    %v2765 = vcvt.s32.f32 %v1741
    %v2766 = vcvt.s32.f32 %v1742
    %v2767 = vcvt.s32.f32 %v1743
    %v2768 = vcvt.s32.f32 %v1744
    %v2769 = vcvt.s32.f32 %v1745
    %v2770 = vcvt.s32.f32 %v1746
    %v2771 = vcvt.s32.f32 %v1747
    %v2772 = vcvt.s32.f32 %v1748
    %v2773 = vcvt.s32.f32 %v1749
    %v2774 = vcvt.s32.f32 %v1750
    %v2775 = vcvt.s32.f32 %v1751
    %v2776 = vcvt.s32.f32 %v1752
    %v2777 = vcvt.s32.f32 %v1753
    %v2778 = vcvt.s32.f32 %v1754
    %v2779 = vcvt.s32.f32 %v1755
    %v2780 = vcvt.s32.f32 %v1756
    %v2781 = vcvt.s32.f32 %v1757
    %v2782 = vcvt.s32.f32 %v1758
    %v2783 = vcvt.s32.f32 %v1759
    %v2784 = vcvt.s32.f32 %v1760
    %v2785 = vcvt.s32.f32 %v1761
    %v2786 = vcvt.s32.f32 %v1762
    %v2787 = vcvt.s32.f32 %v1763
    %v2788 = vcvt.s32.f32 %v1764
    %v2789 = vcvt.s32.f32 %v1765
    %v2790 = vcvt.s32.f32 %v1766
    %v2791 = vcvt.s32.f32 %v1767
    %v2792 = vcvt.s32.f32 %v1768
    %v2793 = vcvt.s32.f32 %v1769
    %v2794 = vcvt.s32.f32 %v1770
    %v2795 = vcvt.s32.f32 %v1771
    %v2796 = vcvt.s32.f32 %v1772
    %v2797 = vcvt.s32.f32 %v1773
    %v2798 = vcvt.s32.f32 %v1774
    %v2799 = vcvt.s32.f32 %v1775
    %v2800 = vcvt.s32.f32 %v1776
    %v2801 = vcvt.s32.f32 %v1777
    %v2802 = vcvt.s32.f32 %v1778
    %v2803 = vcvt.s32.f32 %v1779
    %v2804 = vcvt.s32.f32 %v1780
    %v2805 = vcvt.s32.f32 %v1781
    %v2806 = vcvt.s32.f32 %v1782
    %v2807 = vcvt.s32.f32 %v1783
    %v2808 = vcvt.s32.f32 %v1784
    %v2809 = vcvt.s32.f32 %v1785
    %v2810 = vcvt.s32.f32 %v1786
    %v2811 = vcvt.s32.f32 %v1787
    %v2812 = vcvt.s32.f32 %v1788
    %v2813 = vcvt.s32.f32 %v1789
    %v2814 = vcvt.s32.f32 %v1790
    %v2815 = vcvt.s32.f32 %v1791
    %v2816 = vcvt.s32.f32 %v1792
    %v2817 = vcvt.s32.f32 %v1793
    %v2818 = vcvt.s32.f32 %v1794
    %v2819 = vcvt.s32.f32 %v1795
    %v2820 = vcvt.s32.f32 %v1796
    %v2821 = vcvt.s32.f32 %v1797
    %v2822 = vcvt.s32.f32 %v1798
    %v2823 = vcvt.s32.f32 %v1799
    %v2824 = vcvt.s32.f32 %v1800
    %v2825 = vcvt.s32.f32 %v1801
    %v2826 = vcvt.s32.f32 %v1802
    %v2827 = vcvt.s32.f32 %v1803
    %v2828 = vcvt.s32.f32 %v1804
    %v2829 = vcvt.s32.f32 %v1805
    %v2830 = vcvt.s32.f32 %v1806
    %v2831 = vcvt.s32.f32 %v1807
    %v2832 = vcvt.s32.f32 %v1808
    %v2833 = vcvt.s32.f32 %v1809
    %v2834 = vcvt.s32.f32 %v1810
    %v2835 = vcvt.s32.f32 %v1811
    %v2836 = vcvt.s32.f32 %v1812
    %v2837 = vcvt.s32.f32 %v1813
    %v2838 = vcvt.s32.f32 %v1814
    %v2839 = vcvt.s32.f32 %v1815
    %v2840 = vcvt.s32.f32 %v1816
    %v2841 = vcvt.s32.f32 %v1817
    %v2842 = vcvt.s32.f32 %v1818
    %v2843 = vcvt.s32.f32 %v1819
    %v2844 = vcvt.s32.f32 %v1820
    %v2845 = vcvt.s32.f32 %v1821
    %v2846 = vcvt.s32.f32 %v1822
    %v2847 = vcvt.s32.f32 %v1823
    %v2848 = vcvt.s32.f32 %v1824
    %v2849 = vcvt.s32.f32 %v1825
    %v2850 = vcvt.s32.f32 %v1826
    %v2851 = vcvt.s32.f32 %v1827
    %v2852 = vcvt.s32.f32 %v1828
    %v2853 = vcvt.s32.f32 %v1829
    %v2854 = vcvt.s32.f32 %v1830
    %v2855 = vcvt.s32.f32 %v1831
    %v2856 = vcvt.s32.f32 %v1832
    %v2857 = vcvt.s32.f32 %v1833
    %v2858 = vcvt.s32.f32 %v1834
    %v2859 = vcvt.s32.f32 %v1835
    %v2860 = vcvt.s32.f32 %v1836
    %v2861 = vcvt.s32.f32 %v1837
    %v2862 = vcvt.s32.f32 %v1838
    %v2863 = vcvt.s32.f32 %v1839
    %v2864 = vcvt.s32.f32 %v1840
    %v2865 = vcvt.s32.f32 %v1841
    %v2866 = vcvt.s32.f32 %v1842
    %v2867 = vcvt.s32.f32 %v1843
    %v2868 = vcvt.s32.f32 %v1844
    %v2869 = vcvt.s32.f32 %v1845
    %v2870 = vcvt.s32.f32 %v1846
    %v2871 = vcvt.s32.f32 %v1847
    %v2872 = vcvt.s32.f32 %v1848
    %v2873 = vcvt.s32.f32 %v1849
    %v2874 = vcvt.s32.f32 %v1850
    %v2875 = vcvt.s32.f32 %v1851
    %v2876 = vcvt.s32.f32 %v1852
    %v2877 = vcvt.s32.f32 %v1853
    %v2878 = vcvt.s32.f32 %v1854
    %v2879 = vcvt.s32.f32 %v1855
    %v2880 = vcvt.s32.f32 %v1856
    %v2881 = vcvt.s32.f32 %v1857
    %v2882 = vcvt.s32.f32 %v1858
    %v2883 = vcvt.s32.f32 %v1859
    %v2884 = vcvt.s32.f32 %v1860
    %v2885 = vcvt.s32.f32 %v1861
    %v2886 = vcvt.s32.f32 %v1862
    %v2887 = vcvt.s32.f32 %v1863
    %v2888 = vcvt.s32.f32 %v1864
    %v2889 = vcvt.s32.f32 %v1865
    %v2890 = vcvt.s32.f32 %v1866
    %v2891 = vcvt.s32.f32 %v1867
    %v2892 = vcvt.s32.f32 %v1868
    %v2893 = vcvt.s32.f32 %v1869
    %v2894 = vcvt.s32.f32 %v1870
    %v2895 = vcvt.s32.f32 %v1871
    %v2896 = vcvt.s32.f32 %v1872
    %v2897 = vcvt.s32.f32 %v1873
    %v2898 = vcvt.s32.f32 %v1874
    %v2899 = vcvt.s32.f32 %v1875
    %v2900 = vcvt.s32.f32 %v1876
    %v2901 = vcvt.s32.f32 %v1877
    %v2902 = vcvt.s32.f32 %v1878
    %v2903 = vcvt.s32.f32 %v1879
    %v2904 = vcvt.s32.f32 %v1880
    %v2905 = vcvt.s32.f32 %v1881
    %v2906 = vcvt.s32.f32 %v1882
    %v2907 = vcvt.s32.f32 %v1883
    %v2908 = vcvt.s32.f32 %v1884
    %v2909 = vcvt.s32.f32 %v1885
    %v2910 = vcvt.s32.f32 %v1886
    %v2911 = vcvt.s32.f32 %v1887
    %v2912 = vcvt.s32.f32 %v1888
    %v2913 = vcvt.s32.f32 %v1889
    %v2914 = vcvt.s32.f32 %v1890
    %v2915 = vcvt.s32.f32 %v1891
    %v2916 = vcvt.s32.f32 %v1892
    %v2917 = vcvt.s32.f32 %v1893
    %v2918 = vcvt.s32.f32 %v1894
    %v2919 = vcvt.s32.f32 %v1895
    %v2920 = vcvt.s32.f32 %v1896
    %v2921 = vcvt.s32.f32 %v1897
    %v2922 = vcvt.s32.f32 %v1898
    %v2923 = vcvt.s32.f32 %v1899
    %v2924 = vcvt.s32.f32 %v1900
    %v2925 = vcvt.s32.f32 %v1901
    %v2926 = vcvt.s32.f32 %v1902
    %v2927 = vcvt.s32.f32 %v1903
    %v2928 = vcvt.s32.f32 %v1904
    %v2929 = vcvt.s32.f32 %v1905
    %v2930 = vcvt.s32.f32 %v1906
    %v2931 = vcvt.s32.f32 %v1907
    %v2932 = vcvt.s32.f32 %v1908
    %v2933 = vpack.c.bf16 %v1913, %v1909
    %v2934 = vpack.c.bf16 %v1914, %v1910
    %v2935 = vpack.c.bf16 %v1915, %v1911
    %v2936 = vpack.c.bf16 %v1916, %v1912
    %v2937 = vpack.c.bf16 %v1921, %v1917
    %v2938 = vpack.c.bf16 %v1922, %v1918
    %v2939 = vpack.c.bf16 %v1923, %v1919
    %v2940 = vpack.c.bf16 %v1924, %v1920
    %v2941 = vpack.c.bf16 %v1929, %v1925
    %v2942 = vpack.c.bf16 %v1930, %v1926
    %v2943 = vpack.c.bf16 %v1931, %v1927
    %v2944 = vpack.c.bf16 %v1932, %v1928
    %v2945 = vpack.c.bf16 %v1937, %v1933
    %v2946 = vpack.c.bf16 %v1938, %v1934
    %v2947 = vpack.c.bf16 %v1939, %v1935
    %v2948 = vpack.c.bf16 %v1940, %v1936
    %v2949 = vpack.c.bf16 %v1945, %v1941
    %v2950 = vpack.c.bf16 %v1946, %v1942
    %v2951 = vpack.c.bf16 %v1947, %v1943
    %v2952 = vpack.c.bf16 %v1948, %v1944
    %v2953 = vpack.c.bf16 %v1953, %v1949
    %v2954 = vpack.c.bf16 %v1954, %v1950
    %v2955 = vpack.c.bf16 %v1955, %v1951
    %v2956 = vpack.c.bf16 %v1956, %v1952
    %v2957 = vpack.c.bf16 %v1961, %v1957
    %v2958 = vpack.c.bf16 %v1962, %v1958
    %v2959 = vpack.c.bf16 %v1963, %v1959
    %v2960 = vpack.c.bf16 %v1964, %v1960
    %v2961 = vpack.c.bf16 %v1969, %v1965
    %v2962 = vpack.c.bf16 %v1970, %v1966
    %v2963 = vpack.c.bf16 %v1971, %v1967
    %v2964 = vpack.c.bf16 %v1972, %v1968
    %v2965 = vpack.c.bf16 %v1977, %v1973
    %v2966 = vpack.c.bf16 %v1978, %v1974
    %v2967 = vpack.c.bf16 %v1979, %v1975
    %v2968 = vpack.c.bf16 %v1980, %v1976
    %v2969 = vpack.c.bf16 %v1985, %v1981
    %v2970 = vpack.c.bf16 %v1986, %v1982
    %v2971 = vpack.c.bf16 %v1987, %v1983
    %v2972 = vpack.c.bf16 %v1988, %v1984
    %v2973 = vpack.c.bf16 %v1993, %v1989
    %v2974 = vpack.c.bf16 %v1994, %v1990
    %v2975 = vpack.c.bf16 %v1995, %v1991
    %v2976 = vpack.c.bf16 %v1996, %v1992
    %v2977 = vpack.c.bf16 %v2001, %v1997
    %v2978 = vpack.c.bf16 %v2002, %v1998
    %v2979 = vpack.c.bf16 %v2003, %v1999
    %v2980 = vpack.c.bf16 %v2004, %v2000
    %v2981 = vpack.c.bf16 %v2009, %v2005
    %v2982 = vpack.c.bf16 %v2010, %v2006
    %v2983 = vpack.c.bf16 %v2011, %v2007
    %v2984 = vpack.c.bf16 %v2012, %v2008
    %v2985 = vpack.c.bf16 %v2017, %v2013
    %v2986 = vpack.c.bf16 %v2018, %v2014
    %v2987 = vpack.c.bf16 %v2019, %v2015
    %v2988 = vpack.c.bf16 %v2020, %v2016
    %v2989 = vpack.c.bf16 %v2025, %v2021
    %v2990 = vpack.c.bf16 %v2026, %v2022
    %v2991 = vpack.c.bf16 %v2027, %v2023
    %v2992 = vpack.c.bf16 %v2028, %v2024
    %v2993 = vpack.c.bf16 %v2033, %v2029
    %v2994 = vpack.c.bf16 %v2034, %v2030
    %v2995 = vpack.c.bf16 %v2035, %v2031
    %v2996 = vpack.c.bf16 %v2036, %v2032
    %v2997 = vpack.c.bf16 %v2041, %v2037
    %v2998 = vpack.c.bf16 %v2042, %v2038
    %v2999 = vpack.c.bf16 %v2043, %v2039
    %v3000 = vpack.c.bf16 %v2044, %v2040
    %v3001 = vpack.c.bf16 %v2049, %v2045
    %v3002 = vpack.c.bf16 %v2050, %v2046
    %v3003 = vpack.c.bf16 %v2051, %v2047
    %v3004 = vpack.c.bf16 %v2052, %v2048
    %v3005 = vpack.c.bf16 %v2057, %v2053
    %v3006 = vpack.c.bf16 %v2058, %v2054
    %v3007 = vpack.c.bf16 %v2059, %v2055
    %v3008 = vpack.c.bf16 %v2060, %v2056
    %v3009 = vpack.c.bf16 %v2065, %v2061
    %v3010 = vpack.c.bf16 %v2066, %v2062
    %v3011 = vpack.c.bf16 %v2067, %v2063
    %v3012 = vpack.c.bf16 %v2068, %v2064
    %v3013 = vpack.c.bf16 %v2073, %v2069
    %v3014 = vpack.c.bf16 %v2074, %v2070
    %v3015 = vpack.c.bf16 %v2075, %v2071
    %v3016 = vpack.c.bf16 %v2076, %v2072
    %v3017 = vpack.c.bf16 %v2081, %v2077
    %v3018 = vpack.c.bf16 %v2082, %v2078
    %v3019 = vpack.c.bf16 %v2083, %v2079
    %v3020 = vpack.c.bf16 %v2084, %v2080
    %v3021 = vpack.c.bf16 %v2089, %v2085
    %v3022 = vpack.c.bf16 %v2090, %v2086
    %v3023 = vpack.c.bf16 %v2091, %v2087
    %v3024 = vpack.c.bf16 %v2092, %v2088
    %v3025 = vpack.c.bf16 %v2097, %v2093
    %v3026 = vpack.c.bf16 %v2098, %v2094
    %v3027 = vpack.c.bf16 %v2099, %v2095
    %v3028 = vpack.c.bf16 %v2100, %v2096
    %v3029 = vpack.c.bf16 %v2105, %v2101
    %v3030 = vpack.c.bf16 %v2106, %v2102
    %v3031 = vpack.c.bf16 %v2107, %v2103
    %v3032 = vpack.c.bf16 %v2108, %v2104
    %v3033 = vpack.c.bf16 %v2113, %v2109
    %v3034 = vpack.c.bf16 %v2114, %v2110
    %v3035 = vpack.c.bf16 %v2115, %v2111
    %v3036 = vpack.c.bf16 %v2116, %v2112
    %v3037 = vpack.c.bf16 %v2121, %v2117
    %v3038 = vpack.c.bf16 %v2122, %v2118
    %v3039 = vpack.c.bf16 %v2123, %v2119
    %v3040 = vpack.c.bf16 %v2124, %v2120
    %v3041 = vpack.c.bf16 %v2129, %v2125
    %v3042 = vpack.c.bf16 %v2130, %v2126
    %v3043 = vpack.c.bf16 %v2131, %v2127
    %v3044 = vpack.c.bf16 %v2132, %v2128
    %v3045 = vpack.c.bf16 %v2137, %v2133
    %v3046 = vpack.c.bf16 %v2138, %v2134
    %v3047 = vpack.c.bf16 %v2139, %v2135
    %v3048 = vpack.c.bf16 %v2140, %v2136
    %v3049 = vpack.c.bf16 %v2145, %v2141
    %v3050 = vpack.c.bf16 %v2146, %v2142
    %v3051 = vpack.c.bf16 %v2147, %v2143
    %v3052 = vpack.c.bf16 %v2148, %v2144
    %v3053 = vpack.c.bf16 %v2153, %v2149
    %v3054 = vpack.c.bf16 %v2154, %v2150
    %v3055 = vpack.c.bf16 %v2155, %v2151
    %v3056 = vpack.c.bf16 %v2156, %v2152
    %v3057 = vpack.c.bf16 %v2161, %v2157
    %v3058 = vpack.c.bf16 %v2162, %v2158
    %v3059 = vpack.c.bf16 %v2163, %v2159
    %v3060 = vpack.c.bf16 %v2164, %v2160
    %v3061 = vpack.c.bf16 %v2169, %v2165
    %v3062 = vpack.c.bf16 %v2170, %v2166
    %v3063 = vpack.c.bf16 %v2171, %v2167
    %v3064 = vpack.c.bf16 %v2172, %v2168
    %v3065 = vpack.c.bf16 %v2177, %v2173
    %v3066 = vpack.c.bf16 %v2178, %v2174
    %v3067 = vpack.c.bf16 %v2179, %v2175
    %v3068 = vpack.c.bf16 %v2180, %v2176
    %v3069 = vpack.c.bf16 %v2185, %v2181
    %v3070 = vpack.c.bf16 %v2186, %v2182
    %v3071 = vpack.c.bf16 %v2187, %v2183
    %v3072 = vpack.c.bf16 %v2188, %v2184
    %v3073 = vpack.c.bf16 %v2193, %v2189
    %v3074 = vpack.c.bf16 %v2194, %v2190
    %v3075 = vpack.c.bf16 %v2195, %v2191
    %v3076 = vpack.c.bf16 %v2196, %v2192
    %v3077 = vpack.c.bf16 %v2201, %v2197
    %v3078 = vpack.c.bf16 %v2202, %v2198
    %v3079 = vpack.c.bf16 %v2203, %v2199
    %v3080 = vpack.c.bf16 %v2204, %v2200
    %v3081 = vpack.c.bf16 %v2209, %v2205
    %v3082 = vpack.c.bf16 %v2210, %v2206
    %v3083 = vpack.c.bf16 %v2211, %v2207
    %v3084 = vpack.c.bf16 %v2212, %v2208
    %v3085 = vpack.c.bf16 %v2217, %v2213
    %v3086 = vpack.c.bf16 %v2218, %v2214
    %v3087 = vpack.c.bf16 %v2219, %v2215
    %v3088 = vpack.c.bf16 %v2220, %v2216
    %v3089 = vpack.c.bf16 %v2225, %v2221
    %v3090 = vpack.c.bf16 %v2226, %v2222
    %v3091 = vpack.c.bf16 %v2227, %v2223
    %v3092 = vpack.c.bf16 %v2228, %v2224
    %v3093 = vpack.c.bf16 %v2233, %v2229
    %v3094 = vpack.c.bf16 %v2234, %v2230
    %v3095 = vpack.c.bf16 %v2235, %v2231
    %v3096 = vpack.c.bf16 %v2236, %v2232
    %v3097 = vpack.c.bf16 %v2241, %v2237
    %v3098 = vpack.c.bf16 %v2242, %v2238
    %v3099 = vpack.c.bf16 %v2243, %v2239
    %v3100 = vpack.c.bf16 %v2244, %v2240
    %v3101 = vpack.c.bf16 %v2249, %v2245
    %v3102 = vpack.c.bf16 %v2250, %v2246
    %v3103 = vpack.c.bf16 %v2251, %v2247
    %v3104 = vpack.c.bf16 %v2252, %v2248
    %v3105 = vpack.c.bf16 %v2257, %v2253
    %v3106 = vpack.c.bf16 %v2258, %v2254
    %v3107 = vpack.c.bf16 %v2259, %v2255
    %v3108 = vpack.c.bf16 %v2260, %v2256
    %v3109 = vpack.c.bf16 %v2265, %v2261
    %v3110 = vpack.c.bf16 %v2266, %v2262
    %v3111 = vpack.c.bf16 %v2267, %v2263
    %v3112 = vpack.c.bf16 %v2268, %v2264
    %v3113 = vpack.c.bf16 %v2273, %v2269
    %v3114 = vpack.c.bf16 %v2274, %v2270
    %v3115 = vpack.c.bf16 %v2275, %v2271
    %v3116 = vpack.c.bf16 %v2276, %v2272
    %v3117 = vpack.c.bf16 %v2281, %v2277
    %v3118 = vpack.c.bf16 %v2282, %v2278
    %v3119 = vpack.c.bf16 %v2283, %v2279
    %v3120 = vpack.c.bf16 %v2284, %v2280
    %v3121 = vpack.c.bf16 %v2289, %v2285
    %v3122 = vpack.c.bf16 %v2290, %v2286
    %v3123 = vpack.c.bf16 %v2291, %v2287
    %v3124 = vpack.c.bf16 %v2292, %v2288
    %v3125 = vpack.c.bf16 %v2297, %v2293
    %v3126 = vpack.c.bf16 %v2298, %v2294
    %v3127 = vpack.c.bf16 %v2299, %v2295
    %v3128 = vpack.c.bf16 %v2300, %v2296
    %v3129 = vpack.c.bf16 %v2305, %v2301
    %v3130 = vpack.c.bf16 %v2306, %v2302
    %v3131 = vpack.c.bf16 %v2307, %v2303
    %v3132 = vpack.c.bf16 %v2308, %v2304
    %v3133 = vpack.c.bf16 %v2313, %v2309
    %v3134 = vpack.c.bf16 %v2314, %v2310
    %v3135 = vpack.c.bf16 %v2315, %v2311
    %v3136 = vpack.c.bf16 %v2316, %v2312
    %v3137 = vpack.c.bf16 %v2321, %v2317
    %v3138 = vpack.c.bf16 %v2322, %v2318
    %v3139 = vpack.c.bf16 %v2323, %v2319
    %v3140 = vpack.c.bf16 %v2324, %v2320
    %v3141 = vpack.c.bf16 %v2329, %v2325
    %v3142 = vpack.c.bf16 %v2330, %v2326
    %v3143 = vpack.c.bf16 %v2331, %v2327
    %v3144 = vpack.c.bf16 %v2332, %v2328
    %v3145 = vpack.c.bf16 %v2337, %v2333
    %v3146 = vpack.c.bf16 %v2338, %v2334
    %v3147 = vpack.c.bf16 %v2339, %v2335
    %v3148 = vpack.c.bf16 %v2340, %v2336
    %v3149 = vpack.c.bf16 %v2345, %v2341
    %v3150 = vpack.c.bf16 %v2346, %v2342
    %v3151 = vpack.c.bf16 %v2347, %v2343
    %v3152 = vpack.c.bf16 %v2348, %v2344
    %v3153 = vpack.c.bf16 %v2353, %v2349
    %v3154 = vpack.c.bf16 %v2354, %v2350
    %v3155 = vpack.c.bf16 %v2355, %v2351
    %v3156 = vpack.c.bf16 %v2356, %v2352
    %v3157 = vpack.c.bf16 %v2361, %v2357
    %v3158 = vpack.c.bf16 %v2362, %v2358
    %v3159 = vpack.c.bf16 %v2363, %v2359
    %v3160 = vpack.c.bf16 %v2364, %v2360
    %v3161 = vpack.c.bf16 %v2369, %v2365
    %v3162 = vpack.c.bf16 %v2370, %v2366
    %v3163 = vpack.c.bf16 %v2371, %v2367
    %v3164 = vpack.c.bf16 %v2372, %v2368
    %v3165 = vpack.c.bf16 %v2377, %v2373
    %v3166 = vpack.c.bf16 %v2378, %v2374
    %v3167 = vpack.c.bf16 %v2379, %v2375
    %v3168 = vpack.c.bf16 %v2380, %v2376
    %v3169 = vpack.c.bf16 %v2385, %v2381
    %v3170 = vpack.c.bf16 %v2386, %v2382
    %v3171 = vpack.c.bf16 %v2387, %v2383
    %v3172 = vpack.c.bf16 %v2388, %v2384
    %v3173 = vpack.c.bf16 %v2393, %v2389
    %v3174 = vpack.c.bf16 %v2394, %v2390
    %v3175 = vpack.c.bf16 %v2395, %v2391
    %v3176 = vpack.c.bf16 %v2396, %v2392
    %v3177 = vpack.c.bf16 %v2401, %v2397
    %v3178 = vpack.c.bf16 %v2402, %v2398
    %v3179 = vpack.c.bf16 %v2403, %v2399
    %v3180 = vpack.c.bf16 %v2404, %v2400
    %v3181 = vpack.c.bf16 %v2409, %v2405
    %v3182 = vpack.c.bf16 %v2410, %v2406
    %v3183 = vpack.c.bf16 %v2411, %v2407
    %v3184 = vpack.c.bf16 %v2412, %v2408
    %v3185 = vpack.c.bf16 %v2417, %v2413
    %v3186 = vpack.c.bf16 %v2418, %v2414
    %v3187 = vpack.c.bf16 %v2419, %v2415
    %v3188 = vpack.c.bf16 %v2420, %v2416
    %v3189 = vpack.c.bf16 %v2425, %v2421
    %v3190 = vpack.c.bf16 %v2426, %v2422
    %v3191 = vpack.c.bf16 %v2427, %v2423
    %v3192 = vpack.c.bf16 %v2428, %v2424
    %v3193 = vpack.c.bf16 %v2433, %v2429
    %v3194 = vpack.c.bf16 %v2434, %v2430
    %v3195 = vpack.c.bf16 %v2435, %v2431
    %v3196 = vpack.c.bf16 %v2436, %v2432
    %v3197 = vpack.c.bf16 %v2441, %v2437
    %v3198 = vpack.c.bf16 %v2442, %v2438
    %v3199 = vpack.c.bf16 %v2443, %v2439
    %v3200 = vpack.c.bf16 %v2444, %v2440
    %v3201 = vpack.c.bf16 %v2449, %v2445
    %v3202 = vpack.c.bf16 %v2450, %v2446
    %v3203 = vpack.c.bf16 %v2451, %v2447
    %v3204 = vpack.c.bf16 %v2452, %v2448
    %v3205 = vpack.c.bf16 %v2457, %v2453
    %v3206 = vpack.c.bf16 %v2458, %v2454
    %v3207 = vpack.c.bf16 %v2459, %v2455
    %v3208 = vpack.c.bf16 %v2460, %v2456
    %v3209 = vpack.c.bf16 %v2465, %v2461
    %v3210 = vpack.c.bf16 %v2466, %v2462
    %v3211 = vpack.c.bf16 %v2467, %v2463
    %v3212 = vpack.c.bf16 %v2468, %v2464
    %v3213 = vpack.c.bf16 %v2473, %v2469
    %v3214 = vpack.c.bf16 %v2474, %v2470
    %v3215 = vpack.c.bf16 %v2475, %v2471
    %v3216 = vpack.c.bf16 %v2476, %v2472
    %v3217 = vpack.c.bf16 %v2481, %v2477
    %v3218 = vpack.c.bf16 %v2482, %v2478
    %v3219 = vpack.c.bf16 %v2483, %v2479
    %v3220 = vpack.c.bf16 %v2484, %v2480
    %v3221 = vpack.c.bf16 %v2489, %v2485
    %v3222 = vpack.c.bf16 %v2490, %v2486
    %v3223 = vpack.c.bf16 %v2491, %v2487
    %v3224 = vpack.c.bf16 %v2492, %v2488
    %v3225 = vpack.c.bf16 %v2497, %v2493
    %v3226 = vpack.c.bf16 %v2498, %v2494
    %v3227 = vpack.c.bf16 %v2499, %v2495
    %v3228 = vpack.c.bf16 %v2500, %v2496
    %v3229 = vpack.c.bf16 %v2505, %v2501
    %v3230 = vpack.c.bf16 %v2506, %v2502
    %v3231 = vpack.c.bf16 %v2507, %v2503
    %v3232 = vpack.c.bf16 %v2508, %v2504
    %v3233 = vpack.c.bf16 %v2513, %v2509
    %v3234 = vpack.c.bf16 %v2514, %v2510
    %v3235 = vpack.c.bf16 %v2515, %v2511
    %v3236 = vpack.c.bf16 %v2516, %v2512
    %v3237 = vpack.c.bf16 %v2521, %v2517
    %v3238 = vpack.c.bf16 %v2522, %v2518
    %v3239 = vpack.c.bf16 %v2523, %v2519
    %v3240 = vpack.c.bf16 %v2524, %v2520
    %v3241 = vpack.c.bf16 %v2529, %v2525
    %v3242 = vpack.c.bf16 %v2530, %v2526
    %v3243 = vpack.c.bf16 %v2531, %v2527
    %v3244 = vpack.c.bf16 %v2532, %v2528
    %v3245 = vpack.c.bf16 %v2537, %v2533
    %v3246 = vpack.c.bf16 %v2538, %v2534
    %v3247 = vpack.c.bf16 %v2539, %v2535
    %v3248 = vpack.c.bf16 %v2540, %v2536
    %v3249 = vpack.c.bf16 %v2545, %v2541
    %v3250 = vpack.c.bf16 %v2546, %v2542
    %v3251 = vpack.c.bf16 %v2547, %v2543
    %v3252 = vpack.c.bf16 %v2548, %v2544
    %v3253 = vpack.c.bf16 %v2553, %v2549
    %v3254 = vpack.c.bf16 %v2554, %v2550
    %v3255 = vpack.c.bf16 %v2555, %v2551
    %v3256 = vpack.c.bf16 %v2556, %v2552
    %v3257 = vpack.c.bf16 %v2561, %v2557
    %v3258 = vpack.c.bf16 %v2562, %v2558
    %v3259 = vpack.c.bf16 %v2563, %v2559
    %v3260 = vpack.c.bf16 %v2564, %v2560
    %v3261 = vpack.c.bf16 %v2569, %v2565
    %v3262 = vpack.c.bf16 %v2570, %v2566
    %v3263 = vpack.c.bf16 %v2571, %v2567
    %v3264 = vpack.c.bf16 %v2572, %v2568
    %v3265 = vpack.c.bf16 %v2577, %v2573
    %v3266 = vpack.c.bf16 %v2578, %v2574
    %v3267 = vpack.c.bf16 %v2579, %v2575
    %v3268 = vpack.c.bf16 %v2580, %v2576
    %v3269 = vpack.c.bf16 %v2585, %v2581
    %v3270 = vpack.c.bf16 %v2586, %v2582
    %v3271 = vpack.c.bf16 %v2587, %v2583
    %v3272 = vpack.c.bf16 %v2588, %v2584
    %v3273 = vpack.c.bf16 %v2593, %v2589
    %v3274 = vpack.c.bf16 %v2594, %v2590
    %v3275 = vpack.c.bf16 %v2595, %v2591
    %v3276 = vpack.c.bf16 %v2596, %v2592
    %v3277 = vpack.c.bf16 %v2601, %v2597
    %v3278 = vpack.c.bf16 %v2602, %v2598
    %v3279 = vpack.c.bf16 %v2603, %v2599
    %v3280 = vpack.c.bf16 %v2604, %v2600
    %v3281 = vpack.c.bf16 %v2609, %v2605
    %v3282 = vpack.c.bf16 %v2610, %v2606
    %v3283 = vpack.c.bf16 %v2611, %v2607
    %v3284 = vpack.c.bf16 %v2612, %v2608
    %v3285 = vpack.c.bf16 %v2617, %v2613
    %v3286 = vpack.c.bf16 %v2618, %v2614
    %v3287 = vpack.c.bf16 %v2619, %v2615
    %v3288 = vpack.c.bf16 %v2620, %v2616
    %v3289 = vpack.c.bf16 %v2625, %v2621
    %v3290 = vpack.c.bf16 %v2626, %v2622
    %v3291 = vpack.c.bf16 %v2627, %v2623
    %v3292 = vpack.c.bf16 %v2628, %v2624
    %v3293 = vpack.c.bf16 %v2633, %v2629
    %v3294 = vpack.c.bf16 %v2634, %v2630
    %v3295 = vpack.c.bf16 %v2635, %v2631
    %v3296 = vpack.c.bf16 %v2636, %v2632
    %v3297 = vpack.c.bf16 %v2641, %v2637
    %v3298 = vpack.c.bf16 %v2642, %v2638
    %v3299 = vpack.c.bf16 %v2643, %v2639
    %v3300 = vpack.c.bf16 %v2644, %v2640
    %v3301 = vpack.c.bf16 %v2649, %v2645
    %v3302 = vpack.c.bf16 %v2650, %v2646
    %v3303 = vpack.c.bf16 %v2651, %v2647
    %v3304 = vpack.c.bf16 %v2652, %v2648
    %v3305 = vpack.c.bf16 %v2657, %v2653
    %v3306 = vpack.c.bf16 %v2658, %v2654
    %v3307 = vpack.c.bf16 %v2659, %v2655
    %v3308 = vpack.c.bf16 %v2660, %v2656
    %v3309 = vpack.c.bf16 %v2665, %v2661
    %v3310 = vpack.c.bf16 %v2666, %v2662
    %v3311 = vpack.c.bf16 %v2667, %v2663
    %v3312 = vpack.c.bf16 %v2668, %v2664
    %v3313 = vpack.c.bf16 %v2673, %v2669
    %v3314 = vpack.c.bf16 %v2674, %v2670
    %v3315 = vpack.c.bf16 %v2675, %v2671
    %v3316 = vpack.c.bf16 %v2676, %v2672
    %v3317 = vpack.c.bf16 %v2681, %v2677
    %v3318 = vpack.c.bf16 %v2682, %v2678
    %v3319 = vpack.c.bf16 %v2683, %v2679
    %v3320 = vpack.c.bf16 %v2684, %v2680
    %v3321 = vpack.c.bf16 %v2689, %v2685
    %v3322 = vpack.c.bf16 %v2690, %v2686
    %v3323 = vpack.c.bf16 %v2691, %v2687
    %v3324 = vpack.c.bf16 %v2692, %v2688
    %v3325 = vpack.c.bf16 %v2697, %v2693
    %v3326 = vpack.c.bf16 %v2698, %v2694
    %v3327 = vpack.c.bf16 %v2699, %v2695
    %v3328 = vpack.c.bf16 %v2700, %v2696
    %v3329 = vpack.c.bf16 %v2705, %v2701
    %v3330 = vpack.c.bf16 %v2706, %v2702
    %v3331 = vpack.c.bf16 %v2707, %v2703
    %v3332 = vpack.c.bf16 %v2708, %v2704
    %v3333 = vpack.c.bf16 %v2713, %v2709
    %v3334 = vpack.c.bf16 %v2714, %v2710
    %v3335 = vpack.c.bf16 %v2715, %v2711
    %v3336 = vpack.c.bf16 %v2716, %v2712
    %v3337 = vpack.c.bf16 %v2721, %v2717
    %v3338 = vpack.c.bf16 %v2722, %v2718
    %v3339 = vpack.c.bf16 %v2723, %v2719
    %v3340 = vpack.c.bf16 %v2724, %v2720
    %v3341 = vpack.c.bf16 %v2729, %v2725
    %v3342 = vpack.c.bf16 %v2730, %v2726
    %v3343 = vpack.c.bf16 %v2731, %v2727
    %v3344 = vpack.c.bf16 %v2732, %v2728
    %v3345 = vpack.c.bf16 %v2737, %v2733
    %v3346 = vpack.c.bf16 %v2738, %v2734
    %v3347 = vpack.c.bf16 %v2739, %v2735
    %v3348 = vpack.c.bf16 %v2740, %v2736
    %v3349 = vpack.c.bf16 %v2745, %v2741
    %v3350 = vpack.c.bf16 %v2746, %v2742
    %v3351 = vpack.c.bf16 %v2747, %v2743
    %v3352 = vpack.c.bf16 %v2748, %v2744
    %v3353 = vpack.c.bf16 %v2753, %v2749
    %v3354 = vpack.c.bf16 %v2754, %v2750
    %v3355 = vpack.c.bf16 %v2755, %v2751
    %v3356 = vpack.c.bf16 %v2756, %v2752
    %v3357 = vpack.c.bf16 %v2761, %v2757
    %v3358 = vpack.c.bf16 %v2762, %v2758
    %v3359 = vpack.c.bf16 %v2763, %v2759
    %v3360 = vpack.c.bf16 %v2764, %v2760
    %v3361 = vpack.c.bf16 %v2769, %v2765
    %v3362 = vpack.c.bf16 %v2770, %v2766
    %v3363 = vpack.c.bf16 %v2771, %v2767
    %v3364 = vpack.c.bf16 %v2772, %v2768
    %v3365 = vpack.c.bf16 %v2777, %v2773
    %v3366 = vpack.c.bf16 %v2778, %v2774
    %v3367 = vpack.c.bf16 %v2779, %v2775
    %v3368 = vpack.c.bf16 %v2780, %v2776
    %v3369 = vpack.c.bf16 %v2785, %v2781
    %v3370 = vpack.c.bf16 %v2786, %v2782
    %v3371 = vpack.c.bf16 %v2787, %v2783
    %v3372 = vpack.c.bf16 %v2788, %v2784
    %v3373 = vpack.c.bf16 %v2793, %v2789
    %v3374 = vpack.c.bf16 %v2794, %v2790
    %v3375 = vpack.c.bf16 %v2795, %v2791
    %v3376 = vpack.c.bf16 %v2796, %v2792
    %v3377 = vpack.c.bf16 %v2801, %v2797
    %v3378 = vpack.c.bf16 %v2802, %v2798
    %v3379 = vpack.c.bf16 %v2803, %v2799
    %v3380 = vpack.c.bf16 %v2804, %v2800
    %v3381 = vpack.c.bf16 %v2809, %v2805
    %v3382 = vpack.c.bf16 %v2810, %v2806
    %v3383 = vpack.c.bf16 %v2811, %v2807
    %v3384 = vpack.c.bf16 %v2812, %v2808
    %v3385 = vpack.c.bf16 %v2817, %v2813
    %v3386 = vpack.c.bf16 %v2818, %v2814
    %v3387 = vpack.c.bf16 %v2819, %v2815
    %v3388 = vpack.c.bf16 %v2820, %v2816
    %v3389 = vpack.c.bf16 %v2825, %v2821
    %v3390 = vpack.c.bf16 %v2826, %v2822
    %v3391 = vpack.c.bf16 %v2827, %v2823
    %v3392 = vpack.c.bf16 %v2828, %v2824
    %v3393 = vpack.c.bf16 %v2833, %v2829
    %v3394 = vpack.c.bf16 %v2834, %v2830
    %v3395 = vpack.c.bf16 %v2835, %v2831
    %v3396 = vpack.c.bf16 %v2836, %v2832
    %v3397 = vpack.c.bf16 %v2841, %v2837
    %v3398 = vpack.c.bf16 %v2842, %v2838
    %v3399 = vpack.c.bf16 %v2843, %v2839
    %v3400 = vpack.c.bf16 %v2844, %v2840
    %v3401 = vpack.c.bf16 %v2849, %v2845
    %v3402 = vpack.c.bf16 %v2850, %v2846
    %v3403 = vpack.c.bf16 %v2851, %v2847
    %v3404 = vpack.c.bf16 %v2852, %v2848
    %v3405 = vpack.c.bf16 %v2857, %v2853
    %v3406 = vpack.c.bf16 %v2858, %v2854
    %v3407 = vpack.c.bf16 %v2859, %v2855
    %v3408 = vpack.c.bf16 %v2860, %v2856
    %v3409 = vpack.c.bf16 %v2865, %v2861
    %v3410 = vpack.c.bf16 %v2866, %v2862
    %v3411 = vpack.c.bf16 %v2867, %v2863
    %v3412 = vpack.c.bf16 %v2868, %v2864
    %v3413 = vpack.c.bf16 %v2873, %v2869
    %v3414 = vpack.c.bf16 %v2874, %v2870
    %v3415 = vpack.c.bf16 %v2875, %v2871
    %v3416 = vpack.c.bf16 %v2876, %v2872
    %v3417 = vpack.c.bf16 %v2881, %v2877
    %v3418 = vpack.c.bf16 %v2882, %v2878
    %v3419 = vpack.c.bf16 %v2883, %v2879
    %v3420 = vpack.c.bf16 %v2884, %v2880
    %v3421 = vpack.c.bf16 %v2889, %v2885
    %v3422 = vpack.c.bf16 %v2890, %v2886
    %v3423 = vpack.c.bf16 %v2891, %v2887
    %v3424 = vpack.c.bf16 %v2892, %v2888
    %v3425 = vpack.c.bf16 %v2897, %v2893
    %v3426 = vpack.c.bf16 %v2898, %v2894
    %v3427 = vpack.c.bf16 %v2899, %v2895
    %v3428 = vpack.c.bf16 %v2900, %v2896
    %v3429 = vpack.c.bf16 %v2905, %v2901
    %v3430 = vpack.c.bf16 %v2906, %v2902
    %v3431 = vpack.c.bf16 %v2907, %v2903
    %v3432 = vpack.c.bf16 %v2908, %v2904
    %v3433 = vpack.c.bf16 %v2913, %v2909
    %v3434 = vpack.c.bf16 %v2914, %v2910
    %v3435 = vpack.c.bf16 %v2915, %v2911
    %v3436 = vpack.c.bf16 %v2916, %v2912
    %v3437 = vpack.c.bf16 %v2921, %v2917
    %v3438 = vpack.c.bf16 %v2922, %v2918
    %v3439 = vpack.c.bf16 %v2923, %v2919
    %v3440 = vpack.c.bf16 %v2924, %v2920
    %v3441 = vpack.c.bf16 %v2929, %v2925
    %v3442 = vpack.c.bf16 %v2930, %v2926
    %v3443 = vpack.c.bf16 %v2931, %v2927
    %v3444 = vpack.c.bf16 %v2932, %v2928
    %3445 = vmatpush.bf16.msra.mxu0 %v2961
    %3446 = vmatpush.bf16.msra.mxu0 %v2957
    %3447 = vmatpush.bf16.msra.mxu0 %v2953
    %3448 = vmatpush.bf16.msra.mxu0 %v2949
    %3449 = vmatpush.bf16.msra.mxu0 %v2945
    %3450 = vmatpush.bf16.msra.mxu0 %v2941
    %3451 = vmatpush.bf16.msra.mxu0 %v2937
    %3452 = vmatpush.bf16.msra.mxu0 %v2933
    %3453 = vmatmul.bf16.gmra.mxu0 %v613
    %v3454 = vpop.f32.mrf.mxu0
    %v3455 = vadd.f32 0.0, %v3454
    %v3456 = vpop.f32.mrf.mxu0
    %v3457 = vadd.f32 0.0, %v3456
    %3458 = vdwg.mxu0
    %3459 = vmatpush.bf16.msra.mxu0 %v2993
    %3460 = vmatpush.bf16.msra.mxu0 %v2989
    %3461 = vmatpush.bf16.msra.mxu0 %v2985
    %3462 = vmatpush.bf16.msra.mxu0 %v2981
    %3463 = vmatpush.bf16.msra.mxu0 %v2977
    %3464 = vmatpush.bf16.msra.mxu0 %v2973
    %3465 = vmatpush.bf16.msra.mxu0 %v2969
    %3466 = vmatpush.bf16.msra.mxu0 %v2965
    %3467 = vmatmul.bf16.gmra.mxu0 %v614
    %v3468 = vpop.f32.mrf.mxu0
    %v3469 = vadd.f32 %v3455, %v3468
    %v3470 = vpop.f32.mrf.mxu0
    %v3471 = vadd.f32 %v3457, %v3470
    %3472 = vdwg.mxu0
    %3473 = vmatpush.bf16.msra.mxu0 %v3025
    %3474 = vmatpush.bf16.msra.mxu0 %v3021
    %3475 = vmatpush.bf16.msra.mxu0 %v3017
    %3476 = vmatpush.bf16.msra.mxu0 %v3013
    %3477 = vmatpush.bf16.msra.mxu0 %v3009
    %3478 = vmatpush.bf16.msra.mxu0 %v3005
    %3479 = vmatpush.bf16.msra.mxu0 %v3001
    %3480 = vmatpush.bf16.msra.mxu0 %v2997
    %3481 = vmatmul.bf16.gmra.mxu0 %v615
    %v3482 = vpop.f32.mrf.mxu0
    %v3483 = vadd.f32 %v3469, %v3482
    %v3484 = vpop.f32.mrf.mxu0
    %v3485 = vadd.f32 %v3471, %v3484
    %3486 = vdwg.mxu0
    %3487 = vmatpush.bf16.msra.mxu0 %v3057
    %3488 = vmatpush.bf16.msra.mxu0 %v3053
    %3489 = vmatpush.bf16.msra.mxu0 %v3049
    %3490 = vmatpush.bf16.msra.mxu0 %v3045
    %3491 = vmatpush.bf16.msra.mxu0 %v3041
    %3492 = vmatpush.bf16.msra.mxu0 %v3037
    %3493 = vmatpush.bf16.msra.mxu0 %v3033
    %3494 = vmatpush.bf16.msra.mxu0 %v3029
    %3495 = vmatmul.bf16.gmra.mxu0 %v616
    %v3496 = vpop.f32.mrf.mxu0
    %v3497 = vadd.f32 %v3483, %v3496
    %v3498 = vpop.f32.mrf.mxu0
    %v3499 = vadd.f32 %v3485, %v3498
    %3500 = vdwg.mxu0
    %3501 = vmatpush.bf16.msra.mxu0 %v3089
    %3502 = vmatpush.bf16.msra.mxu0 %v3085
    %3503 = vmatpush.bf16.msra.mxu0 %v3081
    %3504 = vmatpush.bf16.msra.mxu0 %v3077
    %3505 = vmatpush.bf16.msra.mxu0 %v3073
    %3506 = vmatpush.bf16.msra.mxu0 %v3069
    %3507 = vmatpush.bf16.msra.mxu0 %v3065
    %3508 = vmatpush.bf16.msra.mxu0 %v3061
    %3509 = vmatmul.bf16.gmra.mxu0 %v617
    %v3510 = vpop.f32.mrf.mxu0
    %v3511 = vadd.f32 %v3497, %v3510
    %v3512 = vpop.f32.mrf.mxu0
    %v3513 = vadd.f32 %v3499, %v3512
    %3514 = vdwg.mxu0
    %3515 = vmatpush.bf16.msra.mxu0 %v3121
    %3516 = vmatpush.bf16.msra.mxu0 %v3117
    %3517 = vmatpush.bf16.msra.mxu0 %v3113
    %3518 = vmatpush.bf16.msra.mxu0 %v3109
    %3519 = vmatpush.bf16.msra.mxu0 %v3105
    %3520 = vmatpush.bf16.msra.mxu0 %v3101
    %3521 = vmatpush.bf16.msra.mxu0 %v3097
    %3522 = vmatpush.bf16.msra.mxu0 %v3093
    %3523 = vmatmul.bf16.gmra.mxu0 %v618
    %v3524 = vpop.f32.mrf.mxu0
    %v3525 = vadd.f32 %v3511, %v3524
    %v3526 = vpop.f32.mrf.mxu0
    %v3527 = vadd.f32 %v3513, %v3526
    %3528 = vdwg.mxu0
    %3529 = vmatpush.bf16.msra.mxu0 %v3153
    %3530 = vmatpush.bf16.msra.mxu0 %v3149
    %3531 = vmatpush.bf16.msra.mxu0 %v3145
    %3532 = vmatpush.bf16.msra.mxu0 %v3141
    %3533 = vmatpush.bf16.msra.mxu0 %v3137
    %3534 = vmatpush.bf16.msra.mxu0 %v3133
    %3535 = vmatpush.bf16.msra.mxu0 %v3129
    %3536 = vmatpush.bf16.msra.mxu0 %v3125
    %3537 = vmatmul.bf16.gmra.mxu0 %v619
    %v3538 = vpop.f32.mrf.mxu0
    %v3539 = vadd.f32 %v3525, %v3538
    %v3540 = vpop.f32.mrf.mxu0
    %v3541 = vadd.f32 %v3527, %v3540
    %3542 = vdwg.mxu0
    %3543 = vmatpush.bf16.msra.mxu0 %v3185
    %3544 = vmatpush.bf16.msra.mxu0 %v3181
    %3545 = vmatpush.bf16.msra.mxu0 %v3177
    %3546 = vmatpush.bf16.msra.mxu0 %v3173
    %3547 = vmatpush.bf16.msra.mxu0 %v3169
    %3548 = vmatpush.bf16.msra.mxu0 %v3165
    %3549 = vmatpush.bf16.msra.mxu0 %v3161
    %3550 = vmatpush.bf16.msra.mxu0 %v3157
    %3551 = vmatmul.bf16.gmra.mxu0 %v620
    %v3552 = vpop.f32.mrf.mxu0
    %v3553 = vadd.f32 %v3539, %v3552
    %v3554 = vpop.f32.mrf.mxu0
    %v3555 = vadd.f32 %v3541, %v3554
    %3556 = vdwg.mxu0
    %3557 = vmatpush.bf16.msra.mxu0 %v3217
    %3558 = vmatpush.bf16.msra.mxu0 %v3213
    %3559 = vmatpush.bf16.msra.mxu0 %v3209
    %3560 = vmatpush.bf16.msra.mxu0 %v3205
    %3561 = vmatpush.bf16.msra.mxu0 %v3201
    %3562 = vmatpush.bf16.msra.mxu0 %v3197
    %3563 = vmatpush.bf16.msra.mxu0 %v3193
    %3564 = vmatpush.bf16.msra.mxu0 %v3189
    %3565 = vmatmul.bf16.gmra.mxu0 %v621
    %v3566 = vpop.f32.mrf.mxu0
    %v3567 = vadd.f32 %v3553, %v3566
    %v3568 = vpop.f32.mrf.mxu0
    %v3569 = vadd.f32 %v3555, %v3568
    %3570 = vdwg.mxu0
    %3571 = vmatpush.bf16.msra.mxu0 %v3249
    %3572 = vmatpush.bf16.msra.mxu0 %v3245
    %3573 = vmatpush.bf16.msra.mxu0 %v3241
    %3574 = vmatpush.bf16.msra.mxu0 %v3237
    %3575 = vmatpush.bf16.msra.mxu0 %v3233
    %3576 = vmatpush.bf16.msra.mxu0 %v3229
    %3577 = vmatpush.bf16.msra.mxu0 %v3225
    %3578 = vmatpush.bf16.msra.mxu0 %v3221
    %3579 = vmatmul.bf16.gmra.mxu0 %v622
    %v3580 = vpop.f32.mrf.mxu0
    %v3581 = vadd.f32 %v3567, %v3580
    %v3582 = vpop.f32.mrf.mxu0
    %v3583 = vadd.f32 %v3569, %v3582
    %3584 = vdwg.mxu0
    %3585 = vmatpush.bf16.msra.mxu0 %v3281
    %3586 = vmatpush.bf16.msra.mxu0 %v3277
    %3587 = vmatpush.bf16.msra.mxu0 %v3273
    %3588 = vmatpush.bf16.msra.mxu0 %v3269
    %3589 = vmatpush.bf16.msra.mxu0 %v3265
    %3590 = vmatpush.bf16.msra.mxu0 %v3261
    %3591 = vmatpush.bf16.msra.mxu0 %v3257
    %3592 = vmatpush.bf16.msra.mxu0 %v3253
    %3593 = vmatmul.bf16.gmra.mxu0 %v623
    %v3594 = vpop.f32.mrf.mxu0
    %v3595 = vadd.f32 %v3581, %v3594
    %v3596 = vpop.f32.mrf.mxu0
    %v3597 = vadd.f32 %v3583, %v3596
    %3598 = vdwg.mxu0
    %3599 = vmatpush.bf16.msra.mxu0 %v3313
    %3600 = vmatpush.bf16.msra.mxu0 %v3309
    %3601 = vmatpush.bf16.msra.mxu0 %v3305
    %3602 = vmatpush.bf16.msra.mxu0 %v3301
    %3603 = vmatpush.bf16.msra.mxu0 %v3297
    %3604 = vmatpush.bf16.msra.mxu0 %v3293
    %3605 = vmatpush.bf16.msra.mxu0 %v3289
    %3606 = vmatpush.bf16.msra.mxu0 %v3285
    %3607 = vmatmul.bf16.gmra.mxu0 %v624
    %v3608 = vpop.f32.mrf.mxu0
    %v3609 = vadd.f32 %v3595, %v3608
    %v3610 = vpop.f32.mrf.mxu0
    %v3611 = vadd.f32 %v3597, %v3610
    %3612 = vdwg.mxu0
    %3613 = vmatpush.bf16.msra.mxu0 %v3345
    %3614 = vmatpush.bf16.msra.mxu0 %v3341
    %3615 = vmatpush.bf16.msra.mxu0 %v3337
    %3616 = vmatpush.bf16.msra.mxu0 %v3333
    %3617 = vmatpush.bf16.msra.mxu0 %v3329
    %3618 = vmatpush.bf16.msra.mxu0 %v3325
    %3619 = vmatpush.bf16.msra.mxu0 %v3321
    %3620 = vmatpush.bf16.msra.mxu0 %v3317
    %3621 = vmatmul.bf16.gmra.mxu0 %v625
    %v3622 = vpop.f32.mrf.mxu0
    %v3623 = vadd.f32 %v3609, %v3622
    %v3624 = vpop.f32.mrf.mxu0
    %v3625 = vadd.f32 %v3611, %v3624
    %3626 = vdwg.mxu0
    %3627 = vmatpush.bf16.msra.mxu0 %v3377
    %3628 = vmatpush.bf16.msra.mxu0 %v3373
    %3629 = vmatpush.bf16.msra.mxu0 %v3369
    %3630 = vmatpush.bf16.msra.mxu0 %v3365
    %3631 = vmatpush.bf16.msra.mxu0 %v3361
    %3632 = vmatpush.bf16.msra.mxu0 %v3357
    %3633 = vmatpush.bf16.msra.mxu0 %v3353
    %3634 = vmatpush.bf16.msra.mxu0 %v3349
    %3635 = vmatmul.bf16.gmra.mxu0 %v626
    %v3636 = vpop.f32.mrf.mxu0
    %v3637 = vadd.f32 %v3623, %v3636
    %v3638 = vpop.f32.mrf.mxu0
    %v3639 = vadd.f32 %v3625, %v3638
    %3640 = vdwg.mxu0
    %3641 = vmatpush.bf16.msra.mxu0 %v3409
    %3642 = vmatpush.bf16.msra.mxu0 %v3405
    %3643 = vmatpush.bf16.msra.mxu0 %v3401
    %3644 = vmatpush.bf16.msra.mxu0 %v3397
    %3645 = vmatpush.bf16.msra.mxu0 %v3393
    %3646 = vmatpush.bf16.msra.mxu0 %v3389
    %3647 = vmatpush.bf16.msra.mxu0 %v3385
    %3648 = vmatpush.bf16.msra.mxu0 %v3381
    %3649 = vmatmul.bf16.gmra.mxu0 %v627
    %v3650 = vpop.f32.mrf.mxu0
    %v3651 = vadd.f32 %v3637, %v3650
    %v3652 = vpop.f32.mrf.mxu0
    %v3653 = vadd.f32 %v3639, %v3652
    %3654 = vdwg.mxu0
    %3655 = vmatpush.bf16.msra.mxu0 %v3441
    %3656 = vmatpush.bf16.msra.mxu0 %v3437
    %3657 = vmatpush.bf16.msra.mxu0 %v3433
    %3658 = vmatpush.bf16.msra.mxu0 %v3429
    %3659 = vmatpush.bf16.msra.mxu0 %v3425
    %3660 = vmatpush.bf16.msra.mxu0 %v3421
    %3661 = vmatpush.bf16.msra.mxu0 %v3417
    %3662 = vmatpush.bf16.msra.mxu0 %v3413
    %3663 = vmatmul.bf16.gmra.mxu0 %v628
    %v3664 = vpop.f32.mrf.mxu0
    %v3665 = vadd.f32 %v3651, %v3664
    %v3666 = vpop.f32.mrf.mxu0
    %v3667 = vadd.f32 %v3653, %v3666
    %3668 = vdwg.mxu0
    %3669 = vmatpush.bf16.msra.mxu0 %v2962
    %3670 = vmatpush.bf16.msra.mxu0 %v2958
    %3671 = vmatpush.bf16.msra.mxu0 %v2954
    %3672 = vmatpush.bf16.msra.mxu0 %v2950
    %3673 = vmatpush.bf16.msra.mxu0 %v2946
    %3674 = vmatpush.bf16.msra.mxu0 %v2942
    %3675 = vmatpush.bf16.msra.mxu0 %v2938
    %3676 = vmatpush.bf16.msra.mxu0 %v2934
    %3677 = vmatmul.bf16.gmra.mxu0 %v613
    %v3678 = vpop.f32.mrf.mxu0
    %v3679 = vadd.f32 0.0, %v3678
    %v3680 = vpop.f32.mrf.mxu0
    %v3681 = vadd.f32 0.0, %v3680
    %3682 = vdwg.mxu0
    %3683 = vmatpush.bf16.msra.mxu0 %v2994
    %3684 = vmatpush.bf16.msra.mxu0 %v2990
    %3685 = vmatpush.bf16.msra.mxu0 %v2986
    %3686 = vmatpush.bf16.msra.mxu0 %v2982
    %3687 = vmatpush.bf16.msra.mxu0 %v2978
    %3688 = vmatpush.bf16.msra.mxu0 %v2974
    %3689 = vmatpush.bf16.msra.mxu0 %v2970
    %3690 = vmatpush.bf16.msra.mxu0 %v2966
    %3691 = vmatmul.bf16.gmra.mxu0 %v614
    %v3692 = vpop.f32.mrf.mxu0
    %v3693 = vadd.f32 %v3679, %v3692
    %v3694 = vpop.f32.mrf.mxu0
    %v3695 = vadd.f32 %v3681, %v3694
    %3696 = vdwg.mxu0
    %3697 = vmatpush.bf16.msra.mxu0 %v3026
    %3698 = vmatpush.bf16.msra.mxu0 %v3022
    %3699 = vmatpush.bf16.msra.mxu0 %v3018
    %3700 = vmatpush.bf16.msra.mxu0 %v3014
    %3701 = vmatpush.bf16.msra.mxu0 %v3010
    %3702 = vmatpush.bf16.msra.mxu0 %v3006
    %3703 = vmatpush.bf16.msra.mxu0 %v3002
    %3704 = vmatpush.bf16.msra.mxu0 %v2998
    %3705 = vmatmul.bf16.gmra.mxu0 %v615
    %v3706 = vpop.f32.mrf.mxu0
    %v3707 = vadd.f32 %v3693, %v3706
    %v3708 = vpop.f32.mrf.mxu0
    %v3709 = vadd.f32 %v3695, %v3708
    %3710 = vdwg.mxu0
    %3711 = vmatpush.bf16.msra.mxu0 %v3058
    %3712 = vmatpush.bf16.msra.mxu0 %v3054
    %3713 = vmatpush.bf16.msra.mxu0 %v3050
    %3714 = vmatpush.bf16.msra.mxu0 %v3046
    %3715 = vmatpush.bf16.msra.mxu0 %v3042
    %3716 = vmatpush.bf16.msra.mxu0 %v3038
    %3717 = vmatpush.bf16.msra.mxu0 %v3034
    %3718 = vmatpush.bf16.msra.mxu0 %v3030
    %3719 = vmatmul.bf16.gmra.mxu0 %v616
    %v3720 = vpop.f32.mrf.mxu0
    %v3721 = vadd.f32 %v3707, %v3720
    %v3722 = vpop.f32.mrf.mxu0
    %v3723 = vadd.f32 %v3709, %v3722
    %3724 = vdwg.mxu0
    %3725 = vmatpush.bf16.msra.mxu0 %v3090
    %3726 = vmatpush.bf16.msra.mxu0 %v3086
    %3727 = vmatpush.bf16.msra.mxu0 %v3082
    %3728 = vmatpush.bf16.msra.mxu0 %v3078
    %3729 = vmatpush.bf16.msra.mxu0 %v3074
    %3730 = vmatpush.bf16.msra.mxu0 %v3070
    %3731 = vmatpush.bf16.msra.mxu0 %v3066
    %3732 = vmatpush.bf16.msra.mxu0 %v3062
    %3733 = vmatmul.bf16.gmra.mxu0 %v617
    %v3734 = vpop.f32.mrf.mxu0
    %v3735 = vadd.f32 %v3721, %v3734
    %v3736 = vpop.f32.mrf.mxu0
    %v3737 = vadd.f32 %v3723, %v3736
    %3738 = vdwg.mxu0
    %3739 = vmatpush.bf16.msra.mxu0 %v3122
    %3740 = vmatpush.bf16.msra.mxu0 %v3118
    %3741 = vmatpush.bf16.msra.mxu0 %v3114
    %3742 = vmatpush.bf16.msra.mxu0 %v3110
    %3743 = vmatpush.bf16.msra.mxu0 %v3106
    %3744 = vmatpush.bf16.msra.mxu0 %v3102
    %3745 = vmatpush.bf16.msra.mxu0 %v3098
    %3746 = vmatpush.bf16.msra.mxu0 %v3094
    %3747 = vmatmul.bf16.gmra.mxu0 %v618
    %v3748 = vpop.f32.mrf.mxu0
    %v3749 = vadd.f32 %v3735, %v3748
    %v3750 = vpop.f32.mrf.mxu0
    %v3751 = vadd.f32 %v3737, %v3750
    %3752 = vdwg.mxu0
    %3753 = vmatpush.bf16.msra.mxu0 %v3154
    %3754 = vmatpush.bf16.msra.mxu0 %v3150
    %3755 = vmatpush.bf16.msra.mxu0 %v3146
    %3756 = vmatpush.bf16.msra.mxu0 %v3142
    %3757 = vmatpush.bf16.msra.mxu0 %v3138
    %3758 = vmatpush.bf16.msra.mxu0 %v3134
    %3759 = vmatpush.bf16.msra.mxu0 %v3130
    %3760 = vmatpush.bf16.msra.mxu0 %v3126
    %3761 = vmatmul.bf16.gmra.mxu0 %v619
    %v3762 = vpop.f32.mrf.mxu0
    %v3763 = vadd.f32 %v3749, %v3762
    %v3764 = vpop.f32.mrf.mxu0
    %v3765 = vadd.f32 %v3751, %v3764
    %3766 = vdwg.mxu0
    %3767 = vmatpush.bf16.msra.mxu0 %v3186
    %3768 = vmatpush.bf16.msra.mxu0 %v3182
    %3769 = vmatpush.bf16.msra.mxu0 %v3178
    %3770 = vmatpush.bf16.msra.mxu0 %v3174
    %3771 = vmatpush.bf16.msra.mxu0 %v3170
    %3772 = vmatpush.bf16.msra.mxu0 %v3166
    %3773 = vmatpush.bf16.msra.mxu0 %v3162
    %3774 = vmatpush.bf16.msra.mxu0 %v3158
    %3775 = vmatmul.bf16.gmra.mxu0 %v620
    %v3776 = vpop.f32.mrf.mxu0
    %v3777 = vadd.f32 %v3763, %v3776
    %v3778 = vpop.f32.mrf.mxu0
    %v3779 = vadd.f32 %v3765, %v3778
    %3780 = vdwg.mxu0
    %3781 = vmatpush.bf16.msra.mxu0 %v3218
    %3782 = vmatpush.bf16.msra.mxu0 %v3214
    %3783 = vmatpush.bf16.msra.mxu0 %v3210
    %3784 = vmatpush.bf16.msra.mxu0 %v3206
    %3785 = vmatpush.bf16.msra.mxu0 %v3202
    %3786 = vmatpush.bf16.msra.mxu0 %v3198
    %3787 = vmatpush.bf16.msra.mxu0 %v3194
    %3788 = vmatpush.bf16.msra.mxu0 %v3190
    %3789 = vmatmul.bf16.gmra.mxu0 %v621
    %v3790 = vpop.f32.mrf.mxu0
    %v3791 = vadd.f32 %v3777, %v3790
    %v3792 = vpop.f32.mrf.mxu0
    %v3793 = vadd.f32 %v3779, %v3792
    %3794 = vdwg.mxu0
    %3795 = vmatpush.bf16.msra.mxu0 %v3250
    %3796 = vmatpush.bf16.msra.mxu0 %v3246
    %3797 = vmatpush.bf16.msra.mxu0 %v3242
    %3798 = vmatpush.bf16.msra.mxu0 %v3238
    %3799 = vmatpush.bf16.msra.mxu0 %v3234
    %3800 = vmatpush.bf16.msra.mxu0 %v3230
    %3801 = vmatpush.bf16.msra.mxu0 %v3226
    %3802 = vmatpush.bf16.msra.mxu0 %v3222
    %3803 = vmatmul.bf16.gmra.mxu0 %v622
    %v3804 = vpop.f32.mrf.mxu0
    %v3805 = vadd.f32 %v3791, %v3804
    %v3806 = vpop.f32.mrf.mxu0
    %v3807 = vadd.f32 %v3793, %v3806
    %3808 = vdwg.mxu0
    %3809 = vmatpush.bf16.msra.mxu0 %v3282
    %3810 = vmatpush.bf16.msra.mxu0 %v3278
    %3811 = vmatpush.bf16.msra.mxu0 %v3274
    %3812 = vmatpush.bf16.msra.mxu0 %v3270
    %3813 = vmatpush.bf16.msra.mxu0 %v3266
    %3814 = vmatpush.bf16.msra.mxu0 %v3262
    %3815 = vmatpush.bf16.msra.mxu0 %v3258
    %3816 = vmatpush.bf16.msra.mxu0 %v3254
    %3817 = vmatmul.bf16.gmra.mxu0 %v623
    %v3818 = vpop.f32.mrf.mxu0
    %v3819 = vadd.f32 %v3805, %v3818
    %v3820 = vpop.f32.mrf.mxu0
    %v3821 = vadd.f32 %v3807, %v3820
    %3822 = vdwg.mxu0
    %3823 = vmatpush.bf16.msra.mxu0 %v3314
    %3824 = vmatpush.bf16.msra.mxu0 %v3310
    %3825 = vmatpush.bf16.msra.mxu0 %v3306
    %3826 = vmatpush.bf16.msra.mxu0 %v3302
    %3827 = vmatpush.bf16.msra.mxu0 %v3298
    %3828 = vmatpush.bf16.msra.mxu0 %v3294
    %3829 = vmatpush.bf16.msra.mxu0 %v3290
    %3830 = vmatpush.bf16.msra.mxu0 %v3286
    %3831 = vmatmul.bf16.gmra.mxu0 %v624
    %v3832 = vpop.f32.mrf.mxu0
    %v3833 = vadd.f32 %v3819, %v3832
    %v3834 = vpop.f32.mrf.mxu0
    %v3835 = vadd.f32 %v3821, %v3834
    %3836 = vdwg.mxu0
    %3837 = vmatpush.bf16.msra.mxu0 %v3346
    %3838 = vmatpush.bf16.msra.mxu0 %v3342
    %3839 = vmatpush.bf16.msra.mxu0 %v3338
    %3840 = vmatpush.bf16.msra.mxu0 %v3334
    %3841 = vmatpush.bf16.msra.mxu0 %v3330
    %3842 = vmatpush.bf16.msra.mxu0 %v3326
    %3843 = vmatpush.bf16.msra.mxu0 %v3322
    %3844 = vmatpush.bf16.msra.mxu0 %v3318
    %3845 = vmatmul.bf16.gmra.mxu0 %v625
    %v3846 = vpop.f32.mrf.mxu0
    %v3847 = vadd.f32 %v3833, %v3846
    %v3848 = vpop.f32.mrf.mxu0
    %v3849 = vadd.f32 %v3835, %v3848
    %3850 = vdwg.mxu0
    %3851 = vmatpush.bf16.msra.mxu0 %v3378
    %3852 = vmatpush.bf16.msra.mxu0 %v3374
    %3853 = vmatpush.bf16.msra.mxu0 %v3370
    %3854 = vmatpush.bf16.msra.mxu0 %v3366
    %3855 = vmatpush.bf16.msra.mxu0 %v3362
    %3856 = vmatpush.bf16.msra.mxu0 %v3358
    %3857 = vmatpush.bf16.msra.mxu0 %v3354
    %3858 = vmatpush.bf16.msra.mxu0 %v3350
    %3859 = vmatmul.bf16.gmra.mxu0 %v626
    %v3860 = vpop.f32.mrf.mxu0
    %v3861 = vadd.f32 %v3847, %v3860
    %v3862 = vpop.f32.mrf.mxu0
    %v3863 = vadd.f32 %v3849, %v3862
    %3864 = vdwg.mxu0
    %3865 = vmatpush.bf16.msra.mxu0 %v3410
    %3866 = vmatpush.bf16.msra.mxu0 %v3406
    %3867 = vmatpush.bf16.msra.mxu0 %v3402
    %3868 = vmatpush.bf16.msra.mxu0 %v3398
    %3869 = vmatpush.bf16.msra.mxu0 %v3394
    %3870 = vmatpush.bf16.msra.mxu0 %v3390
    %3871 = vmatpush.bf16.msra.mxu0 %v3386
    %3872 = vmatpush.bf16.msra.mxu0 %v3382
    %3873 = vmatmul.bf16.gmra.mxu0 %v627
    %v3874 = vpop.f32.mrf.mxu0
    %v3875 = vadd.f32 %v3861, %v3874
    %v3876 = vpop.f32.mrf.mxu0
    %v3877 = vadd.f32 %v3863, %v3876
    %3878 = vdwg.mxu0
    %3879 = vmatpush.bf16.msra.mxu0 %v3442
    %3880 = vmatpush.bf16.msra.mxu0 %v3438
    %3881 = vmatpush.bf16.msra.mxu0 %v3434
    %3882 = vmatpush.bf16.msra.mxu0 %v3430
    %3883 = vmatpush.bf16.msra.mxu0 %v3426
    %3884 = vmatpush.bf16.msra.mxu0 %v3422
    %3885 = vmatpush.bf16.msra.mxu0 %v3418
    %3886 = vmatpush.bf16.msra.mxu0 %v3414
    %3887 = vmatmul.bf16.gmra.mxu0 %v628
    %v3888 = vpop.f32.mrf.mxu0
    %v3889 = vadd.f32 %v3875, %v3888
    %v3890 = vpop.f32.mrf.mxu0
    %v3891 = vadd.f32 %v3877, %v3890
    %3892 = vdwg.mxu0
    %3893 = vmatpush.bf16.msra.mxu0 %v2963
    %3894 = vmatpush.bf16.msra.mxu0 %v2959
    %3895 = vmatpush.bf16.msra.mxu0 %v2955
    %3896 = vmatpush.bf16.msra.mxu0 %v2951
    %3897 = vmatpush.bf16.msra.mxu0 %v2947
    %3898 = vmatpush.bf16.msra.mxu0 %v2943
    %3899 = vmatpush.bf16.msra.mxu0 %v2939
    %3900 = vmatpush.bf16.msra.mxu0 %v2935
    %3901 = vmatmul.bf16.gmra.mxu0 %v613
    %v3902 = vpop.f32.mrf.mxu0
    %v3903 = vadd.f32 0.0, %v3902
    %v3904 = vpop.f32.mrf.mxu0
    %v3905 = vadd.f32 0.0, %v3904
    %3906 = vdwg.mxu0
    %3907 = vmatpush.bf16.msra.mxu0 %v2995
    %3908 = vmatpush.bf16.msra.mxu0 %v2991
    %3909 = vmatpush.bf16.msra.mxu0 %v2987
    %3910 = vmatpush.bf16.msra.mxu0 %v2983
    %3911 = vmatpush.bf16.msra.mxu0 %v2979
    %3912 = vmatpush.bf16.msra.mxu0 %v2975
    %3913 = vmatpush.bf16.msra.mxu0 %v2971
    %3914 = vmatpush.bf16.msra.mxu0 %v2967
    %3915 = vmatmul.bf16.gmra.mxu0 %v614
    %v3916 = vpop.f32.mrf.mxu0
    %v3917 = vadd.f32 %v3903, %v3916
    %v3918 = vpop.f32.mrf.mxu0
    %v3919 = vadd.f32 %v3905, %v3918
    %3920 = vdwg.mxu0
    %3921 = vmatpush.bf16.msra.mxu0 %v3027
    %3922 = vmatpush.bf16.msra.mxu0 %v3023
    %3923 = vmatpush.bf16.msra.mxu0 %v3019
    %3924 = vmatpush.bf16.msra.mxu0 %v3015
    %3925 = vmatpush.bf16.msra.mxu0 %v3011
    %3926 = vmatpush.bf16.msra.mxu0 %v3007
    %3927 = vmatpush.bf16.msra.mxu0 %v3003
    %3928 = vmatpush.bf16.msra.mxu0 %v2999
    %3929 = vmatmul.bf16.gmra.mxu0 %v615
    %v3930 = vpop.f32.mrf.mxu0
    %v3931 = vadd.f32 %v3917, %v3930
    %v3932 = vpop.f32.mrf.mxu0
    %v3933 = vadd.f32 %v3919, %v3932
    %3934 = vdwg.mxu0
    %3935 = vmatpush.bf16.msra.mxu0 %v3059
    %3936 = vmatpush.bf16.msra.mxu0 %v3055
    %3937 = vmatpush.bf16.msra.mxu0 %v3051
    %3938 = vmatpush.bf16.msra.mxu0 %v3047
    %3939 = vmatpush.bf16.msra.mxu0 %v3043
    %3940 = vmatpush.bf16.msra.mxu0 %v3039
    %3941 = vmatpush.bf16.msra.mxu0 %v3035
    %3942 = vmatpush.bf16.msra.mxu0 %v3031
    %3943 = vmatmul.bf16.gmra.mxu0 %v616
    %v3944 = vpop.f32.mrf.mxu0
    %v3945 = vadd.f32 %v3931, %v3944
    %v3946 = vpop.f32.mrf.mxu0
    %v3947 = vadd.f32 %v3933, %v3946
    %3948 = vdwg.mxu0
    %3949 = vmatpush.bf16.msra.mxu0 %v3091
    %3950 = vmatpush.bf16.msra.mxu0 %v3087
    %3951 = vmatpush.bf16.msra.mxu0 %v3083
    %3952 = vmatpush.bf16.msra.mxu0 %v3079
    %3953 = vmatpush.bf16.msra.mxu0 %v3075
    %3954 = vmatpush.bf16.msra.mxu0 %v3071
    %3955 = vmatpush.bf16.msra.mxu0 %v3067
    %3956 = vmatpush.bf16.msra.mxu0 %v3063
    %3957 = vmatmul.bf16.gmra.mxu0 %v617
    %v3958 = vpop.f32.mrf.mxu0
    %v3959 = vadd.f32 %v3945, %v3958
    %v3960 = vpop.f32.mrf.mxu0
    %v3961 = vadd.f32 %v3947, %v3960
    %3962 = vdwg.mxu0
    %3963 = vmatpush.bf16.msra.mxu0 %v3123
    %3964 = vmatpush.bf16.msra.mxu0 %v3119
    %3965 = vmatpush.bf16.msra.mxu0 %v3115
    %3966 = vmatpush.bf16.msra.mxu0 %v3111
    %3967 = vmatpush.bf16.msra.mxu0 %v3107
    %3968 = vmatpush.bf16.msra.mxu0 %v3103
    %3969 = vmatpush.bf16.msra.mxu0 %v3099
    %3970 = vmatpush.bf16.msra.mxu0 %v3095
    %3971 = vmatmul.bf16.gmra.mxu0 %v618
    %v3972 = vpop.f32.mrf.mxu0
    %v3973 = vadd.f32 %v3959, %v3972
    %v3974 = vpop.f32.mrf.mxu0
    %v3975 = vadd.f32 %v3961, %v3974
    %3976 = vdwg.mxu0
    %3977 = vmatpush.bf16.msra.mxu0 %v3155
    %3978 = vmatpush.bf16.msra.mxu0 %v3151
    %3979 = vmatpush.bf16.msra.mxu0 %v3147
    %3980 = vmatpush.bf16.msra.mxu0 %v3143
    %3981 = vmatpush.bf16.msra.mxu0 %v3139
    %3982 = vmatpush.bf16.msra.mxu0 %v3135
    %3983 = vmatpush.bf16.msra.mxu0 %v3131
    %3984 = vmatpush.bf16.msra.mxu0 %v3127
    %3985 = vmatmul.bf16.gmra.mxu0 %v619
    %v3986 = vpop.f32.mrf.mxu0
    %v3987 = vadd.f32 %v3973, %v3986
    %v3988 = vpop.f32.mrf.mxu0
    %v3989 = vadd.f32 %v3975, %v3988
    %3990 = vdwg.mxu0
    %3991 = vmatpush.bf16.msra.mxu0 %v3187
    %3992 = vmatpush.bf16.msra.mxu0 %v3183
    %3993 = vmatpush.bf16.msra.mxu0 %v3179
    %3994 = vmatpush.bf16.msra.mxu0 %v3175
    %3995 = vmatpush.bf16.msra.mxu0 %v3171
    %3996 = vmatpush.bf16.msra.mxu0 %v3167
    %3997 = vmatpush.bf16.msra.mxu0 %v3163
    %3998 = vmatpush.bf16.msra.mxu0 %v3159
    %3999 = vmatmul.bf16.gmra.mxu0 %v620
    %v4000 = vpop.f32.mrf.mxu0
    %v4001 = vadd.f32 %v3987, %v4000
    %v4002 = vpop.f32.mrf.mxu0
    %v4003 = vadd.f32 %v3989, %v4002
    %4004 = vdwg.mxu0
    %4005 = vmatpush.bf16.msra.mxu0 %v3219
    %4006 = vmatpush.bf16.msra.mxu0 %v3215
    %4007 = vmatpush.bf16.msra.mxu0 %v3211
    %4008 = vmatpush.bf16.msra.mxu0 %v3207
    %4009 = vmatpush.bf16.msra.mxu0 %v3203
    %4010 = vmatpush.bf16.msra.mxu0 %v3199
    %4011 = vmatpush.bf16.msra.mxu0 %v3195
    %4012 = vmatpush.bf16.msra.mxu0 %v3191
    %4013 = vmatmul.bf16.gmra.mxu0 %v621
    %v4014 = vpop.f32.mrf.mxu0
    %v4015 = vadd.f32 %v4001, %v4014
    %v4016 = vpop.f32.mrf.mxu0
    %v4017 = vadd.f32 %v4003, %v4016
    %4018 = vdwg.mxu0
    %4019 = vmatpush.bf16.msra.mxu0 %v3251
    %4020 = vmatpush.bf16.msra.mxu0 %v3247
    %4021 = vmatpush.bf16.msra.mxu0 %v3243
    %4022 = vmatpush.bf16.msra.mxu0 %v3239
    %4023 = vmatpush.bf16.msra.mxu0 %v3235
    %4024 = vmatpush.bf16.msra.mxu0 %v3231
    %4025 = vmatpush.bf16.msra.mxu0 %v3227
    %4026 = vmatpush.bf16.msra.mxu0 %v3223
    %4027 = vmatmul.bf16.gmra.mxu0 %v622
    %v4028 = vpop.f32.mrf.mxu0
    %v4029 = vadd.f32 %v4015, %v4028
    %v4030 = vpop.f32.mrf.mxu0
    %v4031 = vadd.f32 %v4017, %v4030
    %4032 = vdwg.mxu0
    %4033 = vmatpush.bf16.msra.mxu0 %v3283
    %4034 = vmatpush.bf16.msra.mxu0 %v3279
    %4035 = vmatpush.bf16.msra.mxu0 %v3275
    %4036 = vmatpush.bf16.msra.mxu0 %v3271
    %4037 = vmatpush.bf16.msra.mxu0 %v3267
    %4038 = vmatpush.bf16.msra.mxu0 %v3263
    %4039 = vmatpush.bf16.msra.mxu0 %v3259
    %4040 = vmatpush.bf16.msra.mxu0 %v3255
    %4041 = vmatmul.bf16.gmra.mxu0 %v623
    %v4042 = vpop.f32.mrf.mxu0
    %v4043 = vadd.f32 %v4029, %v4042
    %v4044 = vpop.f32.mrf.mxu0
    %v4045 = vadd.f32 %v4031, %v4044
    %4046 = vdwg.mxu0
    %4047 = vmatpush.bf16.msra.mxu0 %v3315
    %4048 = vmatpush.bf16.msra.mxu0 %v3311
    %4049 = vmatpush.bf16.msra.mxu0 %v3307
    %4050 = vmatpush.bf16.msra.mxu0 %v3303
    %4051 = vmatpush.bf16.msra.mxu0 %v3299
    %4052 = vmatpush.bf16.msra.mxu0 %v3295
    %4053 = vmatpush.bf16.msra.mxu0 %v3291
    %4054 = vmatpush.bf16.msra.mxu0 %v3287
    %4055 = vmatmul.bf16.gmra.mxu0 %v624
    %v4056 = vpop.f32.mrf.mxu0
    %v4057 = vadd.f32 %v4043, %v4056
    %v4058 = vpop.f32.mrf.mxu0
    %v4059 = vadd.f32 %v4045, %v4058
    %4060 = vdwg.mxu0
    %4061 = vmatpush.bf16.msra.mxu0 %v3347
    %4062 = vmatpush.bf16.msra.mxu0 %v3343
    %4063 = vmatpush.bf16.msra.mxu0 %v3339
    %4064 = vmatpush.bf16.msra.mxu0 %v3335
    %4065 = vmatpush.bf16.msra.mxu0 %v3331
    %4066 = vmatpush.bf16.msra.mxu0 %v3327
    %4067 = vmatpush.bf16.msra.mxu0 %v3323
    %4068 = vmatpush.bf16.msra.mxu0 %v3319
    %4069 = vmatmul.bf16.gmra.mxu0 %v625
    %v4070 = vpop.f32.mrf.mxu0
    %v4071 = vadd.f32 %v4057, %v4070
    %v4072 = vpop.f32.mrf.mxu0
    %v4073 = vadd.f32 %v4059, %v4072
    %4074 = vdwg.mxu0
    %4075 = vmatpush.bf16.msra.mxu0 %v3379
    %4076 = vmatpush.bf16.msra.mxu0 %v3375
    %4077 = vmatpush.bf16.msra.mxu0 %v3371
    %4078 = vmatpush.bf16.msra.mxu0 %v3367
    %4079 = vmatpush.bf16.msra.mxu0 %v3363
    %4080 = vmatpush.bf16.msra.mxu0 %v3359
    %4081 = vmatpush.bf16.msra.mxu0 %v3355
    %4082 = vmatpush.bf16.msra.mxu0 %v3351
    %4083 = vmatmul.bf16.gmra.mxu0 %v626
    %v4084 = vpop.f32.mrf.mxu0
    %v4085 = vadd.f32 %v4071, %v4084
    %v4086 = vpop.f32.mrf.mxu0
    %v4087 = vadd.f32 %v4073, %v4086
    %4088 = vdwg.mxu0
    %4089 = vmatpush.bf16.msra.mxu0 %v3411
    %4090 = vmatpush.bf16.msra.mxu0 %v3407
    %4091 = vmatpush.bf16.msra.mxu0 %v3403
    %4092 = vmatpush.bf16.msra.mxu0 %v3399
    %4093 = vmatpush.bf16.msra.mxu0 %v3395
    %4094 = vmatpush.bf16.msra.mxu0 %v3391
    %4095 = vmatpush.bf16.msra.mxu0 %v3387
    %4096 = vmatpush.bf16.msra.mxu0 %v3383
    %4097 = vmatmul.bf16.gmra.mxu0 %v627
    %v4098 = vpop.f32.mrf.mxu0
    %v4099 = vadd.f32 %v4085, %v4098
    %v4100 = vpop.f32.mrf.mxu0
    %v4101 = vadd.f32 %v4087, %v4100
    %4102 = vdwg.mxu0
    %4103 = vmatpush.bf16.msra.mxu0 %v3443
    %4104 = vmatpush.bf16.msra.mxu0 %v3439
    %4105 = vmatpush.bf16.msra.mxu0 %v3435
    %4106 = vmatpush.bf16.msra.mxu0 %v3431
    %4107 = vmatpush.bf16.msra.mxu0 %v3427
    %4108 = vmatpush.bf16.msra.mxu0 %v3423
    %4109 = vmatpush.bf16.msra.mxu0 %v3419
    %4110 = vmatpush.bf16.msra.mxu0 %v3415
    %4111 = vmatmul.bf16.gmra.mxu0 %v628
    %v4112 = vpop.f32.mrf.mxu0
    %v4113 = vadd.f32 %v4099, %v4112
    %v4114 = vpop.f32.mrf.mxu0
    %v4115 = vadd.f32 %v4101, %v4114
    %4116 = vdwg.mxu0
    %4117 = vmatpush.bf16.msra.mxu0 %v2964
    %4118 = vmatpush.bf16.msra.mxu0 %v2960
    %4119 = vmatpush.bf16.msra.mxu0 %v2956
    %4120 = vmatpush.bf16.msra.mxu0 %v2952
    %4121 = vmatpush.bf16.msra.mxu0 %v2948
    %4122 = vmatpush.bf16.msra.mxu0 %v2944
    %4123 = vmatpush.bf16.msra.mxu0 %v2940
    %4124 = vmatpush.bf16.msra.mxu0 %v2936
    %4125 = vmatmul.bf16.gmra.mxu0 %v613
    %v4126 = vpop.f32.mrf.mxu0
    %v4127 = vadd.f32 0.0, %v4126
    %v4128 = vpop.f32.mrf.mxu0
    %v4129 = vadd.f32 0.0, %v4128
    %4130 = vdwg.mxu0
    %4131 = vmatpush.bf16.msra.mxu0 %v2996
    %4132 = vmatpush.bf16.msra.mxu0 %v2992
    %4133 = vmatpush.bf16.msra.mxu0 %v2988
    %4134 = vmatpush.bf16.msra.mxu0 %v2984
    %4135 = vmatpush.bf16.msra.mxu0 %v2980
    %4136 = vmatpush.bf16.msra.mxu0 %v2976
    %4137 = vmatpush.bf16.msra.mxu0 %v2972
    %4138 = vmatpush.bf16.msra.mxu0 %v2968
    %4139 = vmatmul.bf16.gmra.mxu0 %v614
    %v4140 = vpop.f32.mrf.mxu0
    %v4141 = vadd.f32 %v4127, %v4140
    %v4142 = vpop.f32.mrf.mxu0
    %v4143 = vadd.f32 %v4129, %v4142
    %4144 = vdwg.mxu0
    %4145 = vmatpush.bf16.msra.mxu0 %v3028
    %4146 = vmatpush.bf16.msra.mxu0 %v3024
    %4147 = vmatpush.bf16.msra.mxu0 %v3020
    %4148 = vmatpush.bf16.msra.mxu0 %v3016
    %4149 = vmatpush.bf16.msra.mxu0 %v3012
    %4150 = vmatpush.bf16.msra.mxu0 %v3008
    %4151 = vmatpush.bf16.msra.mxu0 %v3004
    %4152 = vmatpush.bf16.msra.mxu0 %v3000
    %4153 = vmatmul.bf16.gmra.mxu0 %v615
    %v4154 = vpop.f32.mrf.mxu0
    %v4155 = vadd.f32 %v4141, %v4154
    %v4156 = vpop.f32.mrf.mxu0
    %v4157 = vadd.f32 %v4143, %v4156
    %4158 = vdwg.mxu0
    %4159 = vmatpush.bf16.msra.mxu0 %v3060
    %4160 = vmatpush.bf16.msra.mxu0 %v3056
    %4161 = vmatpush.bf16.msra.mxu0 %v3052
    %4162 = vmatpush.bf16.msra.mxu0 %v3048
    %4163 = vmatpush.bf16.msra.mxu0 %v3044
    %4164 = vmatpush.bf16.msra.mxu0 %v3040
    %4165 = vmatpush.bf16.msra.mxu0 %v3036
    %4166 = vmatpush.bf16.msra.mxu0 %v3032
    %4167 = vmatmul.bf16.gmra.mxu0 %v616
    %v4168 = vpop.f32.mrf.mxu0
    %v4169 = vadd.f32 %v4155, %v4168
    %v4170 = vpop.f32.mrf.mxu0
    %v4171 = vadd.f32 %v4157, %v4170
    %4172 = vdwg.mxu0
    %4173 = vmatpush.bf16.msra.mxu0 %v3092
    %4174 = vmatpush.bf16.msra.mxu0 %v3088
    %4175 = vmatpush.bf16.msra.mxu0 %v3084
    %4176 = vmatpush.bf16.msra.mxu0 %v3080
    %4177 = vmatpush.bf16.msra.mxu0 %v3076
    %4178 = vmatpush.bf16.msra.mxu0 %v3072
    %4179 = vmatpush.bf16.msra.mxu0 %v3068
    %4180 = vmatpush.bf16.msra.mxu0 %v3064
    %4181 = vmatmul.bf16.gmra.mxu0 %v617
    %v4182 = vpop.f32.mrf.mxu0
    %v4183 = vadd.f32 %v4169, %v4182
    %v4184 = vpop.f32.mrf.mxu0
    %v4185 = vadd.f32 %v4171, %v4184
    %4186 = vdwg.mxu0
    %4187 = vmatpush.bf16.msra.mxu0 %v3124
    %4188 = vmatpush.bf16.msra.mxu0 %v3120
    %4189 = vmatpush.bf16.msra.mxu0 %v3116
    %4190 = vmatpush.bf16.msra.mxu0 %v3112
    %4191 = vmatpush.bf16.msra.mxu0 %v3108
    %4192 = vmatpush.bf16.msra.mxu0 %v3104
    %4193 = vmatpush.bf16.msra.mxu0 %v3100
    %4194 = vmatpush.bf16.msra.mxu0 %v3096
    %4195 = vmatmul.bf16.gmra.mxu0 %v618
    %v4196 = vpop.f32.mrf.mxu0
    %v4197 = vadd.f32 %v4183, %v4196
    %v4198 = vpop.f32.mrf.mxu0
    %v4199 = vadd.f32 %v4185, %v4198
    %4200 = vdwg.mxu0
    %4201 = vmatpush.bf16.msra.mxu0 %v3156
    %4202 = vmatpush.bf16.msra.mxu0 %v3152
    %4203 = vmatpush.bf16.msra.mxu0 %v3148
    %4204 = vmatpush.bf16.msra.mxu0 %v3144
    %4205 = vmatpush.bf16.msra.mxu0 %v3140
    %4206 = vmatpush.bf16.msra.mxu0 %v3136
    %4207 = vmatpush.bf16.msra.mxu0 %v3132
    %4208 = vmatpush.bf16.msra.mxu0 %v3128
    %4209 = vmatmul.bf16.gmra.mxu0 %v619
    %v4210 = vpop.f32.mrf.mxu0
    %v4211 = vadd.f32 %v4197, %v4210
    %v4212 = vpop.f32.mrf.mxu0
    %v4213 = vadd.f32 %v4199, %v4212
    %4214 = vdwg.mxu0
    %4215 = vmatpush.bf16.msra.mxu0 %v3188
    %4216 = vmatpush.bf16.msra.mxu0 %v3184
    %4217 = vmatpush.bf16.msra.mxu0 %v3180
    %4218 = vmatpush.bf16.msra.mxu0 %v3176
    %4219 = vmatpush.bf16.msra.mxu0 %v3172
    %4220 = vmatpush.bf16.msra.mxu0 %v3168
    %4221 = vmatpush.bf16.msra.mxu0 %v3164
    %4222 = vmatpush.bf16.msra.mxu0 %v3160
    %4223 = vmatmul.bf16.gmra.mxu0 %v620
    %v4224 = vpop.f32.mrf.mxu0
    %v4225 = vadd.f32 %v4211, %v4224
    %v4226 = vpop.f32.mrf.mxu0
    %v4227 = vadd.f32 %v4213, %v4226
    %4228 = vdwg.mxu0
    %4229 = vmatpush.bf16.msra.mxu0 %v3220
    %4230 = vmatpush.bf16.msra.mxu0 %v3216
    %4231 = vmatpush.bf16.msra.mxu0 %v3212
    %4232 = vmatpush.bf16.msra.mxu0 %v3208
    %4233 = vmatpush.bf16.msra.mxu0 %v3204
    %4234 = vmatpush.bf16.msra.mxu0 %v3200
    %4235 = vmatpush.bf16.msra.mxu0 %v3196
    %4236 = vmatpush.bf16.msra.mxu0 %v3192
    %4237 = vmatmul.bf16.gmra.mxu0 %v621
    %v4238 = vpop.f32.mrf.mxu0
    %v4239 = vadd.f32 %v4225, %v4238
    %v4240 = vpop.f32.mrf.mxu0
    %v4241 = vadd.f32 %v4227, %v4240
    %4242 = vdwg.mxu0
    %4243 = vmatpush.bf16.msra.mxu0 %v3252
    %4244 = vmatpush.bf16.msra.mxu0 %v3248
    %4245 = vmatpush.bf16.msra.mxu0 %v3244
    %4246 = vmatpush.bf16.msra.mxu0 %v3240
    %4247 = vmatpush.bf16.msra.mxu0 %v3236
    %4248 = vmatpush.bf16.msra.mxu0 %v3232
    %4249 = vmatpush.bf16.msra.mxu0 %v3228
    %4250 = vmatpush.bf16.msra.mxu0 %v3224
    %4251 = vmatmul.bf16.gmra.mxu0 %v622
    %v4252 = vpop.f32.mrf.mxu0
    %v4253 = vadd.f32 %v4239, %v4252
    %v4254 = vpop.f32.mrf.mxu0
    %v4255 = vadd.f32 %v4241, %v4254
    %4256 = vdwg.mxu0
    %4257 = vmatpush.bf16.msra.mxu0 %v3284
    %4258 = vmatpush.bf16.msra.mxu0 %v3280
    %4259 = vmatpush.bf16.msra.mxu0 %v3276
    %4260 = vmatpush.bf16.msra.mxu0 %v3272
    %4261 = vmatpush.bf16.msra.mxu0 %v3268
    %4262 = vmatpush.bf16.msra.mxu0 %v3264
    %4263 = vmatpush.bf16.msra.mxu0 %v3260
    %4264 = vmatpush.bf16.msra.mxu0 %v3256
    %4265 = vmatmul.bf16.gmra.mxu0 %v623
    %v4266 = vpop.f32.mrf.mxu0
    %v4267 = vadd.f32 %v4253, %v4266
    %v4268 = vpop.f32.mrf.mxu0
    %v4269 = vadd.f32 %v4255, %v4268
    %4270 = vdwg.mxu0
    %4271 = vmatpush.bf16.msra.mxu0 %v3316
    %4272 = vmatpush.bf16.msra.mxu0 %v3312
    %4273 = vmatpush.bf16.msra.mxu0 %v3308
    %4274 = vmatpush.bf16.msra.mxu0 %v3304
    %4275 = vmatpush.bf16.msra.mxu0 %v3300
    %4276 = vmatpush.bf16.msra.mxu0 %v3296
    %4277 = vmatpush.bf16.msra.mxu0 %v3292
    %4278 = vmatpush.bf16.msra.mxu0 %v3288
    %4279 = vmatmul.bf16.gmra.mxu0 %v624
    %v4280 = vpop.f32.mrf.mxu0
    %v4281 = vadd.f32 %v4267, %v4280
    %v4282 = vpop.f32.mrf.mxu0
    %v4283 = vadd.f32 %v4269, %v4282
    %4284 = vdwg.mxu0
    %4285 = vmatpush.bf16.msra.mxu0 %v3348
    %4286 = vmatpush.bf16.msra.mxu0 %v3344
    %4287 = vmatpush.bf16.msra.mxu0 %v3340
    %4288 = vmatpush.bf16.msra.mxu0 %v3336
    %4289 = vmatpush.bf16.msra.mxu0 %v3332
    %4290 = vmatpush.bf16.msra.mxu0 %v3328
    %4291 = vmatpush.bf16.msra.mxu0 %v3324
    %4292 = vmatpush.bf16.msra.mxu0 %v3320
    %4293 = vmatmul.bf16.gmra.mxu0 %v625
    %v4294 = vpop.f32.mrf.mxu0
    %v4295 = vadd.f32 %v4281, %v4294
    %v4296 = vpop.f32.mrf.mxu0
    %v4297 = vadd.f32 %v4283, %v4296
    %4298 = vdwg.mxu0
    %4299 = vmatpush.bf16.msra.mxu0 %v3380
    %4300 = vmatpush.bf16.msra.mxu0 %v3376
    %4301 = vmatpush.bf16.msra.mxu0 %v3372
    %4302 = vmatpush.bf16.msra.mxu0 %v3368
    %4303 = vmatpush.bf16.msra.mxu0 %v3364
    %4304 = vmatpush.bf16.msra.mxu0 %v3360
    %4305 = vmatpush.bf16.msra.mxu0 %v3356
    %4306 = vmatpush.bf16.msra.mxu0 %v3352
    %4307 = vmatmul.bf16.gmra.mxu0 %v626
    %v4308 = vpop.f32.mrf.mxu0
    %v4309 = vadd.f32 %v4295, %v4308
    %v4310 = vpop.f32.mrf.mxu0
    %v4311 = vadd.f32 %v4297, %v4310
    %4312 = vdwg.mxu0
    %4313 = vmatpush.bf16.msra.mxu0 %v3412
    %4314 = vmatpush.bf16.msra.mxu0 %v3408
    %4315 = vmatpush.bf16.msra.mxu0 %v3404
    %4316 = vmatpush.bf16.msra.mxu0 %v3400
    %4317 = vmatpush.bf16.msra.mxu0 %v3396
    %4318 = vmatpush.bf16.msra.mxu0 %v3392
    %4319 = vmatpush.bf16.msra.mxu0 %v3388
    %4320 = vmatpush.bf16.msra.mxu0 %v3384
    %4321 = vmatmul.bf16.gmra.mxu0 %v627
    %v4322 = vpop.f32.mrf.mxu0
    %v4323 = vadd.f32 %v4309, %v4322
    %v4324 = vpop.f32.mrf.mxu0
    %v4325 = vadd.f32 %v4311, %v4324
    %4326 = vdwg.mxu0
    %4327 = vmatpush.bf16.msra.mxu0 %v3444
    %4328 = vmatpush.bf16.msra.mxu0 %v3440
    %4329 = vmatpush.bf16.msra.mxu0 %v3436
    %4330 = vmatpush.bf16.msra.mxu0 %v3432
    %4331 = vmatpush.bf16.msra.mxu0 %v3428
    %4332 = vmatpush.bf16.msra.mxu0 %v3424
    %4333 = vmatpush.bf16.msra.mxu0 %v3420
    %4334 = vmatpush.bf16.msra.mxu0 %v3416
    %4335 = vmatmul.bf16.gmra.mxu0 %v628
    %v4336 = vpop.f32.mrf.mxu0
    %v4337 = vadd.f32 %v4323, %v4336
    %v4338 = vpop.f32.mrf.mxu0
    %v4339 = vadd.f32 %v4325, %v4338
    %4340 = vdwg.mxu0
    %v4341 = vld [vmem:[%s5] sm:$0xf]
    %v4343 = vperm.slane %v4341, 0
    %v4344 = vperm.slane %v4341, 1
    %v4345 = vperm.slane %v4341, 2
    %v4346 = vperm.slane %v4341, 3
    %v4351 = vmul.f32 %v3665, %v4343
    %v4352 = vmul.f32 %v3889, %v4344
    %v4353 = vmul.f32 %v4113, %v4345
    %v4354 = vmul.f32 %v4337, %v4346
    %v4355 = vmul.f32 %v3667, %v4343
    %v4356 = vmul.f32 %v3891, %v4344
    %v4357 = vmul.f32 %v4115, %v4345
    %v4358 = vmul.f32 %v4339, %v4346
    %v4359 = vld [vmem:[%s6] sm:$0xf]
    %v4361 = vperm.slane %v4359, 0
    %v4362 = vperm.slane %v4359, 1
    %v4363 = vperm.slane %v4359, 2
    %v4364 = vperm.slane %v4359, 3
    %v4369 = vadd.f32 %v4351, %v4361
    %v4370 = vadd.f32 %v4352, %v4362
    %v4371 = vadd.f32 %v4353, %v4363
    %v4372 = vadd.f32 %v4354, %v4364
    %v4373 = vadd.f32 %v4355, %v4361
    %v4374 = vadd.f32 %v4356, %v4362
    %v4375 = vadd.f32 %v4357, %v4363
    %v4376 = vadd.f32 %v4358, %v4364
    %v4377 = vmax.f32 %v4369, 0.0
    %v4378 = vmax.f32 %v4370, 0.0
    %v4379 = vmax.f32 %v4371, 0.0
    %v4380 = vmax.f32 %v4372, 0.0
    %v4381 = vmax.f32 %v4373, 0.0
    %v4382 = vmax.f32 %v4374, 0.0
    %v4383 = vmax.f32 %v4375, 0.0
    %v4384 = vmax.f32 %v4376, 0.0
    %v4385 = vpack.c.bf16 %v4381, %v4377
    %v4386 = vpack.c.bf16 %v4382, %v4378
    %v4387 = vpack.c.bf16 %v4383, %v4379
    %v4388 = vpack.c.bf16 %v4384, %v4380
    %v4389 = vld [vmem:[#allocation7] sm:$0xff]
    %v4390 = vld [vmem:[#allocation7 + $0x8] sm:$0xff]
    %v4391 = vld [vmem:[#allocation7 + $0x10] sm:$0xff]
    %v4392 = vld [vmem:[#allocation7 + $0x18] sm:$0xff]
    %v4393 = vld [vmem:[#allocation7 + $0x20] sm:$0xff]
    %v4394 = vld [vmem:[#allocation7 + $0x28] sm:$0xff]
    %v4395 = vld [vmem:[#allocation7 + $0x30] sm:$0xff]
    %v4396 = vld [vmem:[#allocation7 + $0x38] sm:$0xff]
    %v4397 = vld [vmem:[#allocation7 + $0x40] sm:$0xff]
    %v4398 = vld [vmem:[#allocation7 + $0x48] sm:$0xff]
    %v4399 = vld [vmem:[#allocation7 + $0x50] sm:$0xff]
    %v4400 = vld [vmem:[#allocation7 + $0x58] sm:$0xff]
    %v4401 = vld [vmem:[#allocation7 + $0x60] sm:$0xff]
    %v4402 = vld [vmem:[#allocation7 + $0x68] sm:$0xff]
    %v4403 = vld [vmem:[#allocation7 + $0x70] sm:$0xff]
    %v4404 = vld [vmem:[#allocation7 + $0x78] sm:$0xff]
    %v4405 = vld [vmem:[#allocation7 + $0x80] sm:$0xff]
    %v4406 = vld [vmem:[#allocation7 + $0x88] sm:$0xff]
    %v4407 = vld [vmem:[#allocation7 + $0x90] sm:$0xff]
    %v4408 = vld [vmem:[#allocation7 + $0x98] sm:$0xff]
    %v4409 = vld [vmem:[#allocation7 + $0xa0] sm:$0xff]
    %v4410 = vld [vmem:[#allocation7 + $0xa8] sm:$0xff]
    %v4411 = vld [vmem:[#allocation7 + $0xb0] sm:$0xff]
    %v4412 = vld [vmem:[#allocation7 + $0xb8] sm:$0xff]
    %v4413 = vld [vmem:[#allocation7 + $0xc0] sm:$0xff]
    %v4414 = vld [vmem:[#allocation7 + $0xc8] sm:$0xff]
    %v4415 = vld [vmem:[#allocation7 + $0xd0] sm:$0xff]
    %v4416 = vld [vmem:[#allocation7 + $0xd8] sm:$0xff]
    %v4417 = vld [vmem:[#allocation7 + $0xe0] sm:$0xff]
    %v4418 = vld [vmem:[#allocation7 + $0xe8] sm:$0xff]
    %v4419 = vld [vmem:[#allocation7 + $0xf0] sm:$0xff]
    %v4420 = vld [vmem:[#allocation7 + $0xf8] sm:$0xff]
    %v4421 = vld [vmem:[#allocation7 + $0x100] sm:$0xff]
    %v4422 = vld [vmem:[#allocation7 + $0x108] sm:$0xff]
    %v4423 = vld [vmem:[#allocation7 + $0x110] sm:$0xff]
    %v4424 = vld [vmem:[#allocation7 + $0x118] sm:$0xff]
    %v4425 = vld [vmem:[#allocation7 + $0x120] sm:$0xff]
    %v4426 = vld [vmem:[#allocation7 + $0x128] sm:$0xff]
    %v4427 = vld [vmem:[#allocation7 + $0x130] sm:$0xff]
    %v4428 = vld [vmem:[#allocation7 + $0x138] sm:$0xff]
    %v4429 = vld [vmem:[#allocation7 + $0x140] sm:$0xff]
    %v4430 = vld [vmem:[#allocation7 + $0x148] sm:$0xff]
    %v4431 = vld [vmem:[#allocation7 + $0x150] sm:$0xff]
    %v4432 = vld [vmem:[#allocation7 + $0x158] sm:$0xff]
    %v4433 = vld [vmem:[#allocation7 + $0x160] sm:$0xff]
    %v4434 = vld [vmem:[#allocation7 + $0x168] sm:$0xff]
    %v4435 = vld [vmem:[#allocation7 + $0x170] sm:$0xff]
    %v4436 = vld [vmem:[#allocation7 + $0x178] sm:$0xff]
    %v4437 = vld [vmem:[#allocation7 + $0x180] sm:$0xff]
    %v4438 = vld [vmem:[#allocation7 + $0x188] sm:$0xff]
    %v4439 = vld [vmem:[#allocation7 + $0x190] sm:$0xff]
    %v4440 = vld [vmem:[#allocation7 + $0x198] sm:$0xff]
    %v4441 = vld [vmem:[#allocation7 + $0x1a0] sm:$0xff]
    %v4442 = vld [vmem:[#allocation7 + $0x1a8] sm:$0xff]
    %v4443 = vld [vmem:[#allocation7 + $0x1b0] sm:$0xff]
    %v4444 = vld [vmem:[#allocation7 + $0x1b8] sm:$0xff]
    %v4445 = vld [vmem:[#allocation7 + $0x1c0] sm:$0xff]
    %v4446 = vld [vmem:[#allocation7 + $0x1c8] sm:$0xff]
    %v4447 = vld [vmem:[#allocation7 + $0x1d0] sm:$0xff]
    %v4448 = vld [vmem:[#allocation7 + $0x1d8] sm:$0xff]
    %v4449 = vld [vmem:[#allocation7 + $0x1e0] sm:$0xff]
    %v4450 = vld [vmem:[#allocation7 + $0x1e8] sm:$0xff]
    %v4451 = vld [vmem:[#allocation7 + $0x1f0] sm:$0xff]
    %v4452 = vld [vmem:[#allocation7 + $0x1f8] sm:$0xff]
    %v4453 = vunpack.c.0.s8 %v4389
    %v4454 = vunpack.c.0.s8 %v4390
    %v4455 = vunpack.c.0.s8 %v4391
    %v4456 = vunpack.c.0.s8 %v4392
    %v4457 = vunpack.c.1.s8 %v4389
    %v4458 = vunpack.c.1.s8 %v4390
    %v4459 = vunpack.c.1.s8 %v4391
    %v4460 = vunpack.c.1.s8 %v4392
    %v4461 = vunpack.c.2.s8 %v4389
    %v4462 = vunpack.c.2.s8 %v4390
    %v4463 = vunpack.c.2.s8 %v4391
    %v4464 = vunpack.c.2.s8 %v4392
    %v4465 = vunpack.c.3.s8 %v4389
    %v4466 = vunpack.c.3.s8 %v4390
    %v4467 = vunpack.c.3.s8 %v4391
    %v4468 = vunpack.c.3.s8 %v4392
    %v4469 = vunpack.c.0.s8 %v4393
    %v4470 = vunpack.c.0.s8 %v4394
    %v4471 = vunpack.c.0.s8 %v4395
    %v4472 = vunpack.c.0.s8 %v4396
    %v4473 = vunpack.c.1.s8 %v4393
    %v4474 = vunpack.c.1.s8 %v4394
    %v4475 = vunpack.c.1.s8 %v4395
    %v4476 = vunpack.c.1.s8 %v4396
    %v4477 = vunpack.c.2.s8 %v4393
    %v4478 = vunpack.c.2.s8 %v4394
    %v4479 = vunpack.c.2.s8 %v4395
    %v4480 = vunpack.c.2.s8 %v4396
    %v4481 = vunpack.c.3.s8 %v4393
    %v4482 = vunpack.c.3.s8 %v4394
    %v4483 = vunpack.c.3.s8 %v4395
    %v4484 = vunpack.c.3.s8 %v4396
    %v4485 = vunpack.c.0.s8 %v4397
    %v4486 = vunpack.c.0.s8 %v4398
    %v4487 = vunpack.c.0.s8 %v4399
    %v4488 = vunpack.c.0.s8 %v4400
    %v4489 = vunpack.c.1.s8 %v4397
    %v4490 = vunpack.c.1.s8 %v4398
    %v4491 = vunpack.c.1.s8 %v4399
    %v4492 = vunpack.c.1.s8 %v4400
    %v4493 = vunpack.c.2.s8 %v4397
    %v4494 = vunpack.c.2.s8 %v4398
    %v4495 = vunpack.c.2.s8 %v4399
    %v4496 = vunpack.c.2.s8 %v4400
    %v4497 = vunpack.c.3.s8 %v4397
    %v4498 = vunpack.c.3.s8 %v4398
    %v4499 = vunpack.c.3.s8 %v4399
    %v4500 = vunpack.c.3.s8 %v4400
    %v4501 = vunpack.c.0.s8 %v4401
    %v4502 = vunpack.c.0.s8 %v4402
    %v4503 = vunpack.c.0.s8 %v4403
    %v4504 = vunpack.c.0.s8 %v4404
    %v4505 = vunpack.c.1.s8 %v4401
    %v4506 = vunpack.c.1.s8 %v4402
    %v4507 = vunpack.c.1.s8 %v4403
    %v4508 = vunpack.c.1.s8 %v4404
    %v4509 = vunpack.c.2.s8 %v4401
    %v4510 = vunpack.c.2.s8 %v4402
    %v4511 = vunpack.c.2.s8 %v4403
    %v4512 = vunpack.c.2.s8 %v4404
    %v4513 = vunpack.c.3.s8 %v4401
    %v4514 = vunpack.c.3.s8 %v4402
    %v4515 = vunpack.c.3.s8 %v4403
    %v4516 = vunpack.c.3.s8 %v4404
    %v4517 = vunpack.c.0.s8 %v4405
    %v4518 = vunpack.c.0.s8 %v4406
    %v4519 = vunpack.c.0.s8 %v4407
    %v4520 = vunpack.c.0.s8 %v4408
    %v4521 = vunpack.c.1.s8 %v4405
    %v4522 = vunpack.c.1.s8 %v4406
    %v4523 = vunpack.c.1.s8 %v4407
    %v4524 = vunpack.c.1.s8 %v4408
    %v4525 = vunpack.c.2.s8 %v4405
    %v4526 = vunpack.c.2.s8 %v4406
    %v4527 = vunpack.c.2.s8 %v4407
    %v4528 = vunpack.c.2.s8 %v4408
    %v4529 = vunpack.c.3.s8 %v4405
    %v4530 = vunpack.c.3.s8 %v4406
    %v4531 = vunpack.c.3.s8 %v4407
    %v4532 = vunpack.c.3.s8 %v4408
    %v4533 = vunpack.c.0.s8 %v4409
    %v4534 = vunpack.c.0.s8 %v4410
    %v4535 = vunpack.c.0.s8 %v4411
    %v4536 = vunpack.c.0.s8 %v4412
    %v4537 = vunpack.c.1.s8 %v4409
    %v4538 = vunpack.c.1.s8 %v4410
    %v4539 = vunpack.c.1.s8 %v4411
    %v4540 = vunpack.c.1.s8 %v4412
    %v4541 = vunpack.c.2.s8 %v4409
    %v4542 = vunpack.c.2.s8 %v4410
    %v4543 = vunpack.c.2.s8 %v4411
    %v4544 = vunpack.c.2.s8 %v4412
    %v4545 = vunpack.c.3.s8 %v4409
    %v4546 = vunpack.c.3.s8 %v4410
    %v4547 = vunpack.c.3.s8 %v4411
    %v4548 = vunpack.c.3.s8 %v4412
    %v4549 = vunpack.c.0.s8 %v4413
    %v4550 = vunpack.c.0.s8 %v4414
    %v4551 = vunpack.c.0.s8 %v4415
    %v4552 = vunpack.c.0.s8 %v4416
    %v4553 = vunpack.c.1.s8 %v4413
    %v4554 = vunpack.c.1.s8 %v4414
    %v4555 = vunpack.c.1.s8 %v4415
    %v4556 = vunpack.c.1.s8 %v4416
    %v4557 = vunpack.c.2.s8 %v4413
    %v4558 = vunpack.c.2.s8 %v4414
    %v4559 = vunpack.c.2.s8 %v4415
    %v4560 = vunpack.c.2.s8 %v4416
    %v4561 = vunpack.c.3.s8 %v4413
    %v4562 = vunpack.c.3.s8 %v4414
    %v4563 = vunpack.c.3.s8 %v4415
    %v4564 = vunpack.c.3.s8 %v4416
    %v4565 = vunpack.c.0.s8 %v4417
    %v4566 = vunpack.c.0.s8 %v4418
    %v4567 = vunpack.c.0.s8 %v4419
    %v4568 = vunpack.c.0.s8 %v4420
    %v4569 = vunpack.c.1.s8 %v4417
    %v4570 = vunpack.c.1.s8 %v4418
    %v4571 = vunpack.c.1.s8 %v4419
    %v4572 = vunpack.c.1.s8 %v4420
    %v4573 = vunpack.c.2.s8 %v4417
    %v4574 = vunpack.c.2.s8 %v4418
    %v4575 = vunpack.c.2.s8 %v4419
    %v4576 = vunpack.c.2.s8 %v4420
    %v4577 = vunpack.c.3.s8 %v4417
    %v4578 = vunpack.c.3.s8 %v4418
    %v4579 = vunpack.c.3.s8 %v4419
    %v4580 = vunpack.c.3.s8 %v4420
    %v4581 = vunpack.c.0.s8 %v4421
    %v4582 = vunpack.c.0.s8 %v4422
    %v4583 = vunpack.c.0.s8 %v4423
    %v4584 = vunpack.c.0.s8 %v4424
    %v4585 = vunpack.c.1.s8 %v4421
    %v4586 = vunpack.c.1.s8 %v4422
    %v4587 = vunpack.c.1.s8 %v4423
    %v4588 = vunpack.c.1.s8 %v4424
    %v4589 = vunpack.c.2.s8 %v4421
    %v4590 = vunpack.c.2.s8 %v4422
    %v4591 = vunpack.c.2.s8 %v4423
    %v4592 = vunpack.c.2.s8 %v4424
    %v4593 = vunpack.c.3.s8 %v4421
    %v4594 = vunpack.c.3.s8 %v4422
    %v4595 = vunpack.c.3.s8 %v4423
    %v4596 = vunpack.c.3.s8 %v4424
    %v4597 = vunpack.c.0.s8 %v4425
    %v4598 = vunpack.c.0.s8 %v4426
    %v4599 = vunpack.c.0.s8 %v4427
    %v4600 = vunpack.c.0.s8 %v4428
    %v4601 = vunpack.c.1.s8 %v4425
    %v4602 = vunpack.c.1.s8 %v4426
    %v4603 = vunpack.c.1.s8 %v4427
    %v4604 = vunpack.c.1.s8 %v4428
    %v4605 = vunpack.c.2.s8 %v4425
    %v4606 = vunpack.c.2.s8 %v4426
    %v4607 = vunpack.c.2.s8 %v4427
    %v4608 = vunpack.c.2.s8 %v4428
    %v4609 = vunpack.c.3.s8 %v4425
    %v4610 = vunpack.c.3.s8 %v4426
    %v4611 = vunpack.c.3.s8 %v4427
    %v4612 = vunpack.c.3.s8 %v4428
    %v4613 = vunpack.c.0.s8 %v4429
    %v4614 = vunpack.c.0.s8 %v4430
    %v4615 = vunpack.c.0.s8 %v4431
    %v4616 = vunpack.c.0.s8 %v4432
    %v4617 = vunpack.c.1.s8 %v4429
    %v4618 = vunpack.c.1.s8 %v4430
    %v4619 = vunpack.c.1.s8 %v4431
    %v4620 = vunpack.c.1.s8 %v4432
    %v4621 = vunpack.c.2.s8 %v4429
    %v4622 = vunpack.c.2.s8 %v4430
    %v4623 = vunpack.c.2.s8 %v4431
    %v4624 = vunpack.c.2.s8 %v4432
    %v4625 = vunpack.c.3.s8 %v4429
    %v4626 = vunpack.c.3.s8 %v4430
    %v4627 = vunpack.c.3.s8 %v4431
    %v4628 = vunpack.c.3.s8 %v4432
    %v4629 = vunpack.c.0.s8 %v4433
    %v4630 = vunpack.c.0.s8 %v4434
    %v4631 = vunpack.c.0.s8 %v4435
    %v4632 = vunpack.c.0.s8 %v4436
    %v4633 = vunpack.c.1.s8 %v4433
    %v4634 = vunpack.c.1.s8 %v4434
    %v4635 = vunpack.c.1.s8 %v4435
    %v4636 = vunpack.c.1.s8 %v4436
    %v4637 = vunpack.c.2.s8 %v4433
    %v4638 = vunpack.c.2.s8 %v4434
    %v4639 = vunpack.c.2.s8 %v4435
    %v4640 = vunpack.c.2.s8 %v4436
    %v4641 = vunpack.c.3.s8 %v4433
    %v4642 = vunpack.c.3.s8 %v4434
    %v4643 = vunpack.c.3.s8 %v4435
    %v4644 = vunpack.c.3.s8 %v4436
    %v4645 = vunpack.c.0.s8 %v4437
    %v4646 = vunpack.c.0.s8 %v4438
    %v4647 = vunpack.c.0.s8 %v4439
    %v4648 = vunpack.c.0.s8 %v4440
    %v4649 = vunpack.c.1.s8 %v4437
    %v4650 = vunpack.c.1.s8 %v4438
    %v4651 = vunpack.c.1.s8 %v4439
    %v4652 = vunpack.c.1.s8 %v4440
    %v4653 = vunpack.c.2.s8 %v4437
    %v4654 = vunpack.c.2.s8 %v4438
    %v4655 = vunpack.c.2.s8 %v4439
    %v4656 = vunpack.c.2.s8 %v4440
    %v4657 = vunpack.c.3.s8 %v4437
    %v4658 = vunpack.c.3.s8 %v4438
    %v4659 = vunpack.c.3.s8 %v4439
    %v4660 = vunpack.c.3.s8 %v4440
    %v4661 = vunpack.c.0.s8 %v4441
    %v4662 = vunpack.c.0.s8 %v4442
    %v4663 = vunpack.c.0.s8 %v4443
    %v4664 = vunpack.c.0.s8 %v4444
    %v4665 = vunpack.c.1.s8 %v4441
    %v4666 = vunpack.c.1.s8 %v4442
    %v4667 = vunpack.c.1.s8 %v4443
    %v4668 = vunpack.c.1.s8 %v4444
    %v4669 = vunpack.c.2.s8 %v4441
    %v4670 = vunpack.c.2.s8 %v4442
    %v4671 = vunpack.c.2.s8 %v4443
    %v4672 = vunpack.c.2.s8 %v4444
    %v4673 = vunpack.c.3.s8 %v4441
    %v4674 = vunpack.c.3.s8 %v4442
    %v4675 = vunpack.c.3.s8 %v4443
    %v4676 = vunpack.c.3.s8 %v4444
    %v4677 = vunpack.c.0.s8 %v4445
    %v4678 = vunpack.c.0.s8 %v4446
    %v4679 = vunpack.c.0.s8 %v4447
    %v4680 = vunpack.c.0.s8 %v4448
    %v4681 = vunpack.c.1.s8 %v4445
    %v4682 = vunpack.c.1.s8 %v4446
    %v4683 = vunpack.c.1.s8 %v4447
    %v4684 = vunpack.c.1.s8 %v4448
    %v4685 = vunpack.c.2.s8 %v4445
    %v4686 = vunpack.c.2.s8 %v4446
    %v4687 = vunpack.c.2.s8 %v4447
    %v4688 = vunpack.c.2.s8 %v4448
    %v4689 = vunpack.c.3.s8 %v4445
    %v4690 = vunpack.c.3.s8 %v4446
    %v4691 = vunpack.c.3.s8 %v4447
    %v4692 = vunpack.c.3.s8 %v4448
    %v4693 = vunpack.c.0.s8 %v4449
    %v4694 = vunpack.c.0.s8 %v4450
    %v4695 = vunpack.c.0.s8 %v4451
    %v4696 = vunpack.c.0.s8 %v4452
    %v4697 = vunpack.c.1.s8 %v4449
    %v4698 = vunpack.c.1.s8 %v4450
    %v4699 = vunpack.c.1.s8 %v4451
    %v4700 = vunpack.c.1.s8 %v4452
    %v4701 = vunpack.c.2.s8 %v4449
    %v4702 = vunpack.c.2.s8 %v4450
    %v4703 = vunpack.c.2.s8 %v4451
    %v4704 = vunpack.c.2.s8 %v4452
    %v4705 = vunpack.c.3.s8 %v4449
    %v4706 = vunpack.c.3.s8 %v4450
    %v4707 = vunpack.c.3.s8 %v4451
    %v4708 = vunpack.c.3.s8 %v4452
    %v4709 = vcvt.s32.f32 %v4453
    %v4710 = vcvt.s32.f32 %v4454
    %v4711 = vcvt.s32.f32 %v4455
    %v4712 = vcvt.s32.f32 %v4456
    %v4713 = vcvt.s32.f32 %v4457
    %v4714 = vcvt.s32.f32 %v4458
    %v4715 = vcvt.s32.f32 %v4459
    %v4716 = vcvt.s32.f32 %v4460
    %v4717 = vcvt.s32.f32 %v4461
    %v4718 = vcvt.s32.f32 %v4462
    %v4719 = vcvt.s32.f32 %v4463
    %v4720 = vcvt.s32.f32 %v4464
    %v4721 = vcvt.s32.f32 %v4465
    %v4722 = vcvt.s32.f32 %v4466
    %v4723 = vcvt.s32.f32 %v4467
    %v4724 = vcvt.s32.f32 %v4468
    %v4725 = vcvt.s32.f32 %v4469
    %v4726 = vcvt.s32.f32 %v4470
    %v4727 = vcvt.s32.f32 %v4471
    %v4728 = vcvt.s32.f32 %v4472
    %v4729 = vcvt.s32.f32 %v4473
    %v4730 = vcvt.s32.f32 %v4474
    %v4731 = vcvt.s32.f32 %v4475
    %v4732 = vcvt.s32.f32 %v4476
    %v4733 = vcvt.s32.f32 %v4477
    %v4734 = vcvt.s32.f32 %v4478
    %v4735 = vcvt.s32.f32 %v4479
    %v4736 = vcvt.s32.f32 %v4480
    %v4737 = vcvt.s32.f32 %v4481
    %v4738 = vcvt.s32.f32 %v4482
    %v4739 = vcvt.s32.f32 %v4483
    %v4740 = vcvt.s32.f32 %v4484
    %v4741 = vcvt.s32.f32 %v4485
    %v4742 = vcvt.s32.f32 %v4486
    %v4743 = vcvt.s32.f32 %v4487
    %v4744 = vcvt.s32.f32 %v4488
    %v4745 = vcvt.s32.f32 %v4489
    %v4746 = vcvt.s32.f32 %v4490
    %v4747 = vcvt.s32.f32 %v4491
    %v4748 = vcvt.s32.f32 %v4492
    %v4749 = vcvt.s32.f32 %v4493
    %v4750 = vcvt.s32.f32 %v4494
    %v4751 = vcvt.s32.f32 %v4495
    %v4752 = vcvt.s32.f32 %v4496
    %v4753 = vcvt.s32.f32 %v4497
    %v4754 = vcvt.s32.f32 %v4498
    %v4755 = vcvt.s32.f32 %v4499
    %v4756 = vcvt.s32.f32 %v4500
    %v4757 = vcvt.s32.f32 %v4501
    %v4758 = vcvt.s32.f32 %v4502
    %v4759 = vcvt.s32.f32 %v4503
    %v4760 = vcvt.s32.f32 %v4504
    %v4761 = vcvt.s32.f32 %v4505
    %v4762 = vcvt.s32.f32 %v4506
    %v4763 = vcvt.s32.f32 %v4507
    %v4764 = vcvt.s32.f32 %v4508
    %v4765 = vcvt.s32.f32 %v4509
    %v4766 = vcvt.s32.f32 %v4510
    %v4767 = vcvt.s32.f32 %v4511
    %v4768 = vcvt.s32.f32 %v4512
    %v4769 = vcvt.s32.f32 %v4513
    %v4770 = vcvt.s32.f32 %v4514
    %v4771 = vcvt.s32.f32 %v4515
    %v4772 = vcvt.s32.f32 %v4516
    %v4773 = vcvt.s32.f32 %v4517
    %v4774 = vcvt.s32.f32 %v4518
    %v4775 = vcvt.s32.f32 %v4519
    %v4776 = vcvt.s32.f32 %v4520
    %v4777 = vcvt.s32.f32 %v4521
    %v4778 = vcvt.s32.f32 %v4522
    %v4779 = vcvt.s32.f32 %v4523
    %v4780 = vcvt.s32.f32 %v4524
    %v4781 = vcvt.s32.f32 %v4525
    %v4782 = vcvt.s32.f32 %v4526
    %v4783 = vcvt.s32.f32 %v4527
    %v4784 = vcvt.s32.f32 %v4528
    %v4785 = vcvt.s32.f32 %v4529
    %v4786 = vcvt.s32.f32 %v4530
    %v4787 = vcvt.s32.f32 %v4531
    %v4788 = vcvt.s32.f32 %v4532
    %v4789 = vcvt.s32.f32 %v4533
    %v4790 = vcvt.s32.f32 %v4534
    %v4791 = vcvt.s32.f32 %v4535
    %v4792 = vcvt.s32.f32 %v4536
    %v4793 = vcvt.s32.f32 %v4537
    %v4794 = vcvt.s32.f32 %v4538
    %v4795 = vcvt.s32.f32 %v4539
    %v4796 = vcvt.s32.f32 %v4540
    %v4797 = vcvt.s32.f32 %v4541
    %v4798 = vcvt.s32.f32 %v4542
    %v4799 = vcvt.s32.f32 %v4543
    %v4800 = vcvt.s32.f32 %v4544
    %v4801 = vcvt.s32.f32 %v4545
    %v4802 = vcvt.s32.f32 %v4546
    %v4803 = vcvt.s32.f32 %v4547
    %v4804 = vcvt.s32.f32 %v4548
    %v4805 = vcvt.s32.f32 %v4549
    %v4806 = vcvt.s32.f32 %v4550
    %v4807 = vcvt.s32.f32 %v4551
    %v4808 = vcvt.s32.f32 %v4552
    %v4809 = vcvt.s32.f32 %v4553
    %v4810 = vcvt.s32.f32 %v4554
    %v4811 = vcvt.s32.f32 %v4555
    %v4812 = vcvt.s32.f32 %v4556
    %v4813 = vcvt.s32.f32 %v4557
    %v4814 = vcvt.s32.f32 %v4558
    %v4815 = vcvt.s32.f32 %v4559
    %v4816 = vcvt.s32.f32 %v4560
    %v4817 = vcvt.s32.f32 %v4561
    %v4818 = vcvt.s32.f32 %v4562
    %v4819 = vcvt.s32.f32 %v4563
    %v4820 = vcvt.s32.f32 %v4564
    %v4821 = vcvt.s32.f32 %v4565
    %v4822 = vcvt.s32.f32 %v4566
    %v4823 = vcvt.s32.f32 %v4567
    %v4824 = vcvt.s32.f32 %v4568
    %v4825 = vcvt.s32.f32 %v4569
    %v4826 = vcvt.s32.f32 %v4570
    %v4827 = vcvt.s32.f32 %v4571
    %v4828 = vcvt.s32.f32 %v4572
    %v4829 = vcvt.s32.f32 %v4573
    %v4830 = vcvt.s32.f32 %v4574
    %v4831 = vcvt.s32.f32 %v4575
    %v4832 = vcvt.s32.f32 %v4576
    %v4833 = vcvt.s32.f32 %v4577
    %v4834 = vcvt.s32.f32 %v4578
    %v4835 = vcvt.s32.f32 %v4579
    %v4836 = vcvt.s32.f32 %v4580
    %v4837 = vcvt.s32.f32 %v4581
    %v4838 = vcvt.s32.f32 %v4582
    %v4839 = vcvt.s32.f32 %v4583
    %v4840 = vcvt.s32.f32 %v4584
    %v4841 = vcvt.s32.f32 %v4585
    %v4842 = vcvt.s32.f32 %v4586
    %v4843 = vcvt.s32.f32 %v4587
    %v4844 = vcvt.s32.f32 %v4588
    %v4845 = vcvt.s32.f32 %v4589
    %v4846 = vcvt.s32.f32 %v4590
    %v4847 = vcvt.s32.f32 %v4591
    %v4848 = vcvt.s32.f32 %v4592
    %v4849 = vcvt.s32.f32 %v4593
    %v4850 = vcvt.s32.f32 %v4594
    %v4851 = vcvt.s32.f32 %v4595
    %v4852 = vcvt.s32.f32 %v4596
    %v4853 = vcvt.s32.f32 %v4597
    %v4854 = vcvt.s32.f32 %v4598
    %v4855 = vcvt.s32.f32 %v4599
    %v4856 = vcvt.s32.f32 %v4600
    %v4857 = vcvt.s32.f32 %v4601
    %v4858 = vcvt.s32.f32 %v4602
    %v4859 = vcvt.s32.f32 %v4603
    %v4860 = vcvt.s32.f32 %v4604
    %v4861 = vcvt.s32.f32 %v4605
    %v4862 = vcvt.s32.f32 %v4606
    %v4863 = vcvt.s32.f32 %v4607
    %v4864 = vcvt.s32.f32 %v4608
    %v4865 = vcvt.s32.f32 %v4609
    %v4866 = vcvt.s32.f32 %v4610
    %v4867 = vcvt.s32.f32 %v4611
    %v4868 = vcvt.s32.f32 %v4612
    %v4869 = vcvt.s32.f32 %v4613
    %v4870 = vcvt.s32.f32 %v4614
    %v4871 = vcvt.s32.f32 %v4615
    %v4872 = vcvt.s32.f32 %v4616
    %v4873 = vcvt.s32.f32 %v4617
    %v4874 = vcvt.s32.f32 %v4618
    %v4875 = vcvt.s32.f32 %v4619
    %v4876 = vcvt.s32.f32 %v4620
    %v4877 = vcvt.s32.f32 %v4621
    %v4878 = vcvt.s32.f32 %v4622
    %v4879 = vcvt.s32.f32 %v4623
    %v4880 = vcvt.s32.f32 %v4624
    %v4881 = vcvt.s32.f32 %v4625
    %v4882 = vcvt.s32.f32 %v4626
    %v4883 = vcvt.s32.f32 %v4627
    %v4884 = vcvt.s32.f32 %v4628
    %v4885 = vcvt.s32.f32 %v4629
    %v4886 = vcvt.s32.f32 %v4630
    %v4887 = vcvt.s32.f32 %v4631
    %v4888 = vcvt.s32.f32 %v4632
    %v4889 = vcvt.s32.f32 %v4633
    %v4890 = vcvt.s32.f32 %v4634
    %v4891 = vcvt.s32.f32 %v4635
    %v4892 = vcvt.s32.f32 %v4636
    %v4893 = vcvt.s32.f32 %v4637
    %v4894 = vcvt.s32.f32 %v4638
    %v4895 = vcvt.s32.f32 %v4639
    %v4896 = vcvt.s32.f32 %v4640
    %v4897 = vcvt.s32.f32 %v4641
    %v4898 = vcvt.s32.f32 %v4642
    %v4899 = vcvt.s32.f32 %v4643
    %v4900 = vcvt.s32.f32 %v4644
    %v4901 = vcvt.s32.f32 %v4645
    %v4902 = vcvt.s32.f32 %v4646
    %v4903 = vcvt.s32.f32 %v4647
    %v4904 = vcvt.s32.f32 %v4648
    %v4905 = vcvt.s32.f32 %v4649
    %v4906 = vcvt.s32.f32 %v4650
    %v4907 = vcvt.s32.f32 %v4651
    %v4908 = vcvt.s32.f32 %v4652
    %v4909 = vcvt.s32.f32 %v4653
    %v4910 = vcvt.s32.f32 %v4654
    %v4911 = vcvt.s32.f32 %v4655
    %v4912 = vcvt.s32.f32 %v4656
    %v4913 = vcvt.s32.f32 %v4657
    %v4914 = vcvt.s32.f32 %v4658
    %v4915 = vcvt.s32.f32 %v4659
    %v4916 = vcvt.s32.f32 %v4660
    %v4917 = vcvt.s32.f32 %v4661
    %v4918 = vcvt.s32.f32 %v4662
    %v4919 = vcvt.s32.f32 %v4663
    %v4920 = vcvt.s32.f32 %v4664
    %v4921 = vcvt.s32.f32 %v4665
    %v4922 = vcvt.s32.f32 %v4666
    %v4923 = vcvt.s32.f32 %v4667
    %v4924 = vcvt.s32.f32 %v4668
    %v4925 = vcvt.s32.f32 %v4669
    %v4926 = vcvt.s32.f32 %v4670
    %v4927 = vcvt.s32.f32 %v4671
    %v4928 = vcvt.s32.f32 %v4672
    %v4929 = vcvt.s32.f32 %v4673
    %v4930 = vcvt.s32.f32 %v4674
    %v4931 = vcvt.s32.f32 %v4675
    %v4932 = vcvt.s32.f32 %v4676
    %v4933 = vcvt.s32.f32 %v4677
    %v4934 = vcvt.s32.f32 %v4678
    %v4935 = vcvt.s32.f32 %v4679
    %v4936 = vcvt.s32.f32 %v4680
    %v4937 = vcvt.s32.f32 %v4681
    %v4938 = vcvt.s32.f32 %v4682
    %v4939 = vcvt.s32.f32 %v4683
    %v4940 = vcvt.s32.f32 %v4684
    %v4941 = vcvt.s32.f32 %v4685
    %v4942 = vcvt.s32.f32 %v4686
    %v4943 = vcvt.s32.f32 %v4687
    %v4944 = vcvt.s32.f32 %v4688
    %v4945 = vcvt.s32.f32 %v4689
    %v4946 = vcvt.s32.f32 %v4690
    %v4947 = vcvt.s32.f32 %v4691
    %v4948 = vcvt.s32.f32 %v4692
    %v4949 = vcvt.s32.f32 %v4693
    %v4950 = vcvt.s32.f32 %v4694
    %v4951 = vcvt.s32.f32 %v4695
    %v4952 = vcvt.s32.f32 %v4696
    %v4953 = vcvt.s32.f32 %v4697
    %v4954 = vcvt.s32.f32 %v4698
    %v4955 = vcvt.s32.f32 %v4699
    %v4956 = vcvt.s32.f32 %v4700
    %v4957 = vcvt.s32.f32 %v4701
    %v4958 = vcvt.s32.f32 %v4702
    %v4959 = vcvt.s32.f32 %v4703
    %v4960 = vcvt.s32.f32 %v4704
    %v4961 = vcvt.s32.f32 %v4705
    %v4962 = vcvt.s32.f32 %v4706
    %v4963 = vcvt.s32.f32 %v4707
    %v4964 = vcvt.s32.f32 %v4708
    %v4965 = vpack.c.bf16 %v4713, %v4709
    %v4966 = vpack.c.bf16 %v4714, %v4710
    %v4967 = vpack.c.bf16 %v4715, %v4711
    %v4968 = vpack.c.bf16 %v4716, %v4712
    %v4969 = vpack.c.bf16 %v4721, %v4717
    %v4970 = vpack.c.bf16 %v4722, %v4718
    %v4971 = vpack.c.bf16 %v4723, %v4719
    %v4972 = vpack.c.bf16 %v4724, %v4720
    %v4973 = vpack.c.bf16 %v4729, %v4725
    %v4974 = vpack.c.bf16 %v4730, %v4726
    %v4975 = vpack.c.bf16 %v4731, %v4727
    %v4976 = vpack.c.bf16 %v4732, %v4728
    %v4977 = vpack.c.bf16 %v4737, %v4733
    %v4978 = vpack.c.bf16 %v4738, %v4734
    %v4979 = vpack.c.bf16 %v4739, %v4735
    %v4980 = vpack.c.bf16 %v4740, %v4736
    %v4981 = vpack.c.bf16 %v4745, %v4741
    %v4982 = vpack.c.bf16 %v4746, %v4742
    %v4983 = vpack.c.bf16 %v4747, %v4743
    %v4984 = vpack.c.bf16 %v4748, %v4744
    %v4985 = vpack.c.bf16 %v4753, %v4749
    %v4986 = vpack.c.bf16 %v4754, %v4750
    %v4987 = vpack.c.bf16 %v4755, %v4751
    %v4988 = vpack.c.bf16 %v4756, %v4752
    %v4989 = vpack.c.bf16 %v4761, %v4757
    %v4990 = vpack.c.bf16 %v4762, %v4758
    %v4991 = vpack.c.bf16 %v4763, %v4759
    %v4992 = vpack.c.bf16 %v4764, %v4760
    %v4993 = vpack.c.bf16 %v4769, %v4765
    %v4994 = vpack.c.bf16 %v4770, %v4766
    %v4995 = vpack.c.bf16 %v4771, %v4767
    %v4996 = vpack.c.bf16 %v4772, %v4768
    %v4997 = vpack.c.bf16 %v4777, %v4773
    %v4998 = vpack.c.bf16 %v4778, %v4774
    %v4999 = vpack.c.bf16 %v4779, %v4775
    %v5000 = vpack.c.bf16 %v4780, %v4776
    %v5001 = vpack.c.bf16 %v4785, %v4781
    %v5002 = vpack.c.bf16 %v4786, %v4782
    %v5003 = vpack.c.bf16 %v4787, %v4783
    %v5004 = vpack.c.bf16 %v4788, %v4784
    %v5005 = vpack.c.bf16 %v4793, %v4789
    %v5006 = vpack.c.bf16 %v4794, %v4790
    %v5007 = vpack.c.bf16 %v4795, %v4791
    %v5008 = vpack.c.bf16 %v4796, %v4792
    %v5009 = vpack.c.bf16 %v4801, %v4797
    %v5010 = vpack.c.bf16 %v4802, %v4798
    %v5011 = vpack.c.bf16 %v4803, %v4799
    %v5012 = vpack.c.bf16 %v4804, %v4800
    %v5013 = vpack.c.bf16 %v4809, %v4805
    %v5014 = vpack.c.bf16 %v4810, %v4806
    %v5015 = vpack.c.bf16 %v4811, %v4807
    %v5016 = vpack.c.bf16 %v4812, %v4808
    %v5017 = vpack.c.bf16 %v4817, %v4813
    %v5018 = vpack.c.bf16 %v4818, %v4814
    %v5019 = vpack.c.bf16 %v4819, %v4815
    %v5020 = vpack.c.bf16 %v4820, %v4816
    %v5021 = vpack.c.bf16 %v4825, %v4821
    %v5022 = vpack.c.bf16 %v4826, %v4822
    %v5023 = vpack.c.bf16 %v4827, %v4823
    %v5024 = vpack.c.bf16 %v4828, %v4824
    %v5025 = vpack.c.bf16 %v4833, %v4829
    %v5026 = vpack.c.bf16 %v4834, %v4830
    %v5027 = vpack.c.bf16 %v4835, %v4831
    %v5028 = vpack.c.bf16 %v4836, %v4832
    %v5029 = vpack.c.bf16 %v4841, %v4837
    %v5030 = vpack.c.bf16 %v4842, %v4838
    %v5031 = vpack.c.bf16 %v4843, %v4839
    %v5032 = vpack.c.bf16 %v4844, %v4840
    %v5033 = vpack.c.bf16 %v4849, %v4845
    %v5034 = vpack.c.bf16 %v4850, %v4846
    %v5035 = vpack.c.bf16 %v4851, %v4847
    %v5036 = vpack.c.bf16 %v4852, %v4848
    %v5037 = vpack.c.bf16 %v4857, %v4853
    %v5038 = vpack.c.bf16 %v4858, %v4854
    %v5039 = vpack.c.bf16 %v4859, %v4855
    %v5040 = vpack.c.bf16 %v4860, %v4856
    %v5041 = vpack.c.bf16 %v4865, %v4861
    %v5042 = vpack.c.bf16 %v4866, %v4862
    %v5043 = vpack.c.bf16 %v4867, %v4863
    %v5044 = vpack.c.bf16 %v4868, %v4864
    %v5045 = vpack.c.bf16 %v4873, %v4869
    %v5046 = vpack.c.bf16 %v4874, %v4870
    %v5047 = vpack.c.bf16 %v4875, %v4871
    %v5048 = vpack.c.bf16 %v4876, %v4872
    %v5049 = vpack.c.bf16 %v4881, %v4877
    %v5050 = vpack.c.bf16 %v4882, %v4878
    %v5051 = vpack.c.bf16 %v4883, %v4879
    %v5052 = vpack.c.bf16 %v4884, %v4880
    %v5053 = vpack.c.bf16 %v4889, %v4885
    %v5054 = vpack.c.bf16 %v4890, %v4886
    %v5055 = vpack.c.bf16 %v4891, %v4887
    %v5056 = vpack.c.bf16 %v4892, %v4888
    %v5057 = vpack.c.bf16 %v4897, %v4893
    %v5058 = vpack.c.bf16 %v4898, %v4894
    %v5059 = vpack.c.bf16 %v4899, %v4895
    %v5060 = vpack.c.bf16 %v4900, %v4896
    %v5061 = vpack.c.bf16 %v4905, %v4901
    %v5062 = vpack.c.bf16 %v4906, %v4902
    %v5063 = vpack.c.bf16 %v4907, %v4903
    %v5064 = vpack.c.bf16 %v4908, %v4904
    %v5065 = vpack.c.bf16 %v4913, %v4909
    %v5066 = vpack.c.bf16 %v4914, %v4910
    %v5067 = vpack.c.bf16 %v4915, %v4911
    %v5068 = vpack.c.bf16 %v4916, %v4912
    %v5069 = vpack.c.bf16 %v4921, %v4917
    %v5070 = vpack.c.bf16 %v4922, %v4918
    %v5071 = vpack.c.bf16 %v4923, %v4919
    %v5072 = vpack.c.bf16 %v4924, %v4920
    %v5073 = vpack.c.bf16 %v4929, %v4925
    %v5074 = vpack.c.bf16 %v4930, %v4926
    %v5075 = vpack.c.bf16 %v4931, %v4927
    %v5076 = vpack.c.bf16 %v4932, %v4928
    %v5077 = vpack.c.bf16 %v4937, %v4933
    %v5078 = vpack.c.bf16 %v4938, %v4934
    %v5079 = vpack.c.bf16 %v4939, %v4935
    %v5080 = vpack.c.bf16 %v4940, %v4936
    %v5081 = vpack.c.bf16 %v4945, %v4941
    %v5082 = vpack.c.bf16 %v4946, %v4942
    %v5083 = vpack.c.bf16 %v4947, %v4943
    %v5084 = vpack.c.bf16 %v4948, %v4944
    %v5085 = vpack.c.bf16 %v4953, %v4949
    %v5086 = vpack.c.bf16 %v4954, %v4950
    %v5087 = vpack.c.bf16 %v4955, %v4951
    %v5088 = vpack.c.bf16 %v4956, %v4952
    %v5089 = vpack.c.bf16 %v4961, %v4957
    %v5090 = vpack.c.bf16 %v4962, %v4958
    %v5091 = vpack.c.bf16 %v4963, %v4959
    %v5092 = vpack.c.bf16 %v4964, %v4960
    %5093 = vmatpush.bf16.msra.mxu0 %v4993
    %5094 = vmatpush.bf16.msra.mxu0 %v4989
    %5095 = vmatpush.bf16.msra.mxu0 %v4985
    %5096 = vmatpush.bf16.msra.mxu0 %v4981
    %5097 = vmatpush.bf16.msra.mxu0 %v4977
    %5098 = vmatpush.bf16.msra.mxu0 %v4973
    %5099 = vmatpush.bf16.msra.mxu0 %v4969
    %5100 = vmatpush.bf16.msra.mxu0 %v4965
    %5101 = vmatmul.bf16.gmra.mxu0 %v4385
    %v5102 = vpop.f32.mrf.mxu0
    %v5103 = vadd.f32 0.0, %v5102
    %v5104 = vpop.f32.mrf.mxu0
    %v5105 = vadd.f32 0.0, %v5104
    %5106 = vdwg.mxu0
    %5107 = vmatpush.bf16.msra.mxu0 %v5025
    %5108 = vmatpush.bf16.msra.mxu0 %v5021
    %5109 = vmatpush.bf16.msra.mxu0 %v5017
    %5110 = vmatpush.bf16.msra.mxu0 %v5013
    %5111 = vmatpush.bf16.msra.mxu0 %v5009
    %5112 = vmatpush.bf16.msra.mxu0 %v5005
    %5113 = vmatpush.bf16.msra.mxu0 %v5001
    %5114 = vmatpush.bf16.msra.mxu0 %v4997
    %5115 = vmatmul.bf16.gmra.mxu0 %v4386
    %v5116 = vpop.f32.mrf.mxu0
    %v5117 = vadd.f32 %v5103, %v5116
    %v5118 = vpop.f32.mrf.mxu0
    %v5119 = vadd.f32 %v5105, %v5118
    %5120 = vdwg.mxu0
    %5121 = vmatpush.bf16.msra.mxu0 %v5057
    %5122 = vmatpush.bf16.msra.mxu0 %v5053
    %5123 = vmatpush.bf16.msra.mxu0 %v5049
    %5124 = vmatpush.bf16.msra.mxu0 %v5045
    %5125 = vmatpush.bf16.msra.mxu0 %v5041
    %5126 = vmatpush.bf16.msra.mxu0 %v5037
    %5127 = vmatpush.bf16.msra.mxu0 %v5033
    %5128 = vmatpush.bf16.msra.mxu0 %v5029
    %5129 = vmatmul.bf16.gmra.mxu0 %v4387
    %v5130 = vpop.f32.mrf.mxu0
    %v5131 = vadd.f32 %v5117, %v5130
    %v5132 = vpop.f32.mrf.mxu0
    %v5133 = vadd.f32 %v5119, %v5132
    %5134 = vdwg.mxu0
    %5135 = vmatpush.bf16.msra.mxu0 %v5089
    %5136 = vmatpush.bf16.msra.mxu0 %v5085
    %5137 = vmatpush.bf16.msra.mxu0 %v5081
    %5138 = vmatpush.bf16.msra.mxu0 %v5077
    %5139 = vmatpush.bf16.msra.mxu0 %v5073
    %5140 = vmatpush.bf16.msra.mxu0 %v5069
    %5141 = vmatpush.bf16.msra.mxu0 %v5065
    %5142 = vmatpush.bf16.msra.mxu0 %v5061
    %5143 = vmatmul.bf16.gmra.mxu0 %v4388
    %v5144 = vpop.f32.mrf.mxu0
    %v5145 = vadd.f32 %v5131, %v5144
    %v5146 = vpop.f32.mrf.mxu0
    %v5147 = vadd.f32 %v5133, %v5146
    %5148 = vdwg.mxu0
    %5149 = vmatpush.bf16.msra.mxu0 %v4994
    %5150 = vmatpush.bf16.msra.mxu0 %v4990
    %5151 = vmatpush.bf16.msra.mxu0 %v4986
    %5152 = vmatpush.bf16.msra.mxu0 %v4982
    %5153 = vmatpush.bf16.msra.mxu0 %v4978
    %5154 = vmatpush.bf16.msra.mxu0 %v4974
    %5155 = vmatpush.bf16.msra.mxu0 %v4970
    %5156 = vmatpush.bf16.msra.mxu0 %v4966
    %5157 = vmatmul.bf16.gmra.mxu0 %v4385
    %v5158 = vpop.f32.mrf.mxu0
    %v5159 = vadd.f32 0.0, %v5158
    %v5160 = vpop.f32.mrf.mxu0
    %v5161 = vadd.f32 0.0, %v5160
    %5162 = vdwg.mxu0
    %5163 = vmatpush.bf16.msra.mxu0 %v5026
    %5164 = vmatpush.bf16.msra.mxu0 %v5022
    %5165 = vmatpush.bf16.msra.mxu0 %v5018
    %5166 = vmatpush.bf16.msra.mxu0 %v5014
    %5167 = vmatpush.bf16.msra.mxu0 %v5010
    %5168 = vmatpush.bf16.msra.mxu0 %v5006
    %5169 = vmatpush.bf16.msra.mxu0 %v5002
    %5170 = vmatpush.bf16.msra.mxu0 %v4998
    %5171 = vmatmul.bf16.gmra.mxu0 %v4386
    %v5172 = vpop.f32.mrf.mxu0
    %v5173 = vadd.f32 %v5159, %v5172
    %v5174 = vpop.f32.mrf.mxu0
    %v5175 = vadd.f32 %v5161, %v5174
    %5176 = vdwg.mxu0
    %5177 = vmatpush.bf16.msra.mxu0 %v5058
    %5178 = vmatpush.bf16.msra.mxu0 %v5054
    %5179 = vmatpush.bf16.msra.mxu0 %v5050
    %5180 = vmatpush.bf16.msra.mxu0 %v5046
    %5181 = vmatpush.bf16.msra.mxu0 %v5042
    %5182 = vmatpush.bf16.msra.mxu0 %v5038
    %5183 = vmatpush.bf16.msra.mxu0 %v5034
    %5184 = vmatpush.bf16.msra.mxu0 %v5030
    %5185 = vmatmul.bf16.gmra.mxu0 %v4387
    %v5186 = vpop.f32.mrf.mxu0
    %v5187 = vadd.f32 %v5173, %v5186
    %v5188 = vpop.f32.mrf.mxu0
    %v5189 = vadd.f32 %v5175, %v5188
    %5190 = vdwg.mxu0
    %5191 = vmatpush.bf16.msra.mxu0 %v5090
    %5192 = vmatpush.bf16.msra.mxu0 %v5086
    %5193 = vmatpush.bf16.msra.mxu0 %v5082
    %5194 = vmatpush.bf16.msra.mxu0 %v5078
    %5195 = vmatpush.bf16.msra.mxu0 %v5074
    %5196 = vmatpush.bf16.msra.mxu0 %v5070
    %5197 = vmatpush.bf16.msra.mxu0 %v5066
    %5198 = vmatpush.bf16.msra.mxu0 %v5062
    %5199 = vmatmul.bf16.gmra.mxu0 %v4388
    %v5200 = vpop.f32.mrf.mxu0
    %v5201 = vadd.f32 %v5187, %v5200
    %v5202 = vpop.f32.mrf.mxu0
    %v5203 = vadd.f32 %v5189, %v5202
    %5204 = vdwg.mxu0
    %5205 = vmatpush.bf16.msra.mxu0 %v4995
    %5206 = vmatpush.bf16.msra.mxu0 %v4991
    %5207 = vmatpush.bf16.msra.mxu0 %v4987
    %5208 = vmatpush.bf16.msra.mxu0 %v4983
    %5209 = vmatpush.bf16.msra.mxu0 %v4979
    %5210 = vmatpush.bf16.msra.mxu0 %v4975
    %5211 = vmatpush.bf16.msra.mxu0 %v4971
    %5212 = vmatpush.bf16.msra.mxu0 %v4967
    %5213 = vmatmul.bf16.gmra.mxu0 %v4385
    %v5214 = vpop.f32.mrf.mxu0
    %v5215 = vadd.f32 0.0, %v5214
    %v5216 = vpop.f32.mrf.mxu0
    %v5217 = vadd.f32 0.0, %v5216
    %5218 = vdwg.mxu0
    %5219 = vmatpush.bf16.msra.mxu0 %v5027
    %5220 = vmatpush.bf16.msra.mxu0 %v5023
    %5221 = vmatpush.bf16.msra.mxu0 %v5019
    %5222 = vmatpush.bf16.msra.mxu0 %v5015
    %5223 = vmatpush.bf16.msra.mxu0 %v5011
    %5224 = vmatpush.bf16.msra.mxu0 %v5007
    %5225 = vmatpush.bf16.msra.mxu0 %v5003
    %5226 = vmatpush.bf16.msra.mxu0 %v4999
    %5227 = vmatmul.bf16.gmra.mxu0 %v4386
    %v5228 = vpop.f32.mrf.mxu0
    %v5229 = vadd.f32 %v5215, %v5228
    %v5230 = vpop.f32.mrf.mxu0
    %v5231 = vadd.f32 %v5217, %v5230
    %5232 = vdwg.mxu0
    %5233 = vmatpush.bf16.msra.mxu0 %v5059
    %5234 = vmatpush.bf16.msra.mxu0 %v5055
    %5235 = vmatpush.bf16.msra.mxu0 %v5051
    %5236 = vmatpush.bf16.msra.mxu0 %v5047
    %5237 = vmatpush.bf16.msra.mxu0 %v5043
    %5238 = vmatpush.bf16.msra.mxu0 %v5039
    %5239 = vmatpush.bf16.msra.mxu0 %v5035
    %5240 = vmatpush.bf16.msra.mxu0 %v5031
    %5241 = vmatmul.bf16.gmra.mxu0 %v4387
    %v5242 = vpop.f32.mrf.mxu0
    %v5243 = vadd.f32 %v5229, %v5242
    %v5244 = vpop.f32.mrf.mxu0
    %v5245 = vadd.f32 %v5231, %v5244
    %5246 = vdwg.mxu0
    %5247 = vmatpush.bf16.msra.mxu0 %v5091
    %5248 = vmatpush.bf16.msra.mxu0 %v5087
    %5249 = vmatpush.bf16.msra.mxu0 %v5083
    %5250 = vmatpush.bf16.msra.mxu0 %v5079
    %5251 = vmatpush.bf16.msra.mxu0 %v5075
    %5252 = vmatpush.bf16.msra.mxu0 %v5071
    %5253 = vmatpush.bf16.msra.mxu0 %v5067
    %5254 = vmatpush.bf16.msra.mxu0 %v5063
    %5255 = vmatmul.bf16.gmra.mxu0 %v4388
    %v5256 = vpop.f32.mrf.mxu0
    %v5257 = vadd.f32 %v5243, %v5256
    %v5258 = vpop.f32.mrf.mxu0
    %v5259 = vadd.f32 %v5245, %v5258
    %5260 = vdwg.mxu0
    %5261 = vmatpush.bf16.msra.mxu0 %v4996
    %5262 = vmatpush.bf16.msra.mxu0 %v4992
    %5263 = vmatpush.bf16.msra.mxu0 %v4988
    %5264 = vmatpush.bf16.msra.mxu0 %v4984
    %5265 = vmatpush.bf16.msra.mxu0 %v4980
    %5266 = vmatpush.bf16.msra.mxu0 %v4976
    %5267 = vmatpush.bf16.msra.mxu0 %v4972
    %5268 = vmatpush.bf16.msra.mxu0 %v4968
    %5269 = vmatmul.bf16.gmra.mxu0 %v4385
    %v5270 = vpop.f32.mrf.mxu0
    %v5271 = vadd.f32 0.0, %v5270
    %v5272 = vpop.f32.mrf.mxu0
    %v5273 = vadd.f32 0.0, %v5272
    %5274 = vdwg.mxu0
    %5275 = vmatpush.bf16.msra.mxu0 %v5028
    %5276 = vmatpush.bf16.msra.mxu0 %v5024
    %5277 = vmatpush.bf16.msra.mxu0 %v5020
    %5278 = vmatpush.bf16.msra.mxu0 %v5016
    %5279 = vmatpush.bf16.msra.mxu0 %v5012
    %5280 = vmatpush.bf16.msra.mxu0 %v5008
    %5281 = vmatpush.bf16.msra.mxu0 %v5004
    %5282 = vmatpush.bf16.msra.mxu0 %v5000
    %5283 = vmatmul.bf16.gmra.mxu0 %v4386
    %v5284 = vpop.f32.mrf.mxu0
    %v5285 = vadd.f32 %v5271, %v5284
    %v5286 = vpop.f32.mrf.mxu0
    %v5287 = vadd.f32 %v5273, %v5286
    %5288 = vdwg.mxu0
    %5289 = vmatpush.bf16.msra.mxu0 %v5060
    %5290 = vmatpush.bf16.msra.mxu0 %v5056
    %5291 = vmatpush.bf16.msra.mxu0 %v5052
    %5292 = vmatpush.bf16.msra.mxu0 %v5048
    %5293 = vmatpush.bf16.msra.mxu0 %v5044
    %5294 = vmatpush.bf16.msra.mxu0 %v5040
    %5295 = vmatpush.bf16.msra.mxu0 %v5036
    %5296 = vmatpush.bf16.msra.mxu0 %v5032
    %5297 = vmatmul.bf16.gmra.mxu0 %v4387
    %v5298 = vpop.f32.mrf.mxu0
    %v5299 = vadd.f32 %v5285, %v5298
    %v5300 = vpop.f32.mrf.mxu0
    %v5301 = vadd.f32 %v5287, %v5300
    %5302 = vdwg.mxu0
    %5303 = vmatpush.bf16.msra.mxu0 %v5092
    %5304 = vmatpush.bf16.msra.mxu0 %v5088
    %5305 = vmatpush.bf16.msra.mxu0 %v5084
    %5306 = vmatpush.bf16.msra.mxu0 %v5080
    %5307 = vmatpush.bf16.msra.mxu0 %v5076
    %5308 = vmatpush.bf16.msra.mxu0 %v5072
    %5309 = vmatpush.bf16.msra.mxu0 %v5068
    %5310 = vmatpush.bf16.msra.mxu0 %v5064
    %5311 = vmatmul.bf16.gmra.mxu0 %v4388
    %v5312 = vpop.f32.mrf.mxu0
    %v5313 = vadd.f32 %v5299, %v5312
    %v5314 = vpop.f32.mrf.mxu0
    %v5315 = vadd.f32 %v5301, %v5314
    %5316 = vdwg.mxu0
    %v5317 = vld [vmem:[%s8] sm:$0xf]
    %v5319 = vperm.slane %v5317, 0
    %v5320 = vperm.slane %v5317, 1
    %v5321 = vperm.slane %v5317, 2
    %v5322 = vperm.slane %v5317, 3
    %v5327 = vmul.f32 %v5145, %v5319
    %v5328 = vmul.f32 %v5201, %v5320
    %v5329 = vmul.f32 %v5257, %v5321
    %v5330 = vmul.f32 %v5313, %v5322
    %v5331 = vmul.f32 %v5147, %v5319
    %v5332 = vmul.f32 %v5203, %v5320
    %v5333 = vmul.f32 %v5259, %v5321
    %v5334 = vmul.f32 %v5315, %v5322
    %v5335 = vld [vmem:[#allocation8] sm:$0xf]
    %v5337 = vperm.slane %v5335, 0
    %v5338 = vperm.slane %v5335, 1
    %v5339 = vperm.slane %v5335, 2
    %v5340 = vperm.slane %v5335, 3
    %v5345 = vadd.f32 %v5327, %v5337
    %v5346 = vadd.f32 %v5328, %v5338
    %v5347 = vadd.f32 %v5329, %v5339
    %v5348 = vadd.f32 %v5330, %v5340
    %v5349 = vadd.f32 %v5331, %v5337
    %v5350 = vadd.f32 %v5332, %v5338
    %v5351 = vadd.f32 %v5333, %v5339
    %v5352 = vadd.f32 %v5334, %v5340
    %v5353 = vmax.f32 %v5345, 0.0
    %v5354 = vmax.f32 %v5346, 0.0
    %v5355 = vmax.f32 %v5347, 0.0
    %v5356 = vmax.f32 %v5348, 0.0
    %v5357 = vmax.f32 %v5349, 0.0
    %v5358 = vmax.f32 %v5350, 0.0
    %v5359 = vmax.f32 %v5351, 0.0
    %v5360 = vmax.f32 %v5352, 0.0
    %v5361 = vpack.c.bf16 %v5357, %v5353
    %v5362 = vpack.c.bf16 %v5358, %v5354
    %v5363 = vpack.c.bf16 %v5359, %v5355
    %v5364 = vpack.c.bf16 %v5360, %v5356
    %v5365 = vld [vmem:[#allocation10] sm:$0xff]
    %v5366 = vld [vmem:[#allocation10 + $0x8] sm:$0xff]
    %v5367 = vld [vmem:[#allocation10 + $0x10] sm:$0xff]
    %v5368 = vld [vmem:[#allocation10 + $0x18] sm:$0xff]
    %v5369 = vld [vmem:[#allocation10 + $0x20] sm:$0xff]
    %v5370 = vld [vmem:[#allocation10 + $0x28] sm:$0xff]
    %v5371 = vld [vmem:[#allocation10 + $0x30] sm:$0xff]
    %v5372 = vld [vmem:[#allocation10 + $0x38] sm:$0xff]
    %v5373 = vld [vmem:[#allocation10 + $0x40] sm:$0xff]
    %v5374 = vld [vmem:[#allocation10 + $0x48] sm:$0xff]
    %v5375 = vld [vmem:[#allocation10 + $0x50] sm:$0xff]
    %v5376 = vld [vmem:[#allocation10 + $0x58] sm:$0xff]
    %v5377 = vld [vmem:[#allocation10 + $0x60] sm:$0xff]
    %v5378 = vld [vmem:[#allocation10 + $0x68] sm:$0xff]
    %v5379 = vld [vmem:[#allocation10 + $0x70] sm:$0xff]
    %v5380 = vld [vmem:[#allocation10 + $0x78] sm:$0xff]
    %v5381 = vunpack.c.0.s8 %v5365
    %v5382 = vunpack.c.1.s8 %v5365
    %v5383 = vunpack.c.2.s8 %v5365
    %v5384 = vunpack.c.3.s8 %v5365
    %v5385 = vunpack.c.0.s8 %v5366
    %v5386 = vunpack.c.1.s8 %v5366
    %v5387 = vunpack.c.2.s8 %v5366
    %v5388 = vunpack.c.3.s8 %v5366
    %v5389 = vunpack.c.0.s8 %v5367
    %v5390 = vunpack.c.1.s8 %v5367
    %v5391 = vunpack.c.2.s8 %v5367
    %v5392 = vunpack.c.3.s8 %v5367
    %v5393 = vunpack.c.0.s8 %v5368
    %v5394 = vunpack.c.1.s8 %v5368
    %v5395 = vunpack.c.2.s8 %v5368
    %v5396 = vunpack.c.3.s8 %v5368
    %v5397 = vunpack.c.0.s8 %v5369
    %v5398 = vunpack.c.1.s8 %v5369
    %v5399 = vunpack.c.2.s8 %v5369
    %v5400 = vunpack.c.3.s8 %v5369
    %v5401 = vunpack.c.0.s8 %v5370
    %v5402 = vunpack.c.1.s8 %v5370
    %v5403 = vunpack.c.2.s8 %v5370
    %v5404 = vunpack.c.3.s8 %v5370
    %v5405 = vunpack.c.0.s8 %v5371
    %v5406 = vunpack.c.1.s8 %v5371
    %v5407 = vunpack.c.2.s8 %v5371
    %v5408 = vunpack.c.3.s8 %v5371
    %v5409 = vunpack.c.0.s8 %v5372
    %v5410 = vunpack.c.1.s8 %v5372
    %v5411 = vunpack.c.2.s8 %v5372
    %v5412 = vunpack.c.3.s8 %v5372
    %v5413 = vunpack.c.0.s8 %v5373
    %v5414 = vunpack.c.1.s8 %v5373
    %v5415 = vunpack.c.2.s8 %v5373
    %v5416 = vunpack.c.3.s8 %v5373
    %v5417 = vunpack.c.0.s8 %v5374
    %v5418 = vunpack.c.1.s8 %v5374
    %v5419 = vunpack.c.2.s8 %v5374
    %v5420 = vunpack.c.3.s8 %v5374
    %v5421 = vunpack.c.0.s8 %v5375
    %v5422 = vunpack.c.1.s8 %v5375
    %v5423 = vunpack.c.2.s8 %v5375
    %v5424 = vunpack.c.3.s8 %v5375
    %v5425 = vunpack.c.0.s8 %v5376
    %v5426 = vunpack.c.1.s8 %v5376
    %v5427 = vunpack.c.2.s8 %v5376
    %v5428 = vunpack.c.3.s8 %v5376
    %v5429 = vunpack.c.0.s8 %v5377
    %v5430 = vunpack.c.1.s8 %v5377
    %v5431 = vunpack.c.2.s8 %v5377
    %v5432 = vunpack.c.3.s8 %v5377
    %v5433 = vunpack.c.0.s8 %v5378
    %v5434 = vunpack.c.1.s8 %v5378
    %v5435 = vunpack.c.2.s8 %v5378
    %v5436 = vunpack.c.3.s8 %v5378
    %v5437 = vunpack.c.0.s8 %v5379
    %v5438 = vunpack.c.1.s8 %v5379
    %v5439 = vunpack.c.2.s8 %v5379
    %v5440 = vunpack.c.3.s8 %v5379
    %v5441 = vunpack.c.0.s8 %v5380
    %v5442 = vunpack.c.1.s8 %v5380
    %v5443 = vunpack.c.2.s8 %v5380
    %v5444 = vunpack.c.3.s8 %v5380
    %v5445 = vcvt.s32.f32 %v5381
    %v5446 = vcvt.s32.f32 %v5382
    %v5447 = vcvt.s32.f32 %v5383
    %v5448 = vcvt.s32.f32 %v5384
    %v5449 = vcvt.s32.f32 %v5385
    %v5450 = vcvt.s32.f32 %v5386
    %v5451 = vcvt.s32.f32 %v5387
    %v5452 = vcvt.s32.f32 %v5388
    %v5453 = vcvt.s32.f32 %v5389
    %v5454 = vcvt.s32.f32 %v5390
    %v5455 = vcvt.s32.f32 %v5391
    %v5456 = vcvt.s32.f32 %v5392
    %v5457 = vcvt.s32.f32 %v5393
    %v5458 = vcvt.s32.f32 %v5394
    %v5459 = vcvt.s32.f32 %v5395
    %v5460 = vcvt.s32.f32 %v5396
    %v5461 = vcvt.s32.f32 %v5397
    %v5462 = vcvt.s32.f32 %v5398
    %v5463 = vcvt.s32.f32 %v5399
    %v5464 = vcvt.s32.f32 %v5400
    %v5465 = vcvt.s32.f32 %v5401
    %v5466 = vcvt.s32.f32 %v5402
    %v5467 = vcvt.s32.f32 %v5403
    %v5468 = vcvt.s32.f32 %v5404
    %v5469 = vcvt.s32.f32 %v5405
    %v5470 = vcvt.s32.f32 %v5406
    %v5471 = vcvt.s32.f32 %v5407
    %v5472 = vcvt.s32.f32 %v5408
    %v5473 = vcvt.s32.f32 %v5409
    %v5474 = vcvt.s32.f32 %v5410
    %v5475 = vcvt.s32.f32 %v5411
    %v5476 = vcvt.s32.f32 %v5412
    %v5477 = vcvt.s32.f32 %v5413
    %v5478 = vcvt.s32.f32 %v5414
    %v5479 = vcvt.s32.f32 %v5415
    %v5480 = vcvt.s32.f32 %v5416
    %v5481 = vcvt.s32.f32 %v5417
    %v5482 = vcvt.s32.f32 %v5418
    %v5483 = vcvt.s32.f32 %v5419
    %v5484 = vcvt.s32.f32 %v5420
    %v5485 = vcvt.s32.f32 %v5421
    %v5486 = vcvt.s32.f32 %v5422
    %v5487 = vcvt.s32.f32 %v5423
    %v5488 = vcvt.s32.f32 %v5424
    %v5489 = vcvt.s32.f32 %v5425
    %v5490 = vcvt.s32.f32 %v5426
    %v5491 = vcvt.s32.f32 %v5427
    %v5492 = vcvt.s32.f32 %v5428
    %v5493 = vcvt.s32.f32 %v5429
    %v5494 = vcvt.s32.f32 %v5430
    %v5495 = vcvt.s32.f32 %v5431
    %v5496 = vcvt.s32.f32 %v5432
    %v5497 = vcvt.s32.f32 %v5433
    %v5498 = vcvt.s32.f32 %v5434
    %v5499 = vcvt.s32.f32 %v5435
    %v5500 = vcvt.s32.f32 %v5436
    %v5501 = vcvt.s32.f32 %v5437
    %v5502 = vcvt.s32.f32 %v5438
    %v5503 = vcvt.s32.f32 %v5439
    %v5504 = vcvt.s32.f32 %v5440
    %v5505 = vcvt.s32.f32 %v5441
    %v5506 = vcvt.s32.f32 %v5442
    %v5507 = vcvt.s32.f32 %v5443
    %v5508 = vcvt.s32.f32 %v5444
    %v5509 = vpack.c.bf16 %v5446, %v5445
    %v5510 = vpack.c.bf16 %v5448, %v5447
    %v5511 = vpack.c.bf16 %v5450, %v5449
    %v5512 = vpack.c.bf16 %v5452, %v5451
    %v5513 = vpack.c.bf16 %v5454, %v5453
    %v5514 = vpack.c.bf16 %v5456, %v5455
    %v5515 = vpack.c.bf16 %v5458, %v5457
    %v5516 = vpack.c.bf16 %v5460, %v5459
    %v5517 = vpack.c.bf16 %v5462, %v5461
    %v5518 = vpack.c.bf16 %v5464, %v5463
    %v5519 = vpack.c.bf16 %v5466, %v5465
    %v5520 = vpack.c.bf16 %v5468, %v5467
    %v5521 = vpack.c.bf16 %v5470, %v5469
    %v5522 = vpack.c.bf16 %v5472, %v5471
    %v5523 = vpack.c.bf16 %v5474, %v5473
    %v5524 = vpack.c.bf16 %v5476, %v5475
    %v5525 = vpack.c.bf16 %v5478, %v5477
    %v5526 = vpack.c.bf16 %v5480, %v5479
    %v5527 = vpack.c.bf16 %v5482, %v5481
    %v5528 = vpack.c.bf16 %v5484, %v5483
    %v5529 = vpack.c.bf16 %v5486, %v5485
    %v5530 = vpack.c.bf16 %v5488, %v5487
    %v5531 = vpack.c.bf16 %v5490, %v5489
    %v5532 = vpack.c.bf16 %v5492, %v5491
    %v5533 = vpack.c.bf16 %v5494, %v5493
    %v5534 = vpack.c.bf16 %v5496, %v5495
    %v5535 = vpack.c.bf16 %v5498, %v5497
    %v5536 = vpack.c.bf16 %v5500, %v5499
    %v5537 = vpack.c.bf16 %v5502, %v5501
    %v5538 = vpack.c.bf16 %v5504, %v5503
    %v5539 = vpack.c.bf16 %v5506, %v5505
    %v5540 = vpack.c.bf16 %v5508, %v5507
    %5541 = vmatpush.bf16.msra.mxu0 %v5516
    %5542 = vmatpush.bf16.msra.mxu0 %v5515
    %5543 = vmatpush.bf16.msra.mxu0 %v5514
    %5544 = vmatpush.bf16.msra.mxu0 %v5513
    %5545 = vmatpush.bf16.msra.mxu0 %v5512
    %5546 = vmatpush.bf16.msra.mxu0 %v5511
    %5547 = vmatpush.bf16.msra.mxu0 %v5510
    %5548 = vmatpush.bf16.msra.mxu0 %v5509
    %5549 = vmatmul.bf16.gmra.mxu0 %v5361
    %v5550 = vpop.f32.mrf.mxu0
    %v5551 = vadd.f32 0.0, %v5550
    %v5552 = vpop.f32.mrf.mxu0
    %v5553 = vadd.f32 0.0, %v5552
    %5554 = vdwg.mxu0
    %5555 = vmatpush.bf16.msra.mxu0 %v5524
    %5556 = vmatpush.bf16.msra.mxu0 %v5523
    %5557 = vmatpush.bf16.msra.mxu0 %v5522
    %5558 = vmatpush.bf16.msra.mxu0 %v5521
    %5559 = vmatpush.bf16.msra.mxu0 %v5520
    %5560 = vmatpush.bf16.msra.mxu0 %v5519
    %5561 = vmatpush.bf16.msra.mxu0 %v5518
    %5562 = vmatpush.bf16.msra.mxu0 %v5517
    %5563 = vmatmul.bf16.gmra.mxu0 %v5362
    %v5564 = vpop.f32.mrf.mxu0
    %v5565 = vadd.f32 %v5551, %v5564
    %v5566 = vpop.f32.mrf.mxu0
    %v5567 = vadd.f32 %v5553, %v5566
    %5568 = vdwg.mxu0
    %5569 = vmatpush.bf16.msra.mxu0 %v5532
    %5570 = vmatpush.bf16.msra.mxu0 %v5531
    %5571 = vmatpush.bf16.msra.mxu0 %v5530
    %5572 = vmatpush.bf16.msra.mxu0 %v5529
    %5573 = vmatpush.bf16.msra.mxu0 %v5528
    %5574 = vmatpush.bf16.msra.mxu0 %v5527
    %5575 = vmatpush.bf16.msra.mxu0 %v5526
    %5576 = vmatpush.bf16.msra.mxu0 %v5525
    %5577 = vmatmul.bf16.gmra.mxu0 %v5363
    %v5578 = vpop.f32.mrf.mxu0
    %v5579 = vadd.f32 %v5565, %v5578
    %v5580 = vpop.f32.mrf.mxu0
    %v5581 = vadd.f32 %v5567, %v5580
    %5582 = vdwg.mxu0
    %5583 = vmatpush.bf16.msra.mxu0 %v5540
    %5584 = vmatpush.bf16.msra.mxu0 %v5539
    %5585 = vmatpush.bf16.msra.mxu0 %v5538
    %5586 = vmatpush.bf16.msra.mxu0 %v5537
    %5587 = vmatpush.bf16.msra.mxu0 %v5536
    %5588 = vmatpush.bf16.msra.mxu0 %v5535
    %5589 = vmatpush.bf16.msra.mxu0 %v5534
    %5590 = vmatpush.bf16.msra.mxu0 %v5533
    %5591 = vmatmul.bf16.gmra.mxu0 %v5364
    %v5592 = vpop.f32.mrf.mxu0
    %v5593 = vadd.f32 %v5579, %v5592
    %v5594 = vpop.f32.mrf.mxu0
    %v5595 = vadd.f32 %v5581, %v5594
    %5596 = vdwg.mxu0
    %v5597 = vld [vmem:[%s11] sm:$0x1]
    %v5599 = vperm.slane %v5597, 0
    %v5601 = vmul.f32 %v5593, %v5599
    %v5602 = vmul.f32 %v5595, %v5599
    %v5603 = vld [vmem:[%s12] sm:$0x1]
    %v5605 = vperm.slane %v5603, 0
    %v5607 = vadd.f32 %v5601, %v5605
    %v5608 = vadd.f32 %v5602, %v5605
    %v5609 = vxor.u32 %v5607, 2147483648
    %v5610 = vxor.u32 %v5608, 2147483648
    %v5611 = vmul.f32 %v5609, 1.442695
    %v5612 = vpow.pop %v5611
    %v5613 = vmul.f32 %v5610, 1.442695
    %v5614 = vpow.pop %v5613
    %v5615 = vadd.f32 %v5612, 1.0
    %v5616 = vadd.f32 %v5614, 1.0
    %v5617 = vrcp.pop %v5615
    %v5618 = vmul.f32 %v5615, %v5617
    %v5619 = vsub.f32 1.0, %v5618
    %v5620 = vmul.f32 %v5617, %v5619
    %v5621 = vadd.f32 %v5617, %v5620
    %vm5622 = vweird.f32 %v5615
    %vm5623 = vweird.f32 %v5617
    %vm5624 = vmor %vm5622, %vm5623
    %v5625 = vsel %vm5624, %v5617, %v5621
    %v5626 = vand.u32 2147483647, %v5615
    %vm5627 = vcmp.eq.f32.partialorder %v5626, 8.507059e+37
    %v5628 = vand.u32 %v5615, 2147483648
    %v5629 = vor.u32 1.1754944e-38, %v5628
    %v5630 = vsel %vm5627, %v5629, %v5625
    %v5631 = vmul.f32 1.0, %v5630
    %v5632 = vrcp.pop %v5616
    %v5633 = vmul.f32 %v5616, %v5632
    %v5634 = vsub.f32 1.0, %v5633
    %v5635 = vmul.f32 %v5632, %v5634
    %v5636 = vadd.f32 %v5632, %v5635
    %vm5637 = vweird.f32 %v5616
    %vm5638 = vweird.f32 %v5632
    %vm5639 = vmor %vm5637, %vm5638
    %v5640 = vsel %vm5639, %v5632, %v5636
    %v5641 = vand.u32 2147483647, %v5616
    %vm5642 = vcmp.eq.f32.partialorder %v5641, 8.507059e+37
    %v5643 = vand.u32 %v5616, 2147483648
    %v5644 = vor.u32 1.1754944e-38, %v5643
    %v5645 = vsel %vm5642, %v5644, %v5640
    %v5646 = vmul.f32 1.0, %v5645
    %5647 = vst [vmem:[#allocation11] sm:$0xff] %v5631
    %5648 = vst [vmem:[#allocation11 + $0x8] sm:$0xff] %v5646
    // Predicated region
    $region74: #{decoder_forward.1} parent=1 // pred_check
      _
    $region75: #{decoder_forward.1} parent=1 // pred_check_branch
      %5650 = sbr.rel (0) target = $region77
    $region76: #{decoder_forward.1} parent=1 // pred_region
      %5652 = vsyncadd [#allocation4], 0
      %s5653 = sshll.u32 [#allocation11], 4
      %s5654 = int_to_ptr.vmem [resolvable:$true] %s5653
      %s5655 = sshll.u32 %s13, 4
      %s5656 = int_to_ptr.hbm [resolvable:$true] %s5655
      %5661 = dma.vmem_to_hbm [thread:$0]  %s5654, 256, %s5656, [#allocation4], 128, 128, 8
    $region77: #{decoder_forward.1} parent=1 // pred_fallthru
      _
    // Predicated region
    $region78: #{decoder_forward.1} parent=1 // pred_check
      _
    $region79: #{decoder_forward.1} parent=1 // pred_check_branch
      %5663 = sbr.rel (0) target = $region81
    $region80: #{decoder_forward.1} parent=1 // pred_region
      %5665 = dma.done [#allocation4], 256
    $region81: #{decoder_forward.1} parent=1 // pred_fallthru
      _
    %5666 = vsyncpa [#allocation3], 1
    %5667 = vsyncpa [#allocation6], 1
    %5668 = vsyncpa [#allocation9], 1
    %5669 = vsyncpa [#allocation4], 1

</llo_original>
